<compile_context>
chip_gen: v7x
topology: tpu7x:2x2x1
jax: 0.10.0
libtpu: 0.0.40
codegen_flags: <defaults>
</compile_context>

<pallas_src>
import math
from functools import partial

import jax
import jax.numpy as jnp
from jax.experimental import pallas as pl
from jax.experimental.pallas import tpu as pltpu


def _round_up(x, m):
    return -(-x // m) * m


def _gnn_kernel(a_ref, h_ref, w_big_ref, b_big_ref, b0_ref, out_ref, *, step):
    Tb, L, E = h_ref.shape
    G = w_big_ref.shape[1] // 3        # lane-padded gate width (>= 3E, mult of 128)
    f32 = jnp.float32
    dt = h_ref.dtype

    A = a_ref[...]                     # (Tb, L, 2L) = [A_in | A_out], compute dtype
    w_big = w_big_ref[...]             # (E, 3G) = [M_in | M_out | w_hh^T] (padded)
    b_big = b_big_ref[...]             # (1, 3G) = [c_in | c_out | b_hh], f32
    b0 = b0_ref[...]                   # (1, G)  folded gi bias, f32

    def cell(h):                       # h: (Tb, L, E) in compute dtype
        h2 = h.reshape(Tb * L, E)                              # free (leading-dim merge)
        # One fused shared-weight matmul produces all three projections.
        big = jnp.dot(h2, w_big, preferred_element_type=f32) + b_big   # (Tb*L, 3G)
        big3 = big.reshape(Tb, L, 3 * G)                       # free (leading-dim split)
        proj_in = big3[..., :G]            # h @ M_in  + c_in   (edge-in  -> w_ih fold)
        proj_out = big3[..., G:2 * G]      # h @ M_out + c_out  (edge-out -> w_ih fold)
        gh = big3[..., 2 * G:]             # h @ w_hh^T + b_hh  (stays f32)

        # Merged adjacency contraction: A = [A_in | A_out] along K, so
        # A @ [proj_in ; proj_out] == A_in@proj_in + A_out@proj_out (and the
        # folded edge biases propagate through A automatically).
        proj = jnp.concatenate([proj_in, proj_out], axis=1).astype(dt)  # (Tb, 2L, G)
        gi = jnp.einsum('blk,bke->ble', A, proj,
                        preferred_element_type=f32) + b0                # (Tb, L, G)

        # GRU-style gates, all in f32.
        s = gi + gh                                            # whole-vreg add
        gates = jax.nn.sigmoid(s[..., :2 * E])                 # [reset | input]
        reset_gate = gates[..., :E]
        input_gate = gates[..., E:2 * E]
        new_gate = jnp.tanh(gi[..., 2 * E:3 * E] + reset_gate * gh[..., 2 * E:3 * E])
        hf = h.astype(f32)
        return hf + input_gate * (new_gate - hf)               # (1-ig)*h + ig*ng

    h = h_ref[...]
    if step <= 3:                      # unrolled: typical SR-GNN step is 1
        for _ in range(step):
            h = cell(h).astype(dt)
    else:                              # bound live ranges for deep propagation
        h = jax.lax.fori_loop(0, step, lambda _, hh: cell(hh).astype(dt), h)

    out_ref[...] = h.astype(out_ref.dtype)


def _make_gnn_call(Bp, Tb, L, E, G, step, out_dtype):
    full = lambda shape: pl.BlockSpec(shape, lambda b: (0,) * len(shape))
    in_specs = [
        pl.BlockSpec((Tb, L, 2 * L), lambda b: (b, 0, 0)),    # A block
        pl.BlockSpec((Tb, L, E), lambda b: (b, 0, 0)),        # hidden block
        full((E, 3 * G)),                                     # fused weight
        full((1, 3 * G)),                                     # fused chunk biases
        full((1, G)),                                         # folded gi bias
    ]
    return pl.pallas_call(
        partial(_gnn_kernel, step=step),
        out_shape=jax.ShapeDtypeStruct((Bp, L, E), out_dtype),
        grid_spec=pltpu.PrefetchScalarGridSpec(
            num_scalar_prefetch=0,
            grid=(Bp // Tb,),
            in_specs=in_specs,
            out_specs=pl.BlockSpec((Tb, L, E), lambda b: (b, 0, 0)),
        ),
        compiler_params=pltpu.CompilerParams(
            dimension_semantics=("parallel",)),
    )


def init_gnn_params(embedding_size, key):
    """Mirror GNN.__init__ / _reset_parameters: uniform(-stdv, stdv)."""
    E = embedding_size
    stdv = 1.0 / math.sqrt(E)
    shapes = dict(
        w_ih=(3 * E, 2 * E), w_hh=(3 * E, E),
        b_ih=(3 * E,), b_hh=(3 * E,),
        b_iah=(E,), b_ioh=(E,),
        w_edge_in=(E, E), b_edge_in=(E,),
        w_edge_out=(E, E), b_edge_out=(E,),
    )
    keys = jax.random.split(key, len(shapes))
    return {
        name: jax.random.uniform(k, shape, jnp.float32, -stdv, stdv)
        for (name, shape), k in zip(shapes.items(), keys)
    }


def recommended_compute_dtype():
    """Per-generation MXU-operand dtype: bf16 on v6e/v7x, f32 on v5e."""
    kind = jax.devices()[0].device_kind.lower()
    if "v6" in kind or "v7" in kind:
        return jnp.bfloat16
    return None


def gnn_forward(A, hidden, params, step=1, compute_dtype=None, block_batch=None):
    """Pallas implementation of GNN.forward (`step` propagation steps)."""
    B, L, E = hidden.shape
    assert A.shape == (B, L, 2 * L)
    p = params
    f32 = jnp.float32
    hi = jax.lax.Precision.HIGHEST
    dt = jnp.dtype(hidden.dtype if compute_dtype is None else compute_dtype)

    G = _round_up(3 * E, 128)          # lane-padded gate width

    # ---- wrapper-side algebraic fusion (f32, highest precision) -------------
    wih_in_t = p["w_ih"][:, :E].T                                 # (E, 3E)
    wih_out_t = p["w_ih"][:, E:].T                                # (E, 3E)
    m_in = jnp.dot(p["w_edge_in"].T, wih_in_t, precision=hi)      # (E, 3E)
    m_out = jnp.dot(p["w_edge_out"].T, wih_out_t, precision=hi)   # (E, 3E)
    whh_t = p["w_hh"].T                                           # (E, 3E)
    c_in = jnp.dot(p["b_edge_in"], wih_in_t, precision=hi)        # (3E,)
    c_out = jnp.dot(p["b_edge_out"], wih_out_t, precision=hi)     # (3E,)
    b0 = (p["b_ih"]
          + jnp.dot(p["b_iah"], wih_in_t, precision=hi)
          + jnp.dot(p["b_ioh"], wih_out_t, precision=hi))         # (3E,)

    pad_w = lambda w: jnp.pad(w, ((0, 0), (0, G - 3 * E)))
    pad_b = lambda b: jnp.pad(b, ((0, G - 3 * E),))
    w_big = jnp.concatenate([pad_w(m_in), pad_w(m_out), pad_w(whh_t)], axis=1)  # (E, 3G)
    b_big = jnp.concatenate([pad_b(c_in), pad_b(c_out),
                             pad_b(p["b_hh"])]).reshape(1, 3 * G)               # (1, 3G)
    b0_row = pad_b(b0).reshape(1, G)                                            # (1, G)

    # ---- batch blocking: Tb*L ~ 512 rows, but keep grid >= 2 (v7x: 2 TCs) ---
    if block_batch is None:
        Tb = max(1, _round_up(512, L) // L)
        if B >= 2:
            Tb = min(Tb, -(-B // 2))
        Tb = min(Tb, B)
    else:
        Tb = max(1, min(block_batch, B))
    Bp = _round_up(B, Tb)

    A_in = A.astype(dt)
    h_in = hidden.astype(dt)
    if Bp != B:
        pad = Bp - B
        A_in = jnp.pad(A_in, ((0, pad), (0, 0), (0, 0)))
        h_in = jnp.pad(h_in, ((0, pad), (0, 0), (0, 0)))

    call = _make_gnn_call(Bp, Tb, L, E, G, step, hidden.dtype)
    out = call(A_in, h_in, w_big.astype(dt), b_big.astype(f32), b0_row.astype(f32))
    if Bp != B:
        out = out[:B]
    return out


def gnn_forward_reference(A, hidden, params, step=1):
    """Pure-JAX reference matching the PyTorch GNN.forward semantics."""
    L = A.shape[1]
    p = params
    hi = jax.lax.Precision.HIGHEST
    h = hidden
    for _ in range(step):
        edge_in = jnp.dot(h, p["w_edge_in"].T, precision=hi) + p["b_edge_in"]
        edge_out = jnp.dot(h, p["w_edge_out"].T, precision=hi) + p["b_edge_out"]
        input_in = jnp.matmul(A[:, :, :L], edge_in, precision=hi) + p["b_iah"]
        input_out = jnp.matmul(A[:, :, L:2 * L], edge_out, precision=hi) + p["b_ioh"]
        inputs = jnp.concatenate([input_in, input_out], axis=2)
        gi = jnp.dot(inputs, p["w_ih"].T, precision=hi) + p["b_ih"]
        gh = jnp.dot(h, p["w_hh"].T, precision=hi) + p["b_hh"]
        i_r, i_i, i_n = jnp.split(gi, 3, axis=2)
        h_r, h_i, h_n = jnp.split(gh, 3, axis=2)
        reset_gate = jax.nn.sigmoid(i_r + h_r)
        input_gate = jax.nn.sigmoid(i_i + h_i)
        new_gate = jnp.tanh(i_n + reset_gate * h_n)
        h = (1 - input_gate) * h + input_gate * new_gate
    return h


if __name__ == "__main__":
    B, L, E = 64, 8, 32        # batch, max_session_len, embedding_size
    key = jax.random.PRNGKey(0)
    k_a, k_h, k_p = jax.random.split(key, 3)

    A = jax.random.uniform(k_a, (B, L, 2 * L), jnp.float32)
    hidden = jax.random.normal(k_h, (B, L, E), jnp.float32)
    params = init_gnn_params(E, k_p)

    # step = 1 (default SR-GNN config), f32 compute
    out = jax.block_until_ready(gnn_forward(A, hidden, params, step=1))
    ref = gnn_forward_reference(A, hidden, params, step=1)
    assert out.shape == (B, L, E)
    assert jnp.allclose(out, ref, atol=2e-4, rtol=2e-4), "mismatch vs reference (step=1)"

    # multi-step propagation: the loop runs inside the kernel, weights/A stay in VMEM
    out2 = jax.block_until_ready(gnn_forward(A, hidden, params, step=2))
    ref2 = gnn_forward_reference(A, hidden, params, step=2)
    assert jnp.allclose(out2, ref2, atol=2e-4, rtol=2e-4), "mismatch vs reference (step=2)"

    out3 = jax.block_until_ready(gnn_forward(A, hidden, params, step=3))
    ref3 = gnn_forward_reference(A, hidden, params, step=3)
    assert jnp.allclose(out3, ref3, atol=5e-4, rtol=5e-4), "mismatch vs reference (step=3)"

    # non-divisible small batch exercises the padding path (Tb=2, grid=2)
    out4 = jax.block_until_ready(gnn_forward(A[:3], hidden[:3], params, step=1))
    ref4 = gnn_forward_reference(A[:3], hidden[:3], params, step=1)
    assert jnp.allclose(out4, ref4, atol=2e-4, rtol=2e-4), "mismatch vs reference (B=3)"

    # bf16 MXU operands (recommended on v6e/v7x); gate math stays f32
    out_bf = jax.block_until_ready(
        gnn_forward(A, hidden, params, step=1, compute_dtype=jnp.bfloat16))
    assert out_bf.shape == (B, L, E)
    assert bool(jnp.all(jnp.isfinite(out_bf)))
    assert jnp.allclose(out_bf, ref, atol=1.5e-1, rtol=0.0), "bf16 drift too large"

    print("KERNEL_OK")
</pallas_src>

<mosaic_0001>
module attributes {stable_mosaic.version = 11 : i64} {
  func.func @_gnn_kernel(%arg0: i32, %arg1: memref<32x8x16xf32, #tpu.memory_space<vmem>>, %arg2: memref<32x8x32xf32, #tpu.memory_space<vmem>>, %arg3: memref<32x384xf32, #tpu.memory_space<vmem>>, %arg4: memref<1x384xf32, #tpu.memory_space<vmem>>, %arg5: memref<1x128xf32, #tpu.memory_space<vmem>>, %arg6: memref<32x8x32xf32, #tpu.memory_space<vmem>>) attributes {dimension_semantics = [#tpu.dimension_semantics<parallel>], iteration_bounds = array<i64: 2>, scalar_prefetch = 0 : i64, scratch_operands = 0 : i64, tpu.core_type = #tpu.core_type<tc>, window_params = [{transform_indices = @transform_0, window_bounds = array<i64: 32, 8, 16>}, {transform_indices = @transform_1, window_bounds = array<i64: 32, 8, 32>}, {pipeline_mode = #tpu.pipeline_mode<synchronous>, transform_indices = @transform_2, window_bounds = array<i64: 32, 384>}, {pipeline_mode = #tpu.pipeline_mode<synchronous>, transform_indices = @transform_3, window_bounds = array<i64: 1, 384>}, {pipeline_mode = #tpu.pipeline_mode<synchronous>, transform_indices = @transform_4, window_bounds = array<i64: 1, 128>}, {transform_indices = @transform_5, window_bounds = array<i64: 32, 8, 32>}]} {
    %c0 = arith.constant 0 : index
    %c0_0 = arith.constant 0 : index
    %c0_1 = arith.constant 0 : index
    %0 = vector.load %arg1[%c0, %c0_0, %c0_1] : memref<32x8x16xf32, #tpu.memory_space<vmem>>, vector<32x8x16xf32>
    %c0_2 = arith.constant 0 : index
    %c0_3 = arith.constant 0 : index
    %1 = vector.load %arg3[%c0_2, %c0_3] : memref<32x384xf32, #tpu.memory_space<vmem>>, vector<32x384xf32>
    %c0_4 = arith.constant 0 : index
    %c0_5 = arith.constant 0 : index
    %2 = vector.load %arg4[%c0_4, %c0_5] : memref<1x384xf32, #tpu.memory_space<vmem>>, vector<1x384xf32>
    %c0_6 = arith.constant 0 : index
    %c0_7 = arith.constant 0 : index
    %3 = vector.load %arg5[%c0_6, %c0_7] : memref<1x128xf32, #tpu.memory_space<vmem>>, vector<1x128xf32>
    %c0_8 = arith.constant 0 : index
    %c0_9 = arith.constant 0 : index
    %c0_10 = arith.constant 0 : index
    %4 = vector.load %arg2[%c0_8, %c0_9, %c0_10] : memref<32x8x32xf32, #tpu.memory_space<vmem>>, vector<32x8x32xf32>
    %5 = vector.shape_cast %4 : vector<32x8x32xf32> to vector<256x32xf32>
    %cst = arith.constant dense<0.000000e+00> : vector<256x384xf32>
    %6 = tpu.matmul %5, %1, %cst {dimension_numbers = #tpu.dot_dimension_numbers<[1], [0], [0], [1], [0, 0, 1, 1], [], []>} : vector<256x32xf32>, vector<32x384xf32>, vector<256x384xf32> -> vector<256x384xf32>
    %7 = vector.broadcast %2 : vector<1x384xf32> to vector<256x384xf32>
    %8 = arith.addf %6, %7 : vector<256x384xf32>
    %9 = vector.shape_cast %8 : vector<256x384xf32> to vector<32x8x384xf32>
    %10 = vector.extract_strided_slice %9 {offsets = [0, 0, 0], sizes = [32, 8, 128], strides = [1, 1, 1]} : vector<32x8x384xf32> to vector<32x8x128xf32>
    %11 = vector.extract_strided_slice %9 {offsets = [0, 0, 128], sizes = [32, 8, 128], strides = [1, 1, 1]} : vector<32x8x384xf32> to vector<32x8x128xf32>
    %12 = vector.extract_strided_slice %9 {offsets = [0, 0, 256], sizes = [32, 8, 128], strides = [1, 1, 1]} : vector<32x8x384xf32> to vector<32x8x128xf32>
    %13 = tpu.concatenate %10, %11 in 1 : vector<32x8x128xf32>, vector<32x8x128xf32> -> vector<32x16x128xf32>
    "tpu.trace_start"() <{level = 10 : i32, message = "blk,bke->ble"}> : () -> ()
    %cst_11 = arith.constant dense<0.000000e+00> : vector<32x8x128xf32>
    %14 = tpu.matmul %0, %13, %cst_11 {dimension_numbers = #tpu.dot_dimension_numbers<[2], [1], [1], [2], [0, 0, 0, 1, 1, 2], [0], [0]>} : vector<32x8x16xf32>, vector<32x16x128xf32>, vector<32x8x128xf32> -> vector<32x8x128xf32>
    "tpu.trace_stop"() : () -> ()
    %15 = vector.shape_cast %3 : vector<1x128xf32> to vector<1x1x128xf32>
    %16 = vector.broadcast %15 : vector<1x1x128xf32> to vector<32x8x128xf32>
    %17 = arith.addf %14, %16 : vector<32x8x128xf32>
    %18 = arith.addf %17, %12 : vector<32x8x128xf32>
    %19 = vector.extract_strided_slice %18 {offsets = [0, 0, 0], sizes = [32, 8, 64], strides = [1, 1, 1]} : vector<32x8x128xf32> to vector<32x8x64xf32>
    %20 = arith.negf %19 : vector<32x8x64xf32>
    %21 = math.exp %20 : vector<32x8x64xf32>
    %cst_12 = arith.constant 1.000000e+00 : f32
    %22 = vector.broadcast %cst_12 : f32 to vector<32x8x64xf32>
    %23 = arith.addf %22, %21 : vector<32x8x64xf32>
    %24 = arith.divf %22, %23 : vector<32x8x64xf32>
    %25 = vector.extract_strided_slice %24 {offsets = [0, 0, 0], sizes = [32, 8, 32], strides = [1, 1, 1]} : vector<32x8x64xf32> to vector<32x8x32xf32>
    %26 = vector.extract_strided_slice %24 {offsets = [0, 0, 32], sizes = [32, 8, 32], strides = [1, 1, 1]} : vector<32x8x64xf32> to vector<32x8x32xf32>
    %27 = vector.extract_strided_slice %17 {offsets = [0, 0, 64], sizes = [32, 8, 32], strides = [1, 1, 1]} : vector<32x8x128xf32> to vector<32x8x32xf32>
    %28 = vector.extract_strided_slice %12 {offsets = [0, 0, 64], sizes = [32, 8, 32], strides = [1, 1, 1]} : vector<32x8x128xf32> to vector<32x8x32xf32>
    %29 = arith.mulf %25, %28 : vector<32x8x32xf32>
    %30 = arith.addf %27, %29 : vector<32x8x32xf32>
    %31 = math.tanh %30 : vector<32x8x32xf32>
    %32 = arith.subf %31, %4 : vector<32x8x32xf32>
    %33 = arith.mulf %26, %32 : vector<32x8x32xf32>
    %34 = arith.addf %4, %33 : vector<32x8x32xf32>
    %c0_13 = arith.constant 0 : index
    %c0_14 = arith.constant 0 : index
    %c0_15 = arith.constant 0 : index
    %35 = vector.load %arg6[%c0_13, %c0_14, %c0_15] : memref<32x8x32xf32, #tpu.memory_space<vmem>>, vector<32x8x32xf32>
    tpu.vector_store %arg6[%c0_13, %c0_14, %c0_15], %34 {strides = array<i32>} : memref<32x8x32xf32, #tpu.memory_space<vmem>>, vector<32x8x32xf32>,
    return
  }
  func.func @transform_0(%arg0: i32) -> (i32, i32, i32) {
    %c0_i32 = arith.constant 0 : i32
    %c0_i32_0 = arith.constant 0 : i32
    %c0_i32_1 = arith.constant 0 : i32
    return %arg0, %c0_i32, %c0_i32_0 : i32, i32, i32
  }
  func.func @transform_1(%arg0: i32) -> (i32, i32, i32) {
    %c0_i32 = arith.constant 0 : i32
    %c0_i32_0 = arith.constant 0 : i32
    %c0_i32_1 = arith.constant 0 : i32
    return %arg0, %c0_i32, %c0_i32_0 : i32, i32, i32
  }
  func.func @transform_2(%arg0: i32) -> (i32, i32) {
    %c0_i32 = arith.constant 0 : i32
    %c0_i32_0 = arith.constant 0 : i32
    %c0_i32_1 = arith.constant 0 : i32
    return %c0_i32, %c0_i32_0 : i32, i32
  }
  func.func @transform_3(%arg0: i32) -> (i32, i32) {
    %c0_i32 = arith.constant 0 : i32
    %c0_i32_0 = arith.constant 0 : i32
    %c0_i32_1 = arith.constant 0 : i32
    return %c0_i32, %c0_i32_0 : i32, i32
  }
  func.func @transform_4(%arg0: i32) -> (i32, i32) {
    %c0_i32 = arith.constant 0 : i32
    %c0_i32_0 = arith.constant 0 : i32
    %c0_i32_1 = arith.constant 0 : i32
    return %c0_i32, %c0_i32_0 : i32, i32
  }
  func.func @transform_5(%arg0: i32) -> (i32, i32, i32) {
    %c0_i32 = arith.constant 0 : i32
    %c0_i32_0 = arith.constant 0 : i32
    %c0_i32_1 = arith.constant 0 : i32
    return %arg0, %c0_i32, %c0_i32_0 : i32, i32, i32
  }
}

</mosaic_0001>

<llo_original>
// kernel: tpu_custom_call.1
$region0: #{tpu_custom_call.1}
  #allocation0 [shape = 'u32[]', space=smem, size = 0x4, offset = 0x4, fixed_abs, tag = 'smem constant byte address 0x4 - core index']
  #allocation1 [shape = 'u32[144,128]{1,0:T(1,128)}', space=vmem, size = 0x12000, scoped, tag = 'internal scratch']
  %s0 = inlined_call_operand.vmem [shape: f32[64,8,16], index: 0, kind: input, shape index: {}]
  %s1 = inlined_call_operand.vmem [shape: f32[64,8,32], index: 1, kind: input, shape index: {}]
  %s2 = inlined_call_operand.vmem [shape: f32[32,384], index: 2, kind: input, shape index: {}]
  %s3 = inlined_call_operand.vmem [shape: f32[1,384], index: 3, kind: input, shape index: {}]
  %s4 = inlined_call_operand.vmem [shape: f32[1,128], index: 4, kind: input, shape index: {}]
  %s5 = inlined_call_operand.vmem [shape: f32[64,8,32], index: 5, kind: output, shape index: {}]
  %s6 = sld [smem:[#allocation0]]
  $region53: #{tpu_custom_call.1} parent=0
    _
  %s8 = ssub.s32 1, %s6
  %s9 = scalar_select 0, %s8, %s6
  loop: start=0, step=1, limit=4
  $region2: #{tpu_custom_call.1} parent=0 // loop_pre_header
    _
  $region3: #{tpu_custom_call.1} parent=0 // loop_header
    %s11 = sphi 0, %s15
    %p12 = scmp.ge.s32.totalorder %s11, 4
    %s21 = sphi 0, %s23
    %s24 = sphi 0, %s21
    %s25 = sphi 0, %s24
    %s41 = sphi 0, %s25
    %s47 = sphi 0, %s49
    %s50 = sphi 0, %s47
    %s51 = sphi 0, %s50
    %s67 = sphi 0, %s51
    %s71 = sphi 0, %s71
    %s73 = sphi 0, %s71
    %s74 = sphi 0, %s73
    %s88 = sphi 0, %s74
    %s92 = sphi 0, %s92
    %s94 = sphi 0, %s92
    %s95 = sphi 0, %s94
    %s109 = sphi 0, %s95
    %s113 = sphi 0, %s113
    %s115 = sphi 0, %s113
    %s116 = sphi 0, %s115
    %s130 = sphi 0, %s116
    %s136 = sphi 0, %s138
    %s139 = sphi 0, %s136
    %s140 = sphi 0, %s139
    %s156 = sphi 0, %s140
  $region4: #{tpu_custom_call.1} parent=0 // loop_header_branch
    %14 = sbr.rel (%p12) target = $region8
  $region5: #{tpu_custom_call.1} parent=0 // loop_body
    %s16 = ssub.s32 %s11, 1
    %s17 = ssub.s32 %s11, 2
    %s18 = sadd.s32 %s11, 1
    %s19 = ssub.s32 %s11, %s18
    %p20 = scmp.eq.s32.totalorder %s19, 0
    %s22 = sadd.s32 %s21, 1
    %s23 = scalar_select %p20, %s21, %s22
    %p26 = pneg %p20
    %p27 = scmp.eq.s32.totalorder %s11, 1
    %p28 = por %p26, %p27
    %p29 = scmp.ne.s32.totalorder %s21, %s24
    %p30 = scmp.eq.s32.totalorder %s11, 0
    %p31 = por %p29, %p30
    %p32 = scmp.ne.s32.totalorder %s21, %s24
    %p33 = scmp.eq.s32.totalorder %s16, 1
    %p34 = por %p32, %p33
    %p35 = scmp.ne.s32.totalorder %s24, %s25
    %p36 = scmp.eq.s32.totalorder %s16, 0
    %p37 = por %p35, %p36
    %p38 = scmp.ne.s32.totalorder %s24, %s25
    %p39 = scmp.eq.s32.totalorder %s17, 1
    %p40 = por %p38, %p39
    %p42 = scmp.ne.s32.totalorder %s25, %s41
    %p43 = scmp.eq.s32.totalorder %s17, 0
    %p44 = por %p42, %p43
    %s45 = ssub.s32 %s11, %s18
    %p46 = scmp.eq.s32.totalorder %s45, 0
    %s48 = sadd.s32 %s47, 1
    %s49 = scalar_select %p46, %s47, %s48
    %p52 = pneg %p46
    %p53 = scmp.eq.s32.totalorder %s11, 1
    %p54 = por %p52, %p53
    %p55 = scmp.ne.s32.totalorder %s47, %s50
    %p56 = scmp.eq.s32.totalorder %s11, 0
    %p57 = por %p55, %p56
    %p58 = scmp.ne.s32.totalorder %s47, %s50
    %p59 = scmp.eq.s32.totalorder %s16, 1
    %p60 = por %p58, %p59
    %p61 = scmp.ne.s32.totalorder %s50, %s51
    %p62 = scmp.eq.s32.totalorder %s16, 0
    %p63 = por %p61, %p62
    %p64 = scmp.ne.s32.totalorder %s50, %s51
    %p65 = scmp.eq.s32.totalorder %s17, 1
    %p66 = por %p64, %p65
    %p68 = scmp.ne.s32.totalorder %s51, %s67
    %p69 = scmp.eq.s32.totalorder %s17, 0
    %p70 = por %p68, %p69
    %s72 = sadd.s32 %s71, 1
    %p75 = scmp.eq.s32.totalorder %s11, 1
    %p76 = scmp.ne.s32.totalorder %s71, %s73
    %p77 = scmp.eq.s32.totalorder %s11, 0
    %p78 = por %p76, %p77
    %p79 = scmp.ne.s32.totalorder %s71, %s73
    %p80 = scmp.eq.s32.totalorder %s16, 1
    %p81 = por %p79, %p80
    %p82 = scmp.ne.s32.totalorder %s73, %s74
    %p83 = scmp.eq.s32.totalorder %s16, 0
    %p84 = por %p82, %p83
    %p85 = scmp.ne.s32.totalorder %s73, %s74
    %p86 = scmp.eq.s32.totalorder %s17, 1
    %p87 = por %p85, %p86
    %p89 = scmp.ne.s32.totalorder %s74, %s88
    %p90 = scmp.eq.s32.totalorder %s17, 0
    %p91 = por %p89, %p90
    %s93 = sadd.s32 %s92, 1
    %p96 = scmp.eq.s32.totalorder %s11, 1
    %p97 = scmp.ne.s32.totalorder %s92, %s94
    %p98 = scmp.eq.s32.totalorder %s11, 0
    %p99 = por %p97, %p98
    %p100 = scmp.ne.s32.totalorder %s92, %s94
    %p101 = scmp.eq.s32.totalorder %s16, 1
    %p102 = por %p100, %p101
    %p103 = scmp.ne.s32.totalorder %s94, %s95
    %p104 = scmp.eq.s32.totalorder %s16, 0
    %p105 = por %p103, %p104
    %p106 = scmp.ne.s32.totalorder %s94, %s95
    %p107 = scmp.eq.s32.totalorder %s17, 1
    %p108 = por %p106, %p107
    %p110 = scmp.ne.s32.totalorder %s95, %s109
    %p111 = scmp.eq.s32.totalorder %s17, 0
    %p112 = por %p110, %p111
    %s114 = sadd.s32 %s113, 1
    %p117 = scmp.eq.s32.totalorder %s11, 1
    %p118 = scmp.ne.s32.totalorder %s113, %s115
    %p119 = scmp.eq.s32.totalorder %s11, 0
    %p120 = por %p118, %p119
    %p121 = scmp.ne.s32.totalorder %s113, %s115
    %p122 = scmp.eq.s32.totalorder %s16, 1
    %p123 = por %p121, %p122
    %p124 = scmp.ne.s32.totalorder %s115, %s116
    %p125 = scmp.eq.s32.totalorder %s16, 0
    %p126 = por %p124, %p125
    %p127 = scmp.ne.s32.totalorder %s115, %s116
    %p128 = scmp.eq.s32.totalorder %s17, 1
    %p129 = por %p127, %p128
    %p131 = scmp.ne.s32.totalorder %s116, %s130
    %p132 = scmp.eq.s32.totalorder %s17, 0
    %p133 = por %p131, %p132
    %s134 = ssub.s32 %s11, %s18
    %p135 = scmp.eq.s32.totalorder %s134, 0
    %s137 = sadd.s32 %s136, 1
    %s138 = scalar_select %p135, %s136, %s137
    %p141 = pneg %p135
    %p142 = scmp.eq.s32.totalorder %s11, 1
    %p143 = por %p141, %p142
    %p144 = scmp.ne.s32.totalorder %s136, %s139
    %p145 = scmp.eq.s32.totalorder %s11, 0
    %p146 = por %p144, %p145
    %p147 = scmp.ne.s32.totalorder %s136, %s139
    %p148 = scmp.eq.s32.totalorder %s16, 1
    %p149 = por %p147, %p148
    %p150 = scmp.ne.s32.totalorder %s139, %s140
    %p151 = scmp.eq.s32.totalorder %s16, 0
    %p152 = por %p150, %p151
    %p153 = scmp.ne.s32.totalorder %s139, %s140
    %p154 = scmp.eq.s32.totalorder %s17, 1
    %p155 = por %p153, %p154
    %p157 = scmp.ne.s32.totalorder %s140, %s156
    %p158 = scmp.eq.s32.totalorder %s17, 0
    %p159 = por %p157, %p158
    %p160 = scmp.le.s32.totalorder 1, %s11
    %p161 = scmp.lt.s32.totalorder %s11, 3
    %p162 = pnand %p160, %p161
    %p163 = pneg %p162
    // Predicated region
    $region9: #{tpu_custom_call.1} parent=5 // pred_check
      _
    $region10: #{tpu_custom_call.1} parent=5 // pred_check_branch
      %165 = sbr.rel (%p162) target = $region12
    $region11: #{tpu_custom_call.1} parent=5 // pred_region
      %s166 = ssub.s32 %s11, 1
      // Predicated region
      $region13: #{tpu_custom_call.1} parent=11 // pred_check
        %p167 = pneg %p84
      $region14: #{tpu_custom_call.1} parent=11 // pred_check_branch
        %169 = sbr.rel (%p167) target = $region16
      $region15: #{tpu_custom_call.1} parent=11 // pred_region
        _
      $region16: #{tpu_custom_call.1} parent=11 // pred_fallthru
        _
      // Predicated region
      $region17: #{tpu_custom_call.1} parent=11 // pred_check
        %p170 = pneg %p105
      $region18: #{tpu_custom_call.1} parent=11 // pred_check_branch
        %172 = sbr.rel (%p170) target = $region20
      $region19: #{tpu_custom_call.1} parent=11 // pred_region
        _
      $region20: #{tpu_custom_call.1} parent=11 // pred_fallthru
        _
      // Predicated region
      $region21: #{tpu_custom_call.1} parent=11 // pred_check
        %p173 = pneg %p126
      $region22: #{tpu_custom_call.1} parent=11 // pred_check_branch
        %175 = sbr.rel (%p173) target = $region24
      $region23: #{tpu_custom_call.1} parent=11 // pred_region
        _
      $region24: #{tpu_custom_call.1} parent=11 // pred_fallthru
        _
    $region12: #{tpu_custom_call.1} parent=5 // pred_fallthru
      _
    %p176 = scmp.lt.s32.totalorder %s11, 2
    // Predicated region
    $region25: #{tpu_custom_call.1} parent=5 // pred_check
      %p177 = pneg %p176
    $region26: #{tpu_custom_call.1} parent=5 // pred_check_branch
      %179 = sbr.rel (%p177) target = $region28
    $region27: #{tpu_custom_call.1} parent=5 // pred_region
      // Predicated region
      $region29: #{tpu_custom_call.1} parent=27 // pred_check
        %p180 = pneg %p31
      $region30: #{tpu_custom_call.1} parent=27 // pred_check_branch
        %182 = sbr.rel (%p180) target = $region32
      $region31: #{tpu_custom_call.1} parent=27 // pred_region
        %s183 = smul.u32 32, %s11
        %p184 = scmp.lt.s32.totalorder %s183, 63
        %s185 = scalar_select %p184, %s183, 63
        %s186 = smul.addr %s185, 8
        %s187 = scalar_lea.vmem %s0, %s186
        %s188 = smul.u32 32, %s11
      $region32: #{tpu_custom_call.1} parent=27 // pred_fallthru
        _
      // Predicated region
      $region33: #{tpu_custom_call.1} parent=27 // pred_check
        %p189 = pneg %p57
      $region34: #{tpu_custom_call.1} parent=27 // pred_check_branch
        %191 = sbr.rel (%p189) target = $region36
      $region35: #{tpu_custom_call.1} parent=27 // pred_region
        %s192 = smul.u32 32, %s11
        %p193 = scmp.lt.s32.totalorder %s192, 63
        %s194 = scalar_select %p193, %s192, 63
        %s195 = smul.addr %s194, 8
        %s196 = scalar_lea.vmem %s1, %s195
        %s197 = smul.u32 32, %s11
      $region36: #{tpu_custom_call.1} parent=27 // pred_fallthru
        _
    $region28: #{tpu_custom_call.1} parent=5 // pred_fallthru
      _
    %p198 = scmp.le.s32.totalorder 1, %s11
    %p199 = scmp.lt.s32.totalorder %s11, 3
    %p200 = pnand %p198, %p199
    %p201 = pneg %p200
    // Predicated region
    $region37: #{tpu_custom_call.1} parent=5 // pred_check
      _
    $region38: #{tpu_custom_call.1} parent=5 // pred_check_branch
      %203 = sbr.rel (%p200) target = $region40
    $region39: #{tpu_custom_call.1} parent=5 // pred_region
      %s204 = ssub.s32 %s11, 1
      %s205 = smul.u32 32, %s16
      %p206 = scmp.lt.s32.totalorder %s205, 63
      %s207 = scalar_select %p206, %s205, 63
      %s208 = smul.addr %s207, 8
      %s209 = scalar_lea.vmem %s0, %s208
      %p210 = pneg %p37
      %p211 = pneg %p34
      %s212 = smul.u32 32, %s16
      %p213 = scmp.lt.s32.totalorder %s212, 63
      %s214 = scalar_select %p213, %s212, 63
      %s215 = smul.addr %s214, 8
      %s216 = scalar_lea.vmem %s1, %s215
      %p217 = pneg %p63
      %p218 = pneg %p60
      %p219 = pneg %p84
      %p220 = pneg %p81
      %p221 = pneg %p105
      %p222 = pneg %p102
      %p223 = pneg %p126
      %p224 = pneg %p123
      %p225 = pneg %p152
      %p226 = pneg %p149
      %s227 = smul.u32 32, %s16
      %p228 = scmp.lt.s32.totalorder %s227, 63
      %s229 = scalar_select %p228, %s227, 63
      %s230 = smul.addr %s229, 8
      %s231 = scalar_lea.vmem %s5, %s230
      %s232 = smul.u32 32, %s16
      %p233 = scmp.lt.s32.totalorder %s232, 63
      %s234 = scalar_select %p233, %s232, 63
      %s235 = smul.addr %s234, 8
      %s236 = scalar_lea.vmem %s0, %s235
      %s237 = smul.u32 32, %s16
      %s238 = smul.u32 32, %s16
      %p239 = scmp.lt.s32.totalorder %s238, 63
      %s240 = scalar_select %p239, %s238, 63
      %s241 = smul.addr %s240, 8
      %s242 = scalar_lea.vmem %s1, %s241
      %s243 = smul.u32 32, %s16
      %s244 = smul.u32 32, %s16
      %p245 = scmp.lt.s32.totalorder %s244, 63
      %s246 = scalar_select %p245, %s244, 63
      %s247 = smul.addr %s246, 8
      %s248 = scalar_lea.vmem %s5, %s247
      %s249 = smul.u32 32, %s16
      %v250 = vld [vmem:[%s236] sm:$0xff]
      %v251 = vld [vmem:[%s236 + $0x8] sm:$0xff]
      %v252 = vld [vmem:[%s236 + $0x10] sm:$0xff]
      %v253 = vld [vmem:[%s236 + $0x18] sm:$0xff]
      %v254 = vld [vmem:[%s236 + $0x20] sm:$0xff]
      %v255 = vld [vmem:[%s236 + $0x28] sm:$0xff]
      %v256 = vld [vmem:[%s236 + $0x30] sm:$0xff]
      %v257 = vld [vmem:[%s236 + $0x38] sm:$0xff]
      %v258 = vld [vmem:[%s236 + $0x40] sm:$0xff]
      %v259 = vld [vmem:[%s236 + $0x48] sm:$0xff]
      %v260 = vld [vmem:[%s236 + $0x50] sm:$0xff]
      %v261 = vld [vmem:[%s236 + $0x58] sm:$0xff]
      %v262 = vld [vmem:[%s236 + $0x60] sm:$0xff]
      %v263 = vld [vmem:[%s236 + $0x68] sm:$0xff]
      %v264 = vld [vmem:[%s236 + $0x70] sm:$0xff]
      %v265 = vld [vmem:[%s236 + $0x78] sm:$0xff]
      %v266 = vld [vmem:[%s236 + $0x80] sm:$0xff]
      %v267 = vld [vmem:[%s236 + $0x88] sm:$0xff]
      %v268 = vld [vmem:[%s236 + $0x90] sm:$0xff]
      %v269 = vld [vmem:[%s236 + $0x98] sm:$0xff]
      %v270 = vld [vmem:[%s236 + $0xa0] sm:$0xff]
      %v271 = vld [vmem:[%s236 + $0xa8] sm:$0xff]
      %v272 = vld [vmem:[%s236 + $0xb0] sm:$0xff]
      %v273 = vld [vmem:[%s236 + $0xb8] sm:$0xff]
      %v274 = vld [vmem:[%s236 + $0xc0] sm:$0xff]
      %v275 = vld [vmem:[%s236 + $0xc8] sm:$0xff]
      %v276 = vld [vmem:[%s236 + $0xd0] sm:$0xff]
      %v277 = vld [vmem:[%s236 + $0xd8] sm:$0xff]
      %v278 = vld [vmem:[%s236 + $0xe0] sm:$0xff]
      %v279 = vld [vmem:[%s236 + $0xe8] sm:$0xff]
      %v280 = vld [vmem:[%s236 + $0xf0] sm:$0xff]
      %v281 = vld [vmem:[%s236 + $0xf8] sm:$0xff]
      %v282 = vld [vmem:[%s2] sm:$0xff]
      %v283 = vld [vmem:[%s2 + $0x8] sm:$0xff]
      %v284 = vld [vmem:[%s2 + $0x10] sm:$0xff]
      %v285 = vld [vmem:[%s2 + $0x18] sm:$0xff]
      %v286 = vld [vmem:[%s2 + $0x20] sm:$0xff]
      %v287 = vld [vmem:[%s2 + $0x28] sm:$0xff]
      %v288 = vld [vmem:[%s2 + $0x30] sm:$0xff]
      %v289 = vld [vmem:[%s2 + $0x38] sm:$0xff]
      %v290 = vld [vmem:[%s2 + $0x40] sm:$0xff]
      %v291 = vld [vmem:[%s2 + $0x48] sm:$0xff]
      %v292 = vld [vmem:[%s2 + $0x50] sm:$0xff]
      %v293 = vld [vmem:[%s2 + $0x58] sm:$0xff]
      %v294 = vld [vmem:[%s3] sm:$0x7]
      %v295 = vld [vmem:[%s4] sm:$0x1]
      %v296 = vld [vmem:[%s242] sm:$0xff]
      %v297 = vld [vmem:[%s242 + $0x8] sm:$0xff]
      %v298 = vld [vmem:[%s242 + $0x10] sm:$0xff]
      %v299 = vld [vmem:[%s242 + $0x18] sm:$0xff]
      %v300 = vld [vmem:[%s242 + $0x20] sm:$0xff]
      %v301 = vld [vmem:[%s242 + $0x28] sm:$0xff]
      %v302 = vld [vmem:[%s242 + $0x30] sm:$0xff]
      %v303 = vld [vmem:[%s242 + $0x38] sm:$0xff]
      %v304 = vld [vmem:[%s242 + $0x40] sm:$0xff]
      %v305 = vld [vmem:[%s242 + $0x48] sm:$0xff]
      %v306 = vld [vmem:[%s242 + $0x50] sm:$0xff]
      %v307 = vld [vmem:[%s242 + $0x58] sm:$0xff]
      %v308 = vld [vmem:[%s242 + $0x60] sm:$0xff]
      %v309 = vld [vmem:[%s242 + $0x68] sm:$0xff]
      %v310 = vld [vmem:[%s242 + $0x70] sm:$0xff]
      %v311 = vld [vmem:[%s242 + $0x78] sm:$0xff]
      %v312 = vld [vmem:[%s242 + $0x80] sm:$0xff]
      %v313 = vld [vmem:[%s242 + $0x88] sm:$0xff]
      %v314 = vld [vmem:[%s242 + $0x90] sm:$0xff]
      %v315 = vld [vmem:[%s242 + $0x98] sm:$0xff]
      %v316 = vld [vmem:[%s242 + $0xa0] sm:$0xff]
      %v317 = vld [vmem:[%s242 + $0xa8] sm:$0xff]
      %v318 = vld [vmem:[%s242 + $0xb0] sm:$0xff]
      %v319 = vld [vmem:[%s242 + $0xb8] sm:$0xff]
      %v320 = vld [vmem:[%s242 + $0xc0] sm:$0xff]
      %v321 = vld [vmem:[%s242 + $0xc8] sm:$0xff]
      %v322 = vld [vmem:[%s242 + $0xd0] sm:$0xff]
      %v323 = vld [vmem:[%s242 + $0xd8] sm:$0xff]
      %v324 = vld [vmem:[%s242 + $0xe0] sm:$0xff]
      %v325 = vld [vmem:[%s242 + $0xe8] sm:$0xff]
      %v326 = vld [vmem:[%s242 + $0xf0] sm:$0xff]
      %v327 = vld [vmem:[%s242 + $0xf8] sm:$0xff]
      %v329 = vlaneseq
      %v330 = vshrl.u32 %v329, 7
      %v331 = vsub.s32 0, %v330
      %v332 = vrot.slane %v294, %v331
      %v333 = vlaneseq
      %v334 = vshrl.u32 %v333, 7
      %v335 = vsub.s32 1, %v334
      %v336 = vrot.slane %v294, %v335
      %v337 = vlaneseq
      %v338 = vshrl.u32 %v337, 7
      %v339 = vsub.s32 2, %v338
      %v340 = vrot.slane %v294, %v339
      %vm344 = vcmask 261120
      %v346 = vsel %vm344, %v296, 0
      %v349 = vsel %vm344, %v297, 0
      %v352 = vsel %vm344, %v298, 0
      %v355 = vsel %vm344, %v299, 0
      %v358 = vsel %vm344, %v300, 0
      %v361 = vsel %vm344, %v301, 0
      %v364 = vsel %vm344, %v302, 0
      %v367 = vsel %vm344, %v303, 0
      %v370 = vsel %vm344, %v304, 0
      %v373 = vsel %vm344, %v305, 0
      %v376 = vsel %vm344, %v306, 0
      %v379 = vsel %vm344, %v307, 0
      %v382 = vsel %vm344, %v308, 0
      %v385 = vsel %vm344, %v309, 0
      %v388 = vsel %vm344, %v310, 0
      %v391 = vsel %vm344, %v311, 0
      %v394 = vsel %vm344, %v312, 0
      %v397 = vsel %vm344, %v313, 0
      %v400 = vsel %vm344, %v314, 0
      %v403 = vsel %vm344, %v315, 0
      %v406 = vsel %vm344, %v316, 0
      %v409 = vsel %vm344, %v317, 0
      %v412 = vsel %vm344, %v318, 0
      %v415 = vsel %vm344, %v319, 0
      %v418 = vsel %vm344, %v320, 0
      %v421 = vsel %vm344, %v321, 0
      %v424 = vsel %vm344, %v322, 0
      %v427 = vsel %vm344, %v323, 0
      %v430 = vsel %vm344, %v324, 0
      %v433 = vsel %vm344, %v325, 0
      %v436 = vsel %vm344, %v326, 0
      %v439 = vsel %vm344, %v327, 0
      %441 = vmatprep.subr.mxu0 %v283
      %442 = vmatpush1.msra.mxu0 %v282
      %443 = vmatprep.subr.mxu0 %v286
      %444 = vmatpush1.msra.mxu0 %v285
      %445 = vmatprep.subr.mxu0 %v289
      %446 = vmatpush1.msra.mxu0 %v288
      %447 = vmatprep.subr.mxu0 %v292
      %448 = vmatpush1.msra.mxu0 %v291
      %449 = vmatprep.subr.mxu0 0.0
      %450 = vmatpush1.msra.mxu0 0.0
      %451 = vmatprep.subr.mxu0 0.0
      %452 = vmatpush1.msra.mxu0 0.0
      %453 = vmatprep.subr.mxu0 0.0
      %454 = vmatpush1.msra.mxu0 0.0
      %455 = vmatprep.subr.mxu0 0.0
      %456 = vmatpush1.msra.mxu0 0.0
      %457 = vmatprep.subr.mxu0 0.0
      %458 = vmatpush1.msra.mxu0 0.0
      %459 = vmatprep.subr.mxu0 0.0
      %460 = vmatpush1.msra.mxu0 0.0
      %461 = vmatprep.subr.mxu0 0.0
      %462 = vmatpush1.msra.mxu0 0.0
      %463 = vmatprep.subr.mxu0 0.0
      %464 = vmatpush1.msra.mxu0 0.0
      %465 = vmatprep.subr.mxu0 0.0
      %466 = vmatpush1.msra.mxu0 0.0
      %467 = vmatprep.subr.mxu0 0.0
      %468 = vmatpush1.msra.mxu0 0.0
      %469 = vmatprep.subr.mxu0 0.0
      %470 = vmatpush1.msra.mxu0 0.0
      %471 = vmatprep.subr.mxu0 0.0
      %472 = vmatpush1.msra.mxu0 0.0
      %473 = vmatprep.subr.mxu0 0.0
      %474 = vmatpush1.msra.mxu0 0.0
      %475 = vmatprep.subr.mxu0 0.0
      %476 = vmatpush1.msra.mxu0 0.0
      %477 = vmatprep.subr.mxu0 0.0
      %478 = vmatpush1.msra.mxu0 0.0
      %479 = vmatprep.subr.mxu0 0.0
      %480 = vmatpush1.msra.mxu0 0.0
      %481 = vmatprep.subr.mxu0 0.0
      %482 = vmatpush1.msra.mxu0 0.0
      %483 = vmatprep.subr.mxu0 0.0
      %484 = vmatpush1.msra.mxu0 0.0
      %485 = vmatprep.subr.mxu0 0.0
      %486 = vmatpush1.msra.mxu0 0.0
      %487 = vmatprep.subr.mxu0 0.0
      %488 = vmatpush1.msra.mxu0 0.0
      %489 = vmatprep.subr.mxu0 0.0
      %490 = vmatpush1.msra.mxu0 0.0
      %491 = vmatprep.subr.mxu0 0.0
      %492 = vmatpush1.msra.mxu0 0.0
      %493 = vmatprep.subr.mxu0 0.0
      %494 = vmatpush1.msra.mxu0 0.0
      %495 = vmatprep.subr.mxu0 0.0
      %496 = vmatpush1.msra.mxu0 0.0
      %497 = vmatprep.subr.mxu0 0.0
      %498 = vmatpush1.msra.mxu0 0.0
      %499 = vmatprep.subr.mxu0 0.0
      %500 = vmatpush1.msra.mxu0 0.0
      %501 = vmatprep.subr.mxu0 0.0
      %502 = vmatpush1.msra.mxu0 0.0
      %503 = vmatprep.subr.mxu0 0.0
      %504 = vmatpush1.msra.mxu0 0.0
      %505 = vmatprep.mubr.f32.mxu0 0.0
      %506 = vmatmul.mubr.f32.gmra.mrb[0].mxu0 %v346
      %v507 = vpop.f32.mrb[0].mxu0
      %v508 = vadd.f32 %v332, %v507
      %v509 = vpop.f32.mrb[0].mxu0
      %v510 = vadd.f32 %v336, %v509
      %511 = vmatprep.mubr.f32.mxu0 0.0
      %512 = vmatmul.mubr.f32.gmra.mrb[0].mxu0 %v349
      %v513 = vpop.f32.mrb[0].mxu0
      %v514 = vadd.f32 %v332, %v513
      %v515 = vpop.f32.mrb[0].mxu0
      %v516 = vadd.f32 %v336, %v515
      %517 = vmatprep.mubr.f32.mxu0 0.0
      %518 = vmatmul.mubr.f32.gmra.mrb[0].mxu0 %v352
      %v519 = vpop.f32.mrb[0].mxu0
      %v520 = vadd.f32 %v332, %v519
      %v521 = vpop.f32.mrb[0].mxu0
      %v522 = vadd.f32 %v336, %v521
      %523 = vmatprep.mubr.f32.mxu0 0.0
      %524 = vmatmul.mubr.f32.gmra.mrb[0].mxu0 %v355
      %v525 = vpop.f32.mrb[0].mxu0
      %v526 = vadd.f32 %v332, %v525
      %v527 = vpop.f32.mrb[0].mxu0
      %v528 = vadd.f32 %v336, %v527
      %529 = vmatprep.mubr.f32.mxu0 0.0
      %530 = vmatmul.mubr.f32.gmra.mrb[0].mxu0 %v358
      %v531 = vpop.f32.mrb[0].mxu0
      %v532 = vadd.f32 %v332, %v531
      %v533 = vpop.f32.mrb[0].mxu0
      %v534 = vadd.f32 %v336, %v533
      %535 = vmatprep.mubr.f32.mxu0 0.0
      %536 = vmatmul.mubr.f32.gmra.mrb[0].mxu0 %v361
      %v537 = vpop.f32.mrb[0].mxu0
      %v538 = vadd.f32 %v332, %v537
      %v539 = vpop.f32.mrb[0].mxu0
      %v540 = vadd.f32 %v336, %v539
      %541 = vmatprep.mubr.f32.mxu0 0.0
      %542 = vmatmul.mubr.f32.gmra.mrb[0].mxu0 %v364
      %v543 = vpop.f32.mrb[0].mxu0
      %v544 = vadd.f32 %v332, %v543
      %v545 = vpop.f32.mrb[0].mxu0
      %v546 = vadd.f32 %v336, %v545
      %547 = vmatprep.mubr.f32.mxu0 0.0
      %548 = vmatmul.mubr.f32.gmra.mrb[0].mxu0 %v367
      %v549 = vpop.f32.mrb[0].mxu0
      %v550 = vadd.f32 %v332, %v549
      %v551 = vpop.f32.mrb[0].mxu0
      %v552 = vadd.f32 %v336, %v551
      %553 = vmatprep.mubr.f32.mxu0 0.0
      %554 = vmatmul.mubr.f32.gmra.mrb[0].mxu0 %v370
      %v555 = vpop.f32.mrb[0].mxu0
      %v556 = vadd.f32 %v332, %v555
      %v557 = vpop.f32.mrb[0].mxu0
      %v558 = vadd.f32 %v336, %v557
      %559 = vmatprep.mubr.f32.mxu0 0.0
      %560 = vmatmul.mubr.f32.gmra.mrb[0].mxu0 %v373
      %v561 = vpop.f32.mrb[0].mxu0
      %v562 = vadd.f32 %v332, %v561
      %v563 = vpop.f32.mrb[0].mxu0
      %v564 = vadd.f32 %v336, %v563
      %565 = vmatprep.mubr.f32.mxu0 0.0
      %566 = vmatmul.mubr.f32.gmra.mrb[0].mxu0 %v376
      %v567 = vpop.f32.mrb[0].mxu0
      %v568 = vadd.f32 %v332, %v567
      %v569 = vpop.f32.mrb[0].mxu0
      %v570 = vadd.f32 %v336, %v569
      %571 = vmatprep.mubr.f32.mxu0 0.0
      %572 = vmatmul.mubr.f32.gmra.mrb[0].mxu0 %v379
      %v573 = vpop.f32.mrb[0].mxu0
      %v574 = vadd.f32 %v332, %v573
      %v575 = vpop.f32.mrb[0].mxu0
      %v576 = vadd.f32 %v336, %v575
      %577 = vmatprep.mubr.f32.mxu0 0.0
      %578 = vmatmul.mubr.f32.gmra.mrb[0].mxu0 %v382
      %v579 = vpop.f32.mrb[0].mxu0
      %v580 = vadd.f32 %v332, %v579
      %v581 = vpop.f32.mrb[0].mxu0
      %v582 = vadd.f32 %v336, %v581
      %583 = vmatprep.mubr.f32.mxu0 0.0
      %584 = vmatmul.mubr.f32.gmra.mrb[0].mxu0 %v385
      %v585 = vpop.f32.mrb[0].mxu0
      %v586 = vadd.f32 %v332, %v585
      %v587 = vpop.f32.mrb[0].mxu0
      %v588 = vadd.f32 %v336, %v587
      %589 = vmatprep.mubr.f32.mxu0 0.0
      %590 = vmatmul.mubr.f32.gmra.mrb[0].mxu0 %v388
      %v591 = vpop.f32.mrb[0].mxu0
      %v592 = vadd.f32 %v332, %v591
      %v593 = vpop.f32.mrb[0].mxu0
      %v594 = vadd.f32 %v336, %v593
      %595 = vmatprep.mubr.f32.mxu0 0.0
      %596 = vmatmul.mubr.f32.gmra.mrb[0].mxu0 %v391
      %v597 = vpop.f32.mrb[0].mxu0
      %v598 = vadd.f32 %v332, %v597
      %v599 = vpop.f32.mrb[0].mxu0
      %v600 = vadd.f32 %v336, %v599
      %601 = vmatprep.mubr.f32.mxu0 0.0
      %602 = vmatmul.mubr.f32.gmra.mrb[0].mxu0 %v394
      %v603 = vpop.f32.mrb[0].mxu0
      %v604 = vadd.f32 %v332, %v603
      %v605 = vpop.f32.mrb[0].mxu0
      %v606 = vadd.f32 %v336, %v605
      %607 = vmatprep.mubr.f32.mxu0 0.0
      %608 = vmatmul.mubr.f32.gmra.mrb[0].mxu0 %v397
      %v609 = vpop.f32.mrb[0].mxu0
      %v610 = vadd.f32 %v332, %v609
      %v611 = vpop.f32.mrb[0].mxu0
      %v612 = vadd.f32 %v336, %v611
      %613 = vmatprep.mubr.f32.mxu0 0.0
      %614 = vmatmul.mubr.f32.gmra.mrb[0].mxu0 %v400
      %v615 = vpop.f32.mrb[0].mxu0
      %v616 = vadd.f32 %v332, %v615
      %v617 = vpop.f32.mrb[0].mxu0
      %v618 = vadd.f32 %v336, %v617
      %619 = vmatprep.mubr.f32.mxu0 0.0
      %620 = vmatmul.mubr.f32.gmra.mrb[0].mxu0 %v403
      %v621 = vpop.f32.mrb[0].mxu0
      %v622 = vadd.f32 %v332, %v621
      %v623 = vpop.f32.mrb[0].mxu0
      %v624 = vadd.f32 %v336, %v623
      %625 = vmatprep.mubr.f32.mxu0 0.0
      %626 = vmatmul.mubr.f32.gmra.mrb[0].mxu0 %v406
      %v627 = vpop.f32.mrb[0].mxu0
      %v628 = vadd.f32 %v332, %v627
      %v629 = vpop.f32.mrb[0].mxu0
      %v630 = vadd.f32 %v336, %v629
      %631 = vmatprep.mubr.f32.mxu0 0.0
      %632 = vmatmul.mubr.f32.gmra.mrb[0].mxu0 %v409
      %v633 = vpop.f32.mrb[0].mxu0
      %v634 = vadd.f32 %v332, %v633
      %v635 = vpop.f32.mrb[0].mxu0
      %v636 = vadd.f32 %v336, %v635
      %637 = vmatprep.mubr.f32.mxu0 0.0
      %638 = vmatmul.mubr.f32.gmra.mrb[0].mxu0 %v412
      %v639 = vpop.f32.mrb[0].mxu0
      %v640 = vadd.f32 %v332, %v639
      %v641 = vpop.f32.mrb[0].mxu0
      %v642 = vadd.f32 %v336, %v641
      %643 = vmatprep.mubr.f32.mxu0 0.0
      %644 = vmatmul.mubr.f32.gmra.mrb[0].mxu0 %v415
      %v645 = vpop.f32.mrb[0].mxu0
      %v646 = vadd.f32 %v332, %v645
      %v647 = vpop.f32.mrb[0].mxu0
      %v648 = vadd.f32 %v336, %v647
      %649 = vmatprep.mubr.f32.mxu0 0.0
      %650 = vmatmul.mubr.f32.gmra.mrb[0].mxu0 %v418
      %v651 = vpop.f32.mrb[0].mxu0
      %v652 = vadd.f32 %v332, %v651
      %v653 = vpop.f32.mrb[0].mxu0
      %v654 = vadd.f32 %v336, %v653
      %655 = vmatprep.mubr.f32.mxu0 0.0
      %656 = vmatmul.mubr.f32.gmra.mrb[0].mxu0 %v421
      %v657 = vpop.f32.mrb[0].mxu0
      %v658 = vadd.f32 %v332, %v657
      %v659 = vpop.f32.mrb[0].mxu0
      %v660 = vadd.f32 %v336, %v659
      %661 = vmatprep.mubr.f32.mxu0 0.0
      %662 = vmatmul.mubr.f32.gmra.mrb[0].mxu0 %v424
      %v663 = vpop.f32.mrb[0].mxu0
      %v664 = vadd.f32 %v332, %v663
      %v665 = vpop.f32.mrb[0].mxu0
      %v666 = vadd.f32 %v336, %v665
      %667 = vmatprep.mubr.f32.mxu0 0.0
      %668 = vmatmul.mubr.f32.gmra.mrb[0].mxu0 %v427
      %v669 = vpop.f32.mrb[0].mxu0
      %v670 = vadd.f32 %v332, %v669
      %v671 = vpop.f32.mrb[0].mxu0
      %v672 = vadd.f32 %v336, %v671
      %673 = vmatprep.mubr.f32.mxu0 0.0
      %674 = vmatmul.mubr.f32.gmra.mrb[0].mxu0 %v430
      %v675 = vpop.f32.mrb[0].mxu0
      %v676 = vadd.f32 %v332, %v675
      %v677 = vpop.f32.mrb[0].mxu0
      %v678 = vadd.f32 %v336, %v677
      %679 = vmatprep.mubr.f32.mxu0 0.0
      %680 = vmatmul.mubr.f32.gmra.mrb[0].mxu0 %v433
      %v681 = vpop.f32.mrb[0].mxu0
      %v682 = vadd.f32 %v332, %v681
      %v683 = vpop.f32.mrb[0].mxu0
      %v684 = vadd.f32 %v336, %v683
      %685 = vmatprep.mubr.f32.mxu0 0.0
      %686 = vmatmul.mubr.f32.gmra.mrb[0].mxu0 %v436
      %v687 = vpop.f32.mrb[0].mxu0
      %v688 = vadd.f32 %v332, %v687
      %v689 = vpop.f32.mrb[0].mxu0
      %v690 = vadd.f32 %v336, %v689
      %691 = vmatprep.mubr.f32.mxu0 0.0
      %692 = vmatmul.mubr.f32.gmra.mrb[0].mxu0 %v439
      %v693 = vpop.f32.mrb[0].mxu0
      %v694 = vadd.f32 %v332, %v693
      %v695 = vpop.f32.mrb[0].mxu0
      %v696 = vadd.f32 %v336, %v695
      %697 = vdwg.mxu0
      %698 = vmatprep.subr.mxu0 0.0
      %699 = vmatpush1.msra.mxu0 %v284
      %700 = vmatprep.subr.mxu0 0.0
      %701 = vmatpush1.msra.mxu0 %v287
      %702 = vmatprep.subr.mxu0 0.0
      %703 = vmatpush1.msra.mxu0 %v290
      %704 = vmatprep.subr.mxu0 0.0
      %705 = vmatpush1.msra.mxu0 %v293
      %706 = vmatprep.subr.mxu0 0.0
      %707 = vmatpush1.msra.mxu0 0.0
      %708 = vmatprep.subr.mxu0 0.0
      %709 = vmatpush1.msra.mxu0 0.0
      %710 = vmatprep.subr.mxu0 0.0
      %711 = vmatpush1.msra.mxu0 0.0
      %712 = vmatprep.subr.mxu0 0.0
      %713 = vmatpush1.msra.mxu0 0.0
      %714 = vmatprep.subr.mxu0 0.0
      %715 = vmatpush1.msra.mxu0 0.0
      %716 = vmatprep.subr.mxu0 0.0
      %717 = vmatpush1.msra.mxu0 0.0
      %718 = vmatprep.subr.mxu0 0.0
      %719 = vmatpush1.msra.mxu0 0.0
      %720 = vmatprep.subr.mxu0 0.0
      %721 = vmatpush1.msra.mxu0 0.0
      %722 = vmatprep.subr.mxu0 0.0
      %723 = vmatpush1.msra.mxu0 0.0
      %724 = vmatprep.subr.mxu0 0.0
      %725 = vmatpush1.msra.mxu0 0.0
      %726 = vmatprep.subr.mxu0 0.0
      %727 = vmatpush1.msra.mxu0 0.0
      %728 = vmatprep.subr.mxu0 0.0
      %729 = vmatpush1.msra.mxu0 0.0
      %730 = vmatprep.subr.mxu0 0.0
      %731 = vmatpush1.msra.mxu0 0.0
      %732 = vmatprep.subr.mxu0 0.0
      %733 = vmatpush1.msra.mxu0 0.0
      %734 = vmatprep.subr.mxu0 0.0
      %735 = vmatpush1.msra.mxu0 0.0
      %736 = vmatprep.subr.mxu0 0.0
      %737 = vmatpush1.msra.mxu0 0.0
      %738 = vmatprep.subr.mxu0 0.0
      %739 = vmatpush1.msra.mxu0 0.0
      %740 = vmatprep.subr.mxu0 0.0
      %741 = vmatpush1.msra.mxu0 0.0
      %742 = vmatprep.subr.mxu0 0.0
      %743 = vmatpush1.msra.mxu0 0.0
      %744 = vmatprep.subr.mxu0 0.0
      %745 = vmatpush1.msra.mxu0 0.0
      %746 = vmatprep.subr.mxu0 0.0
      %747 = vmatpush1.msra.mxu0 0.0
      %748 = vmatprep.subr.mxu0 0.0
      %749 = vmatpush1.msra.mxu0 0.0
      %750 = vmatprep.subr.mxu0 0.0
      %751 = vmatpush1.msra.mxu0 0.0
      %752 = vmatprep.subr.mxu0 0.0
      %753 = vmatpush1.msra.mxu0 0.0
      %754 = vmatprep.subr.mxu0 0.0
      %755 = vmatpush1.msra.mxu0 0.0
      %756 = vmatprep.subr.mxu0 0.0
      %757 = vmatpush1.msra.mxu0 0.0
      %758 = vmatprep.subr.mxu0 0.0
      %759 = vmatpush1.msra.mxu0 0.0
      %760 = vmatprep.subr.mxu0 0.0
      %761 = vmatpush1.msra.mxu0 0.0
      %762 = vmatprep.mubr.f32.mxu0 0.0
      %763 = vmatmul.mubr.f32.gmra.mrb[0].mxu0 %v346
      %v764 = vpop.f32.mrb[0].mxu0
      %v765 = vadd.f32 %v340, %v764
      %v766 = vpop.f32.mrb[0].mxu0
      %767 = vmatprep.mubr.f32.mxu0 0.0
      %768 = vmatmul.mubr.f32.gmra.mrb[0].mxu0 %v349
      %v769 = vpop.f32.mrb[0].mxu0
      %v770 = vadd.f32 %v340, %v769
      %v771 = vpop.f32.mrb[0].mxu0
      %772 = vmatprep.mubr.f32.mxu0 0.0
      %773 = vmatmul.mubr.f32.gmra.mrb[0].mxu0 %v352
      %v774 = vpop.f32.mrb[0].mxu0
      %v775 = vadd.f32 %v340, %v774
      %v776 = vpop.f32.mrb[0].mxu0
      %777 = vmatprep.mubr.f32.mxu0 0.0
      %778 = vmatmul.mubr.f32.gmra.mrb[0].mxu0 %v355
      %v779 = vpop.f32.mrb[0].mxu0
      %v780 = vadd.f32 %v340, %v779
      %v781 = vpop.f32.mrb[0].mxu0
      %782 = vmatprep.mubr.f32.mxu0 0.0
      %783 = vmatmul.mubr.f32.gmra.mrb[0].mxu0 %v358
      %v784 = vpop.f32.mrb[0].mxu0
      %v785 = vadd.f32 %v340, %v784
      %v786 = vpop.f32.mrb[0].mxu0
      %787 = vmatprep.mubr.f32.mxu0 0.0
      %788 = vmatmul.mubr.f32.gmra.mrb[0].mxu0 %v361
      %v789 = vpop.f32.mrb[0].mxu0
      %v790 = vadd.f32 %v340, %v789
      %v791 = vpop.f32.mrb[0].mxu0
      %792 = vmatprep.mubr.f32.mxu0 0.0
      %793 = vmatmul.mubr.f32.gmra.mrb[0].mxu0 %v364
      %v794 = vpop.f32.mrb[0].mxu0
      %v795 = vadd.f32 %v340, %v794
      %v796 = vpop.f32.mrb[0].mxu0
      %797 = vmatprep.mubr.f32.mxu0 0.0
      %798 = vmatmul.mubr.f32.gmra.mrb[0].mxu0 %v367
      %v799 = vpop.f32.mrb[0].mxu0
      %v800 = vadd.f32 %v340, %v799
      %v801 = vpop.f32.mrb[0].mxu0
      %802 = vmatprep.mubr.f32.mxu0 0.0
      %803 = vmatmul.mubr.f32.gmra.mrb[0].mxu0 %v370
      %v804 = vpop.f32.mrb[0].mxu0
      %v805 = vadd.f32 %v340, %v804
      %v806 = vpop.f32.mrb[0].mxu0
      %807 = vmatprep.mubr.f32.mxu0 0.0
      %808 = vmatmul.mubr.f32.gmra.mrb[0].mxu0 %v373
      %v809 = vpop.f32.mrb[0].mxu0
      %v810 = vadd.f32 %v340, %v809
      %v811 = vpop.f32.mrb[0].mxu0
      %812 = vmatprep.mubr.f32.mxu0 0.0
      %813 = vmatmul.mubr.f32.gmra.mrb[0].mxu0 %v376
      %v814 = vpop.f32.mrb[0].mxu0
      %v815 = vadd.f32 %v340, %v814
      %v816 = vpop.f32.mrb[0].mxu0
      %817 = vmatprep.mubr.f32.mxu0 0.0
      %818 = vmatmul.mubr.f32.gmra.mrb[0].mxu0 %v379
      %v819 = vpop.f32.mrb[0].mxu0
      %v820 = vadd.f32 %v340, %v819
      %v821 = vpop.f32.mrb[0].mxu0
      %822 = vmatprep.mubr.f32.mxu0 0.0
      %823 = vmatmul.mubr.f32.gmra.mrb[0].mxu0 %v382
      %v824 = vpop.f32.mrb[0].mxu0
      %v825 = vadd.f32 %v340, %v824
      %v826 = vpop.f32.mrb[0].mxu0
      %827 = vmatprep.mubr.f32.mxu0 0.0
      %828 = vmatmul.mubr.f32.gmra.mrb[0].mxu0 %v385
      %v829 = vpop.f32.mrb[0].mxu0
      %v830 = vadd.f32 %v340, %v829
      %v831 = vpop.f32.mrb[0].mxu0
      %832 = vmatprep.mubr.f32.mxu0 0.0
      %833 = vmatmul.mubr.f32.gmra.mrb[0].mxu0 %v388
      %v834 = vpop.f32.mrb[0].mxu0
      %v835 = vadd.f32 %v340, %v834
      %v836 = vpop.f32.mrb[0].mxu0
      %837 = vmatprep.mubr.f32.mxu0 0.0
      %838 = vmatmul.mubr.f32.gmra.mrb[0].mxu0 %v391
      %v839 = vpop.f32.mrb[0].mxu0
      %v840 = vadd.f32 %v340, %v839
      %v841 = vpop.f32.mrb[0].mxu0
      %842 = vmatprep.mubr.f32.mxu0 0.0
      %843 = vmatmul.mubr.f32.gmra.mrb[0].mxu0 %v394
      %v844 = vpop.f32.mrb[0].mxu0
      %v845 = vadd.f32 %v340, %v844
      %v846 = vpop.f32.mrb[0].mxu0
      %847 = vmatprep.mubr.f32.mxu0 0.0
      %848 = vmatmul.mubr.f32.gmra.mrb[0].mxu0 %v397
      %v849 = vpop.f32.mrb[0].mxu0
      %v850 = vadd.f32 %v340, %v849
      %v851 = vpop.f32.mrb[0].mxu0
      %852 = vmatprep.mubr.f32.mxu0 0.0
      %853 = vmatmul.mubr.f32.gmra.mrb[0].mxu0 %v400
      %v854 = vpop.f32.mrb[0].mxu0
      %v855 = vadd.f32 %v340, %v854
      %v856 = vpop.f32.mrb[0].mxu0
      %857 = vmatprep.mubr.f32.mxu0 0.0
      %858 = vmatmul.mubr.f32.gmra.mrb[0].mxu0 %v403
      %v859 = vpop.f32.mrb[0].mxu0
      %v860 = vadd.f32 %v340, %v859
      %v861 = vpop.f32.mrb[0].mxu0
      %862 = vmatprep.mubr.f32.mxu0 0.0
      %863 = vmatmul.mubr.f32.gmra.mrb[0].mxu0 %v406
      %v864 = vpop.f32.mrb[0].mxu0
      %v865 = vadd.f32 %v340, %v864
      %v866 = vpop.f32.mrb[0].mxu0
      %867 = vmatprep.mubr.f32.mxu0 0.0
      %868 = vmatmul.mubr.f32.gmra.mrb[0].mxu0 %v409
      %v869 = vpop.f32.mrb[0].mxu0
      %v870 = vadd.f32 %v340, %v869
      %v871 = vpop.f32.mrb[0].mxu0
      %872 = vmatprep.mubr.f32.mxu0 0.0
      %873 = vmatmul.mubr.f32.gmra.mrb[0].mxu0 %v412
      %v874 = vpop.f32.mrb[0].mxu0
      %v875 = vadd.f32 %v340, %v874
      %v876 = vpop.f32.mrb[0].mxu0
      %877 = vmatprep.mubr.f32.mxu0 0.0
      %878 = vmatmul.mubr.f32.gmra.mrb[0].mxu0 %v415
      %v879 = vpop.f32.mrb[0].mxu0
      %v880 = vadd.f32 %v340, %v879
      %v881 = vpop.f32.mrb[0].mxu0
      %882 = vmatprep.mubr.f32.mxu0 0.0
      %883 = vmatmul.mubr.f32.gmra.mrb[0].mxu0 %v418
      %v884 = vpop.f32.mrb[0].mxu0
      %v885 = vadd.f32 %v340, %v884
      %v886 = vpop.f32.mrb[0].mxu0
      %887 = vmatprep.mubr.f32.mxu0 0.0
      %888 = vmatmul.mubr.f32.gmra.mrb[0].mxu0 %v421
      %v889 = vpop.f32.mrb[0].mxu0
      %v890 = vadd.f32 %v340, %v889
      %v891 = vpop.f32.mrb[0].mxu0
      %892 = vmatprep.mubr.f32.mxu0 0.0
      %893 = vmatmul.mubr.f32.gmra.mrb[0].mxu0 %v424
      %v894 = vpop.f32.mrb[0].mxu0
      %v895 = vadd.f32 %v340, %v894
      %v896 = vpop.f32.mrb[0].mxu0
      %897 = vmatprep.mubr.f32.mxu0 0.0
      %898 = vmatmul.mubr.f32.gmra.mrb[0].mxu0 %v427
      %v899 = vpop.f32.mrb[0].mxu0
      %v900 = vadd.f32 %v340, %v899
      %v901 = vpop.f32.mrb[0].mxu0
      %902 = vmatprep.mubr.f32.mxu0 0.0
      %903 = vmatmul.mubr.f32.gmra.mrb[0].mxu0 %v430
      %v904 = vpop.f32.mrb[0].mxu0
      %v905 = vadd.f32 %v340, %v904
      %v906 = vpop.f32.mrb[0].mxu0
      %907 = vmatprep.mubr.f32.mxu0 0.0
      %908 = vmatmul.mubr.f32.gmra.mrb[0].mxu0 %v433
      %v909 = vpop.f32.mrb[0].mxu0
      %v910 = vadd.f32 %v340, %v909
      %v911 = vpop.f32.mrb[0].mxu0
      %912 = vmatprep.mubr.f32.mxu0 0.0
      %913 = vmatmul.mubr.f32.gmra.mrb[0].mxu0 %v436
      %v914 = vpop.f32.mrb[0].mxu0
      %v915 = vadd.f32 %v340, %v914
      %v916 = vpop.f32.mrb[0].mxu0
      %917 = vmatprep.mubr.f32.mxu0 0.0
      %918 = vmatmul.mubr.f32.gmra.mrb[0].mxu0 %v439
      %v919 = vpop.f32.mrb[0].mxu0
      %v920 = vadd.f32 %v340, %v919
      %v921 = vpop.f32.mrb[0].mxu0
      %922 = vdwg.mxu0
      %v924 = vlaneseq
      %v925 = vshrl.u32 %v924, 7
      %v926 = vsub.s32 0, %v925
      %v927 = vrot.slane %v295, %v926
      %vm929 = vcmask 130048
      %v931 = vsel %vm929, %v250, 0
      %933 = vmatprep.subr.mxu0 0.0
      %934 = vmatpush1.msra.mxu0 %v508
      %935 = vmatprep.subr.mxu0 0.0
      %936 = vmatpush1.msra.mxu0 %v510
      %937 = vmatprep.subr.mxu0 0.0
      %938 = vmatpush1.msra.mxu0 0.0
      %939 = vmatprep.subr.mxu0 0.0
      %940 = vmatpush1.msra.mxu0 0.0
      %941 = vmatprep.subr.mxu0 0.0
      %942 = vmatpush1.msra.mxu0 0.0
      %943 = vmatprep.subr.mxu0 0.0
      %944 = vmatpush1.msra.mxu0 0.0
      %945 = vmatprep.subr.mxu0 0.0
      %946 = vmatpush1.msra.mxu0 0.0
      %947 = vmatprep.subr.mxu0 0.0
      %948 = vmatpush1.msra.mxu0 0.0
      %949 = vmatprep.subr.mxu0 0.0
      %950 = vmatpush1.msra.mxu0 0.0
      %951 = vmatprep.subr.mxu0 0.0
      %952 = vmatpush1.msra.mxu0 0.0
      %953 = vmatprep.subr.mxu0 0.0
      %954 = vmatpush1.msra.mxu0 0.0
      %955 = vmatprep.subr.mxu0 0.0
      %956 = vmatpush1.msra.mxu0 0.0
      %957 = vmatprep.subr.mxu0 0.0
      %958 = vmatpush1.msra.mxu0 0.0
      %959 = vmatprep.subr.mxu0 0.0
      %960 = vmatpush1.msra.mxu0 0.0
      %961 = vmatprep.subr.mxu0 0.0
      %962 = vmatpush1.msra.mxu0 0.0
      %963 = vmatprep.subr.mxu0 0.0
      %964 = vmatpush1.msra.mxu0 0.0
      %965 = vmatprep.subr.mxu0 0.0
      %966 = vmatpush1.msra.mxu0 0.0
      %967 = vmatprep.subr.mxu0 0.0
      %968 = vmatpush1.msra.mxu0 0.0
      %969 = vmatprep.subr.mxu0 0.0
      %970 = vmatpush1.msra.mxu0 0.0
      %971 = vmatprep.subr.mxu0 0.0
      %972 = vmatpush1.msra.mxu0 0.0
      %973 = vmatprep.subr.mxu0 0.0
      %974 = vmatpush1.msra.mxu0 0.0
      %975 = vmatprep.subr.mxu0 0.0
      %976 = vmatpush1.msra.mxu0 0.0
      %977 = vmatprep.subr.mxu0 0.0
      %978 = vmatpush1.msra.mxu0 0.0
      %979 = vmatprep.subr.mxu0 0.0
      %980 = vmatpush1.msra.mxu0 0.0
      %981 = vmatprep.subr.mxu0 0.0
      %982 = vmatpush1.msra.mxu0 0.0
      %983 = vmatprep.subr.mxu0 0.0
      %984 = vmatpush1.msra.mxu0 0.0
      %985 = vmatprep.subr.mxu0 0.0
      %986 = vmatpush1.msra.mxu0 0.0
      %987 = vmatprep.subr.mxu0 0.0
      %988 = vmatpush1.msra.mxu0 0.0
      %989 = vmatprep.subr.mxu0 0.0
      %990 = vmatpush1.msra.mxu0 0.0
      %991 = vmatprep.subr.mxu0 0.0
      %992 = vmatpush1.msra.mxu0 0.0
      %993 = vmatprep.subr.mxu0 0.0
      %994 = vmatpush1.msra.mxu0 0.0
      %995 = vmatprep.subr.mxu0 0.0
      %996 = vmatpush1.msra.mxu0 0.0
      %997 = vmatprep.mubr.f32.mxu0 0.0
      %998 = vmatmul.mubr.f32.gmra.mrb[0].mxu0 %v931
      %v999 = vpop.f32.mrb[0].mxu0
      %v1000 = vadd.f32 %v927, %v999
      %v1001 = vpop.f32.mrb[0].mxu0
      %1002 = vdwg.mxu0
      %v1004 = vsel %vm929, %v251, 0
      %1006 = vmatprep.subr.mxu0 0.0
      %1007 = vmatpush1.msra.mxu0 %v514
      %1008 = vmatprep.subr.mxu0 0.0
      %1009 = vmatpush1.msra.mxu0 %v516
      %1010 = vmatprep.subr.mxu0 0.0
      %1011 = vmatpush1.msra.mxu0 0.0
      %1012 = vmatprep.subr.mxu0 0.0
      %1013 = vmatpush1.msra.mxu0 0.0
      %1014 = vmatprep.subr.mxu0 0.0
      %1015 = vmatpush1.msra.mxu0 0.0
      %1016 = vmatprep.subr.mxu0 0.0
      %1017 = vmatpush1.msra.mxu0 0.0
      %1018 = vmatprep.subr.mxu0 0.0
      %1019 = vmatpush1.msra.mxu0 0.0
      %1020 = vmatprep.subr.mxu0 0.0
      %1021 = vmatpush1.msra.mxu0 0.0
      %1022 = vmatprep.subr.mxu0 0.0
      %1023 = vmatpush1.msra.mxu0 0.0
      %1024 = vmatprep.subr.mxu0 0.0
      %1025 = vmatpush1.msra.mxu0 0.0
      %1026 = vmatprep.subr.mxu0 0.0
      %1027 = vmatpush1.msra.mxu0 0.0
      %1028 = vmatprep.subr.mxu0 0.0
      %1029 = vmatpush1.msra.mxu0 0.0
      %1030 = vmatprep.subr.mxu0 0.0
      %1031 = vmatpush1.msra.mxu0 0.0
      %1032 = vmatprep.subr.mxu0 0.0
      %1033 = vmatpush1.msra.mxu0 0.0
      %1034 = vmatprep.subr.mxu0 0.0
      %1035 = vmatpush1.msra.mxu0 0.0
      %1036 = vmatprep.subr.mxu0 0.0
      %1037 = vmatpush1.msra.mxu0 0.0
      %1038 = vmatprep.subr.mxu0 0.0
      %1039 = vmatpush1.msra.mxu0 0.0
      %1040 = vmatprep.subr.mxu0 0.0
      %1041 = vmatpush1.msra.mxu0 0.0
      %1042 = vmatprep.subr.mxu0 0.0
      %1043 = vmatpush1.msra.mxu0 0.0
      %1044 = vmatprep.subr.mxu0 0.0
      %1045 = vmatpush1.msra.mxu0 0.0
      %1046 = vmatprep.subr.mxu0 0.0
      %1047 = vmatpush1.msra.mxu0 0.0
      %1048 = vmatprep.subr.mxu0 0.0
      %1049 = vmatpush1.msra.mxu0 0.0
      %1050 = vmatprep.subr.mxu0 0.0
      %1051 = vmatpush1.msra.mxu0 0.0
      %1052 = vmatprep.subr.mxu0 0.0
      %1053 = vmatpush1.msra.mxu0 0.0
      %1054 = vmatprep.subr.mxu0 0.0
      %1055 = vmatpush1.msra.mxu0 0.0
      %1056 = vmatprep.subr.mxu0 0.0
      %1057 = vmatpush1.msra.mxu0 0.0
      %1058 = vmatprep.subr.mxu0 0.0
      %1059 = vmatpush1.msra.mxu0 0.0
      %1060 = vmatprep.subr.mxu0 0.0
      %1061 = vmatpush1.msra.mxu0 0.0
      %1062 = vmatprep.subr.mxu0 0.0
      %1063 = vmatpush1.msra.mxu0 0.0
      %1064 = vmatprep.subr.mxu0 0.0
      %1065 = vmatpush1.msra.mxu0 0.0
      %1066 = vmatprep.subr.mxu0 0.0
      %1067 = vmatpush1.msra.mxu0 0.0
      %1068 = vmatprep.subr.mxu0 0.0
      %1069 = vmatpush1.msra.mxu0 0.0
      %1070 = vmatprep.mubr.f32.mxu0 0.0
      %1071 = vmatmul.mubr.f32.gmra.mrb[0].mxu0 %v1004
      %v1072 = vpop.f32.mrb[0].mxu0
      %v1073 = vadd.f32 %v927, %v1072
      %v1074 = vpop.f32.mrb[0].mxu0
      %1075 = vdwg.mxu0
      %v1077 = vsel %vm929, %v252, 0
      %1079 = vmatprep.subr.mxu0 0.0
      %1080 = vmatpush1.msra.mxu0 %v520
      %1081 = vmatprep.subr.mxu0 0.0
      %1082 = vmatpush1.msra.mxu0 %v522
      %1083 = vmatprep.subr.mxu0 0.0
      %1084 = vmatpush1.msra.mxu0 0.0
      %1085 = vmatprep.subr.mxu0 0.0
      %1086 = vmatpush1.msra.mxu0 0.0
      %1087 = vmatprep.subr.mxu0 0.0
      %1088 = vmatpush1.msra.mxu0 0.0
      %1089 = vmatprep.subr.mxu0 0.0
      %1090 = vmatpush1.msra.mxu0 0.0
      %1091 = vmatprep.subr.mxu0 0.0
      %1092 = vmatpush1.msra.mxu0 0.0
      %1093 = vmatprep.subr.mxu0 0.0
      %1094 = vmatpush1.msra.mxu0 0.0
      %1095 = vmatprep.subr.mxu0 0.0
      %1096 = vmatpush1.msra.mxu0 0.0
      %1097 = vmatprep.subr.mxu0 0.0
      %1098 = vmatpush1.msra.mxu0 0.0
      %1099 = vmatprep.subr.mxu0 0.0
      %1100 = vmatpush1.msra.mxu0 0.0
      %1101 = vmatprep.subr.mxu0 0.0
      %1102 = vmatpush1.msra.mxu0 0.0
      %1103 = vmatprep.subr.mxu0 0.0
      %1104 = vmatpush1.msra.mxu0 0.0
      %1105 = vmatprep.subr.mxu0 0.0
      %1106 = vmatpush1.msra.mxu0 0.0
      %1107 = vmatprep.subr.mxu0 0.0
      %1108 = vmatpush1.msra.mxu0 0.0
      %1109 = vmatprep.subr.mxu0 0.0
      %1110 = vmatpush1.msra.mxu0 0.0
      %1111 = vmatprep.subr.mxu0 0.0
      %1112 = vmatpush1.msra.mxu0 0.0
      %1113 = vmatprep.subr.mxu0 0.0
      %1114 = vmatpush1.msra.mxu0 0.0
      %1115 = vmatprep.subr.mxu0 0.0
      %1116 = vmatpush1.msra.mxu0 0.0
      %1117 = vmatprep.subr.mxu0 0.0
      %1118 = vmatpush1.msra.mxu0 0.0
      %1119 = vmatprep.subr.mxu0 0.0
      %1120 = vmatpush1.msra.mxu0 0.0
      %1121 = vmatprep.subr.mxu0 0.0
      %1122 = vmatpush1.msra.mxu0 0.0
      %1123 = vmatprep.subr.mxu0 0.0
      %1124 = vmatpush1.msra.mxu0 0.0
      %1125 = vmatprep.subr.mxu0 0.0
      %1126 = vmatpush1.msra.mxu0 0.0
      %1127 = vmatprep.subr.mxu0 0.0
      %1128 = vmatpush1.msra.mxu0 0.0
      %1129 = vmatprep.subr.mxu0 0.0
      %1130 = vmatpush1.msra.mxu0 0.0
      %1131 = vmatprep.subr.mxu0 0.0
      %1132 = vmatpush1.msra.mxu0 0.0
      %1133 = vmatprep.subr.mxu0 0.0
      %1134 = vmatpush1.msra.mxu0 0.0
      %1135 = vmatprep.subr.mxu0 0.0
      %1136 = vmatpush1.msra.mxu0 0.0
      %1137 = vmatprep.subr.mxu0 0.0
      %1138 = vmatpush1.msra.mxu0 0.0
      %1139 = vmatprep.subr.mxu0 0.0
      %1140 = vmatpush1.msra.mxu0 0.0
      %1141 = vmatprep.subr.mxu0 0.0
      %1142 = vmatpush1.msra.mxu0 0.0
      %1143 = vmatprep.mubr.f32.mxu0 0.0
      %1144 = vmatmul.mubr.f32.gmra.mrb[0].mxu0 %v1077
      %v1145 = vpop.f32.mrb[0].mxu0
      %v1146 = vadd.f32 %v927, %v1145
      %v1147 = vpop.f32.mrb[0].mxu0
      %1148 = vdwg.mxu0
      %v1150 = vsel %vm929, %v253, 0
      %1152 = vmatprep.subr.mxu0 0.0
      %1153 = vmatpush1.msra.mxu0 %v526
      %1154 = vmatprep.subr.mxu0 0.0
      %1155 = vmatpush1.msra.mxu0 %v528
      %1156 = vmatprep.subr.mxu0 0.0
      %1157 = vmatpush1.msra.mxu0 0.0
      %1158 = vmatprep.subr.mxu0 0.0
      %1159 = vmatpush1.msra.mxu0 0.0
      %1160 = vmatprep.subr.mxu0 0.0
      %1161 = vmatpush1.msra.mxu0 0.0
      %1162 = vmatprep.subr.mxu0 0.0
      %1163 = vmatpush1.msra.mxu0 0.0
      %1164 = vmatprep.subr.mxu0 0.0
      %1165 = vmatpush1.msra.mxu0 0.0
      %1166 = vmatprep.subr.mxu0 0.0
      %1167 = vmatpush1.msra.mxu0 0.0
      %1168 = vmatprep.subr.mxu0 0.0
      %1169 = vmatpush1.msra.mxu0 0.0
      %1170 = vmatprep.subr.mxu0 0.0
      %1171 = vmatpush1.msra.mxu0 0.0
      %1172 = vmatprep.subr.mxu0 0.0
      %1173 = vmatpush1.msra.mxu0 0.0
      %1174 = vmatprep.subr.mxu0 0.0
      %1175 = vmatpush1.msra.mxu0 0.0
      %1176 = vmatprep.subr.mxu0 0.0
      %1177 = vmatpush1.msra.mxu0 0.0
      %1178 = vmatprep.subr.mxu0 0.0
      %1179 = vmatpush1.msra.mxu0 0.0
      %1180 = vmatprep.subr.mxu0 0.0
      %1181 = vmatpush1.msra.mxu0 0.0
      %1182 = vmatprep.subr.mxu0 0.0
      %1183 = vmatpush1.msra.mxu0 0.0
      %1184 = vmatprep.subr.mxu0 0.0
      %1185 = vmatpush1.msra.mxu0 0.0
      %1186 = vmatprep.subr.mxu0 0.0
      %1187 = vmatpush1.msra.mxu0 0.0
      %1188 = vmatprep.subr.mxu0 0.0
      %1189 = vmatpush1.msra.mxu0 0.0
      %1190 = vmatprep.subr.mxu0 0.0
      %1191 = vmatpush1.msra.mxu0 0.0
      %1192 = vmatprep.subr.mxu0 0.0
      %1193 = vmatpush1.msra.mxu0 0.0
      %1194 = vmatprep.subr.mxu0 0.0
      %1195 = vmatpush1.msra.mxu0 0.0
      %1196 = vmatprep.subr.mxu0 0.0
      %1197 = vmatpush1.msra.mxu0 0.0
      %1198 = vmatprep.subr.mxu0 0.0
      %1199 = vmatpush1.msra.mxu0 0.0
      %1200 = vmatprep.subr.mxu0 0.0
      %1201 = vmatpush1.msra.mxu0 0.0
      %1202 = vmatprep.subr.mxu0 0.0
      %1203 = vmatpush1.msra.mxu0 0.0
      %1204 = vmatprep.subr.mxu0 0.0
      %1205 = vmatpush1.msra.mxu0 0.0
      %1206 = vmatprep.subr.mxu0 0.0
      %1207 = vmatpush1.msra.mxu0 0.0
      %1208 = vmatprep.subr.mxu0 0.0
      %1209 = vmatpush1.msra.mxu0 0.0
      %1210 = vmatprep.subr.mxu0 0.0
      %1211 = vmatpush1.msra.mxu0 0.0
      %1212 = vmatprep.subr.mxu0 0.0
      %1213 = vmatpush1.msra.mxu0 0.0
      %1214 = vmatprep.subr.mxu0 0.0
      %1215 = vmatpush1.msra.mxu0 0.0
      %1216 = vmatprep.mubr.f32.mxu0 0.0
      %1217 = vmatmul.mubr.f32.gmra.mrb[0].mxu0 %v1150
      %v1218 = vpop.f32.mrb[0].mxu0
      %v1219 = vadd.f32 %v927, %v1218
      %v1220 = vpop.f32.mrb[0].mxu0
      %1221 = vdwg.mxu0
      %v1223 = vsel %vm929, %v254, 0
      %1225 = vmatprep.subr.mxu0 0.0
      %1226 = vmatpush1.msra.mxu0 %v532
      %1227 = vmatprep.subr.mxu0 0.0
      %1228 = vmatpush1.msra.mxu0 %v534
      %1229 = vmatprep.subr.mxu0 0.0
      %1230 = vmatpush1.msra.mxu0 0.0
      %1231 = vmatprep.subr.mxu0 0.0
      %1232 = vmatpush1.msra.mxu0 0.0
      %1233 = vmatprep.subr.mxu0 0.0
      %1234 = vmatpush1.msra.mxu0 0.0
      %1235 = vmatprep.subr.mxu0 0.0
      %1236 = vmatpush1.msra.mxu0 0.0
      %1237 = vmatprep.subr.mxu0 0.0
      %1238 = vmatpush1.msra.mxu0 0.0
      %1239 = vmatprep.subr.mxu0 0.0
      %1240 = vmatpush1.msra.mxu0 0.0
      %1241 = vmatprep.subr.mxu0 0.0
      %1242 = vmatpush1.msra.mxu0 0.0
      %1243 = vmatprep.subr.mxu0 0.0
      %1244 = vmatpush1.msra.mxu0 0.0
      %1245 = vmatprep.subr.mxu0 0.0
      %1246 = vmatpush1.msra.mxu0 0.0
      %1247 = vmatprep.subr.mxu0 0.0
      %1248 = vmatpush1.msra.mxu0 0.0
      %1249 = vmatprep.subr.mxu0 0.0
      %1250 = vmatpush1.msra.mxu0 0.0
      %1251 = vmatprep.subr.mxu0 0.0
      %1252 = vmatpush1.msra.mxu0 0.0
      %1253 = vmatprep.subr.mxu0 0.0
      %1254 = vmatpush1.msra.mxu0 0.0
      %1255 = vmatprep.subr.mxu0 0.0
      %1256 = vmatpush1.msra.mxu0 0.0
      %1257 = vmatprep.subr.mxu0 0.0
      %1258 = vmatpush1.msra.mxu0 0.0
      %1259 = vmatprep.subr.mxu0 0.0
      %1260 = vmatpush1.msra.mxu0 0.0
      %1261 = vmatprep.subr.mxu0 0.0
      %1262 = vmatpush1.msra.mxu0 0.0
      %1263 = vmatprep.subr.mxu0 0.0
      %1264 = vmatpush1.msra.mxu0 0.0
      %1265 = vmatprep.subr.mxu0 0.0
      %1266 = vmatpush1.msra.mxu0 0.0
      %1267 = vmatprep.subr.mxu0 0.0
      %1268 = vmatpush1.msra.mxu0 0.0
      %1269 = vmatprep.subr.mxu0 0.0
      %1270 = vmatpush1.msra.mxu0 0.0
      %1271 = vmatprep.subr.mxu0 0.0
      %1272 = vmatpush1.msra.mxu0 0.0
      %1273 = vmatprep.subr.mxu0 0.0
      %1274 = vmatpush1.msra.mxu0 0.0
      %1275 = vmatprep.subr.mxu0 0.0
      %1276 = vmatpush1.msra.mxu0 0.0
      %1277 = vmatprep.subr.mxu0 0.0
      %1278 = vmatpush1.msra.mxu0 0.0
      %1279 = vmatprep.subr.mxu0 0.0
      %1280 = vmatpush1.msra.mxu0 0.0
      %1281 = vmatprep.subr.mxu0 0.0
      %1282 = vmatpush1.msra.mxu0 0.0
      %1283 = vmatprep.subr.mxu0 0.0
      %1284 = vmatpush1.msra.mxu0 0.0
      %1285 = vmatprep.subr.mxu0 0.0
      %1286 = vmatpush1.msra.mxu0 0.0
      %1287 = vmatprep.subr.mxu0 0.0
      %1288 = vmatpush1.msra.mxu0 0.0
      %1289 = vmatprep.mubr.f32.mxu0 0.0
      %1290 = vmatmul.mubr.f32.gmra.mrb[0].mxu0 %v1223
      %v1291 = vpop.f32.mrb[0].mxu0
      %v1292 = vadd.f32 %v927, %v1291
      %v1293 = vpop.f32.mrb[0].mxu0
      %1294 = vdwg.mxu0
      %v1296 = vsel %vm929, %v255, 0
      %1298 = vmatprep.subr.mxu0 0.0
      %1299 = vmatpush1.msra.mxu0 %v538
      %1300 = vmatprep.subr.mxu0 0.0
      %1301 = vmatpush1.msra.mxu0 %v540
      %1302 = vmatprep.subr.mxu0 0.0
      %1303 = vmatpush1.msra.mxu0 0.0
      %1304 = vmatprep.subr.mxu0 0.0
      %1305 = vmatpush1.msra.mxu0 0.0
      %1306 = vmatprep.subr.mxu0 0.0
      %1307 = vmatpush1.msra.mxu0 0.0
      %1308 = vmatprep.subr.mxu0 0.0
      %1309 = vmatpush1.msra.mxu0 0.0
      %1310 = vmatprep.subr.mxu0 0.0
      %1311 = vmatpush1.msra.mxu0 0.0
      %1312 = vmatprep.subr.mxu0 0.0
      %1313 = vmatpush1.msra.mxu0 0.0
      %1314 = vmatprep.subr.mxu0 0.0
      %1315 = vmatpush1.msra.mxu0 0.0
      %1316 = vmatprep.subr.mxu0 0.0
      %1317 = vmatpush1.msra.mxu0 0.0
      %1318 = vmatprep.subr.mxu0 0.0
      %1319 = vmatpush1.msra.mxu0 0.0
      %1320 = vmatprep.subr.mxu0 0.0
      %1321 = vmatpush1.msra.mxu0 0.0
      %1322 = vmatprep.subr.mxu0 0.0
      %1323 = vmatpush1.msra.mxu0 0.0
      %1324 = vmatprep.subr.mxu0 0.0
      %1325 = vmatpush1.msra.mxu0 0.0
      %1326 = vmatprep.subr.mxu0 0.0
      %1327 = vmatpush1.msra.mxu0 0.0
      %1328 = vmatprep.subr.mxu0 0.0
      %1329 = vmatpush1.msra.mxu0 0.0
      %1330 = vmatprep.subr.mxu0 0.0
      %1331 = vmatpush1.msra.mxu0 0.0
      %1332 = vmatprep.subr.mxu0 0.0
      %1333 = vmatpush1.msra.mxu0 0.0
      %1334 = vmatprep.subr.mxu0 0.0
      %1335 = vmatpush1.msra.mxu0 0.0
      %1336 = vmatprep.subr.mxu0 0.0
      %1337 = vmatpush1.msra.mxu0 0.0
      %1338 = vmatprep.subr.mxu0 0.0
      %1339 = vmatpush1.msra.mxu0 0.0
      %1340 = vmatprep.subr.mxu0 0.0
      %1341 = vmatpush1.msra.mxu0 0.0
      %1342 = vmatprep.subr.mxu0 0.0
      %1343 = vmatpush1.msra.mxu0 0.0
      %1344 = vmatprep.subr.mxu0 0.0
      %1345 = vmatpush1.msra.mxu0 0.0
      %1346 = vmatprep.subr.mxu0 0.0
      %1347 = vmatpush1.msra.mxu0 0.0
      %1348 = vmatprep.subr.mxu0 0.0
      %1349 = vmatpush1.msra.mxu0 0.0
      %1350 = vmatprep.subr.mxu0 0.0
      %1351 = vmatpush1.msra.mxu0 0.0
      %1352 = vmatprep.subr.mxu0 0.0
      %1353 = vmatpush1.msra.mxu0 0.0
      %1354 = vmatprep.subr.mxu0 0.0
      %1355 = vmatpush1.msra.mxu0 0.0
      %1356 = vmatprep.subr.mxu0 0.0
      %1357 = vmatpush1.msra.mxu0 0.0
      %1358 = vmatprep.subr.mxu0 0.0
      %1359 = vmatpush1.msra.mxu0 0.0
      %1360 = vmatprep.subr.mxu0 0.0
      %1361 = vmatpush1.msra.mxu0 0.0
      %1362 = vmatprep.mubr.f32.mxu0 0.0
      %1363 = vmatmul.mubr.f32.gmra.mrb[0].mxu0 %v1296
      %v1364 = vpop.f32.mrb[0].mxu0
      %v1365 = vadd.f32 %v927, %v1364
      %v1366 = vpop.f32.mrb[0].mxu0
      %1367 = vdwg.mxu0
      %v1369 = vsel %vm929, %v256, 0
      %1371 = vmatprep.subr.mxu0 0.0
      %1372 = vmatpush1.msra.mxu0 %v544
      %1373 = vmatprep.subr.mxu0 0.0
      %1374 = vmatpush1.msra.mxu0 %v546
      %1375 = vmatprep.subr.mxu0 0.0
      %1376 = vmatpush1.msra.mxu0 0.0
      %1377 = vmatprep.subr.mxu0 0.0
      %1378 = vmatpush1.msra.mxu0 0.0
      %1379 = vmatprep.subr.mxu0 0.0
      %1380 = vmatpush1.msra.mxu0 0.0
      %1381 = vmatprep.subr.mxu0 0.0
      %1382 = vmatpush1.msra.mxu0 0.0
      %1383 = vmatprep.subr.mxu0 0.0
      %1384 = vmatpush1.msra.mxu0 0.0
      %1385 = vmatprep.subr.mxu0 0.0
      %1386 = vmatpush1.msra.mxu0 0.0
      %1387 = vmatprep.subr.mxu0 0.0
      %1388 = vmatpush1.msra.mxu0 0.0
      %1389 = vmatprep.subr.mxu0 0.0
      %1390 = vmatpush1.msra.mxu0 0.0
      %1391 = vmatprep.subr.mxu0 0.0
      %1392 = vmatpush1.msra.mxu0 0.0
      %1393 = vmatprep.subr.mxu0 0.0
      %1394 = vmatpush1.msra.mxu0 0.0
      %1395 = vmatprep.subr.mxu0 0.0
      %1396 = vmatpush1.msra.mxu0 0.0
      %1397 = vmatprep.subr.mxu0 0.0
      %1398 = vmatpush1.msra.mxu0 0.0
      %1399 = vmatprep.subr.mxu0 0.0
      %1400 = vmatpush1.msra.mxu0 0.0
      %1401 = vmatprep.subr.mxu0 0.0
      %1402 = vmatpush1.msra.mxu0 0.0
      %1403 = vmatprep.subr.mxu0 0.0
      %1404 = vmatpush1.msra.mxu0 0.0
      %1405 = vmatprep.subr.mxu0 0.0
      %1406 = vmatpush1.msra.mxu0 0.0
      %1407 = vmatprep.subr.mxu0 0.0
      %1408 = vmatpush1.msra.mxu0 0.0
      %1409 = vmatprep.subr.mxu0 0.0
      %1410 = vmatpush1.msra.mxu0 0.0
      %1411 = vmatprep.subr.mxu0 0.0
      %1412 = vmatpush1.msra.mxu0 0.0
      %1413 = vmatprep.subr.mxu0 0.0
      %1414 = vmatpush1.msra.mxu0 0.0
      %1415 = vmatprep.subr.mxu0 0.0
      %1416 = vmatpush1.msra.mxu0 0.0
      %1417 = vmatprep.subr.mxu0 0.0
      %1418 = vmatpush1.msra.mxu0 0.0
      %1419 = vmatprep.subr.mxu0 0.0
      %1420 = vmatpush1.msra.mxu0 0.0
      %1421 = vmatprep.subr.mxu0 0.0
      %1422 = vmatpush1.msra.mxu0 0.0
      %1423 = vmatprep.subr.mxu0 0.0
      %1424 = vmatpush1.msra.mxu0 0.0
      %1425 = vmatprep.subr.mxu0 0.0
      %1426 = vmatpush1.msra.mxu0 0.0
      %1427 = vmatprep.subr.mxu0 0.0
      %1428 = vmatpush1.msra.mxu0 0.0
      %1429 = vmatprep.subr.mxu0 0.0
      %1430 = vmatpush1.msra.mxu0 0.0
      %1431 = vmatprep.subr.mxu0 0.0
      %1432 = vmatpush1.msra.mxu0 0.0
      %1433 = vmatprep.subr.mxu0 0.0
      %1434 = vmatpush1.msra.mxu0 0.0
      %1435 = vmatprep.mubr.f32.mxu0 0.0
      %1436 = vmatmul.mubr.f32.gmra.mrb[0].mxu0 %v1369
      %v1437 = vpop.f32.mrb[0].mxu0
      %v1438 = vadd.f32 %v927, %v1437
      %v1439 = vpop.f32.mrb[0].mxu0
      %1440 = vdwg.mxu0
      %v1442 = vsel %vm929, %v257, 0
      %1444 = vmatprep.subr.mxu0 0.0
      %1445 = vmatpush1.msra.mxu0 %v550
      %1446 = vmatprep.subr.mxu0 0.0
      %1447 = vmatpush1.msra.mxu0 %v552
      %1448 = vmatprep.subr.mxu0 0.0
      %1449 = vmatpush1.msra.mxu0 0.0
      %1450 = vmatprep.subr.mxu0 0.0
      %1451 = vmatpush1.msra.mxu0 0.0
      %1452 = vmatprep.subr.mxu0 0.0
      %1453 = vmatpush1.msra.mxu0 0.0
      %1454 = vmatprep.subr.mxu0 0.0
      %1455 = vmatpush1.msra.mxu0 0.0
      %1456 = vmatprep.subr.mxu0 0.0
      %1457 = vmatpush1.msra.mxu0 0.0
      %1458 = vmatprep.subr.mxu0 0.0
      %1459 = vmatpush1.msra.mxu0 0.0
      %1460 = vmatprep.subr.mxu0 0.0
      %1461 = vmatpush1.msra.mxu0 0.0
      %1462 = vmatprep.subr.mxu0 0.0
      %1463 = vmatpush1.msra.mxu0 0.0
      %1464 = vmatprep.subr.mxu0 0.0
      %1465 = vmatpush1.msra.mxu0 0.0
      %1466 = vmatprep.subr.mxu0 0.0
      %1467 = vmatpush1.msra.mxu0 0.0
      %1468 = vmatprep.subr.mxu0 0.0
      %1469 = vmatpush1.msra.mxu0 0.0
      %1470 = vmatprep.subr.mxu0 0.0
      %1471 = vmatpush1.msra.mxu0 0.0
      %1472 = vmatprep.subr.mxu0 0.0
      %1473 = vmatpush1.msra.mxu0 0.0
      %1474 = vmatprep.subr.mxu0 0.0
      %1475 = vmatpush1.msra.mxu0 0.0
      %1476 = vmatprep.subr.mxu0 0.0
      %1477 = vmatpush1.msra.mxu0 0.0
      %1478 = vmatprep.subr.mxu0 0.0
      %1479 = vmatpush1.msra.mxu0 0.0
      %1480 = vmatprep.subr.mxu0 0.0
      %1481 = vmatpush1.msra.mxu0 0.0
      %1482 = vmatprep.subr.mxu0 0.0
      %1483 = vmatpush1.msra.mxu0 0.0
      %1484 = vmatprep.subr.mxu0 0.0
      %1485 = vmatpush1.msra.mxu0 0.0
      %1486 = vmatprep.subr.mxu0 0.0
      %1487 = vmatpush1.msra.mxu0 0.0
      %1488 = vmatprep.subr.mxu0 0.0
      %1489 = vmatpush1.msra.mxu0 0.0
      %1490 = vmatprep.subr.mxu0 0.0
      %1491 = vmatpush1.msra.mxu0 0.0
      %1492 = vmatprep.subr.mxu0 0.0
      %1493 = vmatpush1.msra.mxu0 0.0
      %1494 = vmatprep.subr.mxu0 0.0
      %1495 = vmatpush1.msra.mxu0 0.0
      %1496 = vmatprep.subr.mxu0 0.0
      %1497 = vmatpush1.msra.mxu0 0.0
      %1498 = vmatprep.subr.mxu0 0.0
      %1499 = vmatpush1.msra.mxu0 0.0
      %1500 = vmatprep.subr.mxu0 0.0
      %1501 = vmatpush1.msra.mxu0 0.0
      %1502 = vmatprep.subr.mxu0 0.0
      %1503 = vmatpush1.msra.mxu0 0.0
      %1504 = vmatprep.subr.mxu0 0.0
      %1505 = vmatpush1.msra.mxu0 0.0
      %1506 = vmatprep.subr.mxu0 0.0
      %1507 = vmatpush1.msra.mxu0 0.0
      %1508 = vmatprep.mubr.f32.mxu0 0.0
      %1509 = vmatmul.mubr.f32.gmra.mrb[0].mxu0 %v1442
      %v1510 = vpop.f32.mrb[0].mxu0
      %v1511 = vadd.f32 %v927, %v1510
      %v1512 = vpop.f32.mrb[0].mxu0
      %1513 = vdwg.mxu0
      %v1515 = vsel %vm929, %v258, 0
      %1517 = vmatprep.subr.mxu0 0.0
      %1518 = vmatpush1.msra.mxu0 %v556
      %1519 = vmatprep.subr.mxu0 0.0
      %1520 = vmatpush1.msra.mxu0 %v558
      %1521 = vmatprep.subr.mxu0 0.0
      %1522 = vmatpush1.msra.mxu0 0.0
      %1523 = vmatprep.subr.mxu0 0.0
      %1524 = vmatpush1.msra.mxu0 0.0
      %1525 = vmatprep.subr.mxu0 0.0
      %1526 = vmatpush1.msra.mxu0 0.0
      %1527 = vmatprep.subr.mxu0 0.0
      %1528 = vmatpush1.msra.mxu0 0.0
      %1529 = vmatprep.subr.mxu0 0.0
      %1530 = vmatpush1.msra.mxu0 0.0
      %1531 = vmatprep.subr.mxu0 0.0
      %1532 = vmatpush1.msra.mxu0 0.0
      %1533 = vmatprep.subr.mxu0 0.0
      %1534 = vmatpush1.msra.mxu0 0.0
      %1535 = vmatprep.subr.mxu0 0.0
      %1536 = vmatpush1.msra.mxu0 0.0
      %1537 = vmatprep.subr.mxu0 0.0
      %1538 = vmatpush1.msra.mxu0 0.0
      %1539 = vmatprep.subr.mxu0 0.0
      %1540 = vmatpush1.msra.mxu0 0.0
      %1541 = vmatprep.subr.mxu0 0.0
      %1542 = vmatpush1.msra.mxu0 0.0
      %1543 = vmatprep.subr.mxu0 0.0
      %1544 = vmatpush1.msra.mxu0 0.0
      %1545 = vmatprep.subr.mxu0 0.0
      %1546 = vmatpush1.msra.mxu0 0.0
      %1547 = vmatprep.subr.mxu0 0.0
      %1548 = vmatpush1.msra.mxu0 0.0
      %1549 = vmatprep.subr.mxu0 0.0
      %1550 = vmatpush1.msra.mxu0 0.0
      %1551 = vmatprep.subr.mxu0 0.0
      %1552 = vmatpush1.msra.mxu0 0.0
      %1553 = vmatprep.subr.mxu0 0.0
      %1554 = vmatpush1.msra.mxu0 0.0
      %1555 = vmatprep.subr.mxu0 0.0
      %1556 = vmatpush1.msra.mxu0 0.0
      %1557 = vmatprep.subr.mxu0 0.0
      %1558 = vmatpush1.msra.mxu0 0.0
      %1559 = vmatprep.subr.mxu0 0.0
      %1560 = vmatpush1.msra.mxu0 0.0
      %1561 = vmatprep.subr.mxu0 0.0
      %1562 = vmatpush1.msra.mxu0 0.0
      %1563 = vmatprep.subr.mxu0 0.0
      %1564 = vmatpush1.msra.mxu0 0.0
      %1565 = vmatprep.subr.mxu0 0.0
      %1566 = vmatpush1.msra.mxu0 0.0
      %1567 = vmatprep.subr.mxu0 0.0
      %1568 = vmatpush1.msra.mxu0 0.0
      %1569 = vmatprep.subr.mxu0 0.0
      %1570 = vmatpush1.msra.mxu0 0.0
      %1571 = vmatprep.subr.mxu0 0.0
      %1572 = vmatpush1.msra.mxu0 0.0
      %1573 = vmatprep.subr.mxu0 0.0
      %1574 = vmatpush1.msra.mxu0 0.0
      %1575 = vmatprep.subr.mxu0 0.0
      %1576 = vmatpush1.msra.mxu0 0.0
      %1577 = vmatprep.subr.mxu0 0.0
      %1578 = vmatpush1.msra.mxu0 0.0
      %1579 = vmatprep.subr.mxu0 0.0
      %1580 = vmatpush1.msra.mxu0 0.0
      %1581 = vmatprep.mubr.f32.mxu0 0.0
      %1582 = vmatmul.mubr.f32.gmra.mrb[0].mxu0 %v1515
      %v1583 = vpop.f32.mrb[0].mxu0
      %v1584 = vadd.f32 %v927, %v1583
      %v1585 = vpop.f32.mrb[0].mxu0
      %1586 = vdwg.mxu0
      %v1588 = vsel %vm929, %v259, 0
      %1590 = vmatprep.subr.mxu0 0.0
      %1591 = vmatpush1.msra.mxu0 %v562
      %1592 = vmatprep.subr.mxu0 0.0
      %1593 = vmatpush1.msra.mxu0 %v564
      %1594 = vmatprep.subr.mxu0 0.0
      %1595 = vmatpush1.msra.mxu0 0.0
      %1596 = vmatprep.subr.mxu0 0.0
      %1597 = vmatpush1.msra.mxu0 0.0
      %1598 = vmatprep.subr.mxu0 0.0
      %1599 = vmatpush1.msra.mxu0 0.0
      %1600 = vmatprep.subr.mxu0 0.0
      %1601 = vmatpush1.msra.mxu0 0.0
      %1602 = vmatprep.subr.mxu0 0.0
      %1603 = vmatpush1.msra.mxu0 0.0
      %1604 = vmatprep.subr.mxu0 0.0
      %1605 = vmatpush1.msra.mxu0 0.0
      %1606 = vmatprep.subr.mxu0 0.0
      %1607 = vmatpush1.msra.mxu0 0.0
      %1608 = vmatprep.subr.mxu0 0.0
      %1609 = vmatpush1.msra.mxu0 0.0
      %1610 = vmatprep.subr.mxu0 0.0
      %1611 = vmatpush1.msra.mxu0 0.0
      %1612 = vmatprep.subr.mxu0 0.0
      %1613 = vmatpush1.msra.mxu0 0.0
      %1614 = vmatprep.subr.mxu0 0.0
      %1615 = vmatpush1.msra.mxu0 0.0
      %1616 = vmatprep.subr.mxu0 0.0
      %1617 = vmatpush1.msra.mxu0 0.0
      %1618 = vmatprep.subr.mxu0 0.0
      %1619 = vmatpush1.msra.mxu0 0.0
      %1620 = vmatprep.subr.mxu0 0.0
      %1621 = vmatpush1.msra.mxu0 0.0
      %1622 = vmatprep.subr.mxu0 0.0
      %1623 = vmatpush1.msra.mxu0 0.0
      %1624 = vmatprep.subr.mxu0 0.0
      %1625 = vmatpush1.msra.mxu0 0.0
      %1626 = vmatprep.subr.mxu0 0.0
      %1627 = vmatpush1.msra.mxu0 0.0
      %1628 = vmatprep.subr.mxu0 0.0
      %1629 = vmatpush1.msra.mxu0 0.0
      %1630 = vmatprep.subr.mxu0 0.0
      %1631 = vmatpush1.msra.mxu0 0.0
      %1632 = vmatprep.subr.mxu0 0.0
      %1633 = vmatpush1.msra.mxu0 0.0
      %1634 = vmatprep.subr.mxu0 0.0
      %1635 = vmatpush1.msra.mxu0 0.0
      %1636 = vmatprep.subr.mxu0 0.0
      %1637 = vmatpush1.msra.mxu0 0.0
      %1638 = vmatprep.subr.mxu0 0.0
      %1639 = vmatpush1.msra.mxu0 0.0
      %1640 = vmatprep.subr.mxu0 0.0
      %1641 = vmatpush1.msra.mxu0 0.0
      %1642 = vmatprep.subr.mxu0 0.0
      %1643 = vmatpush1.msra.mxu0 0.0
      %1644 = vmatprep.subr.mxu0 0.0
      %1645 = vmatpush1.msra.mxu0 0.0
      %1646 = vmatprep.subr.mxu0 0.0
      %1647 = vmatpush1.msra.mxu0 0.0
      %1648 = vmatprep.subr.mxu0 0.0
      %1649 = vmatpush1.msra.mxu0 0.0
      %1650 = vmatprep.subr.mxu0 0.0
      %1651 = vmatpush1.msra.mxu0 0.0
      %1652 = vmatprep.subr.mxu0 0.0
      %1653 = vmatpush1.msra.mxu0 0.0
      %1654 = vmatprep.mubr.f32.mxu0 0.0
      %1655 = vmatmul.mubr.f32.gmra.mrb[0].mxu0 %v1588
      %v1656 = vpop.f32.mrb[0].mxu0
      %v1657 = vadd.f32 %v927, %v1656
      %v1658 = vpop.f32.mrb[0].mxu0
      %1659 = vdwg.mxu0
      %v1661 = vsel %vm929, %v260, 0
      %1663 = vmatprep.subr.mxu0 0.0
      %1664 = vmatpush1.msra.mxu0 %v568
      %1665 = vmatprep.subr.mxu0 0.0
      %1666 = vmatpush1.msra.mxu0 %v570
      %1667 = vmatprep.subr.mxu0 0.0
      %1668 = vmatpush1.msra.mxu0 0.0
      %1669 = vmatprep.subr.mxu0 0.0
      %1670 = vmatpush1.msra.mxu0 0.0
      %1671 = vmatprep.subr.mxu0 0.0
      %1672 = vmatpush1.msra.mxu0 0.0
      %1673 = vmatprep.subr.mxu0 0.0
      %1674 = vmatpush1.msra.mxu0 0.0
      %1675 = vmatprep.subr.mxu0 0.0
      %1676 = vmatpush1.msra.mxu0 0.0
      %1677 = vmatprep.subr.mxu0 0.0
      %1678 = vmatpush1.msra.mxu0 0.0
      %1679 = vmatprep.subr.mxu0 0.0
      %1680 = vmatpush1.msra.mxu0 0.0
      %1681 = vmatprep.subr.mxu0 0.0
      %1682 = vmatpush1.msra.mxu0 0.0
      %1683 = vmatprep.subr.mxu0 0.0
      %1684 = vmatpush1.msra.mxu0 0.0
      %1685 = vmatprep.subr.mxu0 0.0
      %1686 = vmatpush1.msra.mxu0 0.0
      %1687 = vmatprep.subr.mxu0 0.0
      %1688 = vmatpush1.msra.mxu0 0.0
      %1689 = vmatprep.subr.mxu0 0.0
      %1690 = vmatpush1.msra.mxu0 0.0
      %1691 = vmatprep.subr.mxu0 0.0
      %1692 = vmatpush1.msra.mxu0 0.0
      %1693 = vmatprep.subr.mxu0 0.0
      %1694 = vmatpush1.msra.mxu0 0.0
      %1695 = vmatprep.subr.mxu0 0.0
      %1696 = vmatpush1.msra.mxu0 0.0
      %1697 = vmatprep.subr.mxu0 0.0
      %1698 = vmatpush1.msra.mxu0 0.0
      %1699 = vmatprep.subr.mxu0 0.0
      %1700 = vmatpush1.msra.mxu0 0.0
      %1701 = vmatprep.subr.mxu0 0.0
      %1702 = vmatpush1.msra.mxu0 0.0
      %1703 = vmatprep.subr.mxu0 0.0
      %1704 = vmatpush1.msra.mxu0 0.0
      %1705 = vmatprep.subr.mxu0 0.0
      %1706 = vmatpush1.msra.mxu0 0.0
      %1707 = vmatprep.subr.mxu0 0.0
      %1708 = vmatpush1.msra.mxu0 0.0
      %1709 = vmatprep.subr.mxu0 0.0
      %1710 = vmatpush1.msra.mxu0 0.0
      %1711 = vmatprep.subr.mxu0 0.0
      %1712 = vmatpush1.msra.mxu0 0.0
      %1713 = vmatprep.subr.mxu0 0.0
      %1714 = vmatpush1.msra.mxu0 0.0
      %1715 = vmatprep.subr.mxu0 0.0
      %1716 = vmatpush1.msra.mxu0 0.0
      %1717 = vmatprep.subr.mxu0 0.0
      %1718 = vmatpush1.msra.mxu0 0.0
      %1719 = vmatprep.subr.mxu0 0.0
      %1720 = vmatpush1.msra.mxu0 0.0
      %1721 = vmatprep.subr.mxu0 0.0
      %1722 = vmatpush1.msra.mxu0 0.0
      %1723 = vmatprep.subr.mxu0 0.0
      %1724 = vmatpush1.msra.mxu0 0.0
      %1725 = vmatprep.subr.mxu0 0.0
      %1726 = vmatpush1.msra.mxu0 0.0
      %1727 = vmatprep.mubr.f32.mxu0 0.0
      %1728 = vmatmul.mubr.f32.gmra.mrb[0].mxu0 %v1661
      %v1729 = vpop.f32.mrb[0].mxu0
      %v1730 = vadd.f32 %v927, %v1729
      %v1731 = vpop.f32.mrb[0].mxu0
      %1732 = vdwg.mxu0
      %v1734 = vsel %vm929, %v261, 0
      %1736 = vmatprep.subr.mxu0 0.0
      %1737 = vmatpush1.msra.mxu0 %v574
      %1738 = vmatprep.subr.mxu0 0.0
      %1739 = vmatpush1.msra.mxu0 %v576
      %1740 = vmatprep.subr.mxu0 0.0
      %1741 = vmatpush1.msra.mxu0 0.0
      %1742 = vmatprep.subr.mxu0 0.0
      %1743 = vmatpush1.msra.mxu0 0.0
      %1744 = vmatprep.subr.mxu0 0.0
      %1745 = vmatpush1.msra.mxu0 0.0
      %1746 = vmatprep.subr.mxu0 0.0
      %1747 = vmatpush1.msra.mxu0 0.0
      %1748 = vmatprep.subr.mxu0 0.0
      %1749 = vmatpush1.msra.mxu0 0.0
      %1750 = vmatprep.subr.mxu0 0.0
      %1751 = vmatpush1.msra.mxu0 0.0
      %1752 = vmatprep.subr.mxu0 0.0
      %1753 = vmatpush1.msra.mxu0 0.0
      %1754 = vmatprep.subr.mxu0 0.0
      %1755 = vmatpush1.msra.mxu0 0.0
      %1756 = vmatprep.subr.mxu0 0.0
      %1757 = vmatpush1.msra.mxu0 0.0
      %1758 = vmatprep.subr.mxu0 0.0
      %1759 = vmatpush1.msra.mxu0 0.0
      %1760 = vmatprep.subr.mxu0 0.0
      %1761 = vmatpush1.msra.mxu0 0.0
      %1762 = vmatprep.subr.mxu0 0.0
      %1763 = vmatpush1.msra.mxu0 0.0
      %1764 = vmatprep.subr.mxu0 0.0
      %1765 = vmatpush1.msra.mxu0 0.0
      %1766 = vmatprep.subr.mxu0 0.0
      %1767 = vmatpush1.msra.mxu0 0.0
      %1768 = vmatprep.subr.mxu0 0.0
      %1769 = vmatpush1.msra.mxu0 0.0
      %1770 = vmatprep.subr.mxu0 0.0
      %1771 = vmatpush1.msra.mxu0 0.0
      %1772 = vmatprep.subr.mxu0 0.0
      %1773 = vmatpush1.msra.mxu0 0.0
      %1774 = vmatprep.subr.mxu0 0.0
      %1775 = vmatpush1.msra.mxu0 0.0
      %1776 = vmatprep.subr.mxu0 0.0
      %1777 = vmatpush1.msra.mxu0 0.0
      %1778 = vmatprep.subr.mxu0 0.0
      %1779 = vmatpush1.msra.mxu0 0.0
      %1780 = vmatprep.subr.mxu0 0.0
      %1781 = vmatpush1.msra.mxu0 0.0
      %1782 = vmatprep.subr.mxu0 0.0
      %1783 = vmatpush1.msra.mxu0 0.0
      %1784 = vmatprep.subr.mxu0 0.0
      %1785 = vmatpush1.msra.mxu0 0.0
      %1786 = vmatprep.subr.mxu0 0.0
      %1787 = vmatpush1.msra.mxu0 0.0
      %1788 = vmatprep.subr.mxu0 0.0
      %1789 = vmatpush1.msra.mxu0 0.0
      %1790 = vmatprep.subr.mxu0 0.0
      %1791 = vmatpush1.msra.mxu0 0.0
      %1792 = vmatprep.subr.mxu0 0.0
      %1793 = vmatpush1.msra.mxu0 0.0
      %1794 = vmatprep.subr.mxu0 0.0
      %1795 = vmatpush1.msra.mxu0 0.0
      %1796 = vmatprep.subr.mxu0 0.0
      %1797 = vmatpush1.msra.mxu0 0.0
      %1798 = vmatprep.subr.mxu0 0.0
      %1799 = vmatpush1.msra.mxu0 0.0
      %1800 = vmatprep.mubr.f32.mxu0 0.0
      %1801 = vmatmul.mubr.f32.gmra.mrb[0].mxu0 %v1734
      %v1802 = vpop.f32.mrb[0].mxu0
      %v1803 = vadd.f32 %v927, %v1802
      %v1804 = vpop.f32.mrb[0].mxu0
      %1805 = vdwg.mxu0
      %v1807 = vsel %vm929, %v262, 0
      %1809 = vmatprep.subr.mxu0 0.0
      %1810 = vmatpush1.msra.mxu0 %v580
      %1811 = vmatprep.subr.mxu0 0.0
      %1812 = vmatpush1.msra.mxu0 %v582
      %1813 = vmatprep.subr.mxu0 0.0
      %1814 = vmatpush1.msra.mxu0 0.0
      %1815 = vmatprep.subr.mxu0 0.0
      %1816 = vmatpush1.msra.mxu0 0.0
      %1817 = vmatprep.subr.mxu0 0.0
      %1818 = vmatpush1.msra.mxu0 0.0
      %1819 = vmatprep.subr.mxu0 0.0
      %1820 = vmatpush1.msra.mxu0 0.0
      %1821 = vmatprep.subr.mxu0 0.0
      %1822 = vmatpush1.msra.mxu0 0.0
      %1823 = vmatprep.subr.mxu0 0.0
      %1824 = vmatpush1.msra.mxu0 0.0
      %1825 = vmatprep.subr.mxu0 0.0
      %1826 = vmatpush1.msra.mxu0 0.0
      %1827 = vmatprep.subr.mxu0 0.0
      %1828 = vmatpush1.msra.mxu0 0.0
      %1829 = vmatprep.subr.mxu0 0.0
      %1830 = vmatpush1.msra.mxu0 0.0
      %1831 = vmatprep.subr.mxu0 0.0
      %1832 = vmatpush1.msra.mxu0 0.0
      %1833 = vmatprep.subr.mxu0 0.0
      %1834 = vmatpush1.msra.mxu0 0.0
      %1835 = vmatprep.subr.mxu0 0.0
      %1836 = vmatpush1.msra.mxu0 0.0
      %1837 = vmatprep.subr.mxu0 0.0
      %1838 = vmatpush1.msra.mxu0 0.0
      %1839 = vmatprep.subr.mxu0 0.0
      %1840 = vmatpush1.msra.mxu0 0.0
      %1841 = vmatprep.subr.mxu0 0.0
      %1842 = vmatpush1.msra.mxu0 0.0
      %1843 = vmatprep.subr.mxu0 0.0
      %1844 = vmatpush1.msra.mxu0 0.0
      %1845 = vmatprep.subr.mxu0 0.0
      %1846 = vmatpush1.msra.mxu0 0.0
      %1847 = vmatprep.subr.mxu0 0.0
      %1848 = vmatpush1.msra.mxu0 0.0
      %1849 = vmatprep.subr.mxu0 0.0
      %1850 = vmatpush1.msra.mxu0 0.0
      %1851 = vmatprep.subr.mxu0 0.0
      %1852 = vmatpush1.msra.mxu0 0.0
      %1853 = vmatprep.subr.mxu0 0.0
      %1854 = vmatpush1.msra.mxu0 0.0
      %1855 = vmatprep.subr.mxu0 0.0
      %1856 = vmatpush1.msra.mxu0 0.0
      %1857 = vmatprep.subr.mxu0 0.0
      %1858 = vmatpush1.msra.mxu0 0.0
      %1859 = vmatprep.subr.mxu0 0.0
      %1860 = vmatpush1.msra.mxu0 0.0
      %1861 = vmatprep.subr.mxu0 0.0
      %1862 = vmatpush1.msra.mxu0 0.0
      %1863 = vmatprep.subr.mxu0 0.0
      %1864 = vmatpush1.msra.mxu0 0.0
      %1865 = vmatprep.subr.mxu0 0.0
      %1866 = vmatpush1.msra.mxu0 0.0
      %1867 = vmatprep.subr.mxu0 0.0
      %1868 = vmatpush1.msra.mxu0 0.0
      %1869 = vmatprep.subr.mxu0 0.0
      %1870 = vmatpush1.msra.mxu0 0.0
      %1871 = vmatprep.subr.mxu0 0.0
      %1872 = vmatpush1.msra.mxu0 0.0
      %1873 = vmatprep.mubr.f32.mxu0 0.0
      %1874 = vmatmul.mubr.f32.gmra.mrb[0].mxu0 %v1807
      %v1875 = vpop.f32.mrb[0].mxu0
      %v1876 = vadd.f32 %v927, %v1875
      %v1877 = vpop.f32.mrb[0].mxu0
      %1878 = vdwg.mxu0
      %v1880 = vsel %vm929, %v263, 0
      %1882 = vmatprep.subr.mxu0 0.0
      %1883 = vmatpush1.msra.mxu0 %v586
      %1884 = vmatprep.subr.mxu0 0.0
      %1885 = vmatpush1.msra.mxu0 %v588
      %1886 = vmatprep.subr.mxu0 0.0
      %1887 = vmatpush1.msra.mxu0 0.0
      %1888 = vmatprep.subr.mxu0 0.0
      %1889 = vmatpush1.msra.mxu0 0.0
      %1890 = vmatprep.subr.mxu0 0.0
      %1891 = vmatpush1.msra.mxu0 0.0
      %1892 = vmatprep.subr.mxu0 0.0
      %1893 = vmatpush1.msra.mxu0 0.0
      %1894 = vmatprep.subr.mxu0 0.0
      %1895 = vmatpush1.msra.mxu0 0.0
      %1896 = vmatprep.subr.mxu0 0.0
      %1897 = vmatpush1.msra.mxu0 0.0
      %1898 = vmatprep.subr.mxu0 0.0
      %1899 = vmatpush1.msra.mxu0 0.0
      %1900 = vmatprep.subr.mxu0 0.0
      %1901 = vmatpush1.msra.mxu0 0.0
      %1902 = vmatprep.subr.mxu0 0.0
      %1903 = vmatpush1.msra.mxu0 0.0
      %1904 = vmatprep.subr.mxu0 0.0
      %1905 = vmatpush1.msra.mxu0 0.0
      %1906 = vmatprep.subr.mxu0 0.0
      %1907 = vmatpush1.msra.mxu0 0.0
      %1908 = vmatprep.subr.mxu0 0.0
      %1909 = vmatpush1.msra.mxu0 0.0
      %1910 = vmatprep.subr.mxu0 0.0
      %1911 = vmatpush1.msra.mxu0 0.0
      %1912 = vmatprep.subr.mxu0 0.0
      %1913 = vmatpush1.msra.mxu0 0.0
      %1914 = vmatprep.subr.mxu0 0.0
      %1915 = vmatpush1.msra.mxu0 0.0
      %1916 = vmatprep.subr.mxu0 0.0
      %1917 = vmatpush1.msra.mxu0 0.0
      %1918 = vmatprep.subr.mxu0 0.0
      %1919 = vmatpush1.msra.mxu0 0.0
      %1920 = vmatprep.subr.mxu0 0.0
      %1921 = vmatpush1.msra.mxu0 0.0
      %1922 = vmatprep.subr.mxu0 0.0
      %1923 = vmatpush1.msra.mxu0 0.0
      %1924 = vmatprep.subr.mxu0 0.0
      %1925 = vmatpush1.msra.mxu0 0.0
      %1926 = vmatprep.subr.mxu0 0.0
      %1927 = vmatpush1.msra.mxu0 0.0
      %1928 = vmatprep.subr.mxu0 0.0
      %1929 = vmatpush1.msra.mxu0 0.0
      %1930 = vmatprep.subr.mxu0 0.0
      %1931 = vmatpush1.msra.mxu0 0.0
      %1932 = vmatprep.subr.mxu0 0.0
      %1933 = vmatpush1.msra.mxu0 0.0
      %1934 = vmatprep.subr.mxu0 0.0
      %1935 = vmatpush1.msra.mxu0 0.0
      %1936 = vmatprep.subr.mxu0 0.0
      %1937 = vmatpush1.msra.mxu0 0.0
      %1938 = vmatprep.subr.mxu0 0.0
      %1939 = vmatpush1.msra.mxu0 0.0
      %1940 = vmatprep.subr.mxu0 0.0
      %1941 = vmatpush1.msra.mxu0 0.0
      %1942 = vmatprep.subr.mxu0 0.0
      %1943 = vmatpush1.msra.mxu0 0.0
      %1944 = vmatprep.subr.mxu0 0.0
      %1945 = vmatpush1.msra.mxu0 0.0
      %1946 = vmatprep.mubr.f32.mxu0 0.0
      %1947 = vmatmul.mubr.f32.gmra.mrb[0].mxu0 %v1880
      %v1948 = vpop.f32.mrb[0].mxu0
      %v1949 = vadd.f32 %v927, %v1948
      %v1950 = vpop.f32.mrb[0].mxu0
      %1951 = vdwg.mxu0
      %v1953 = vsel %vm929, %v264, 0
      %1955 = vmatprep.subr.mxu0 0.0
      %1956 = vmatpush1.msra.mxu0 %v592
      %1957 = vmatprep.subr.mxu0 0.0
      %1958 = vmatpush1.msra.mxu0 %v594
      %1959 = vmatprep.subr.mxu0 0.0
      %1960 = vmatpush1.msra.mxu0 0.0
      %1961 = vmatprep.subr.mxu0 0.0
      %1962 = vmatpush1.msra.mxu0 0.0
      %1963 = vmatprep.subr.mxu0 0.0
      %1964 = vmatpush1.msra.mxu0 0.0
      %1965 = vmatprep.subr.mxu0 0.0
      %1966 = vmatpush1.msra.mxu0 0.0
      %1967 = vmatprep.subr.mxu0 0.0
      %1968 = vmatpush1.msra.mxu0 0.0
      %1969 = vmatprep.subr.mxu0 0.0
      %1970 = vmatpush1.msra.mxu0 0.0
      %1971 = vmatprep.subr.mxu0 0.0
      %1972 = vmatpush1.msra.mxu0 0.0
      %1973 = vmatprep.subr.mxu0 0.0
      %1974 = vmatpush1.msra.mxu0 0.0
      %1975 = vmatprep.subr.mxu0 0.0
      %1976 = vmatpush1.msra.mxu0 0.0
      %1977 = vmatprep.subr.mxu0 0.0
      %1978 = vmatpush1.msra.mxu0 0.0
      %1979 = vmatprep.subr.mxu0 0.0
      %1980 = vmatpush1.msra.mxu0 0.0
      %1981 = vmatprep.subr.mxu0 0.0
      %1982 = vmatpush1.msra.mxu0 0.0
      %1983 = vmatprep.subr.mxu0 0.0
      %1984 = vmatpush1.msra.mxu0 0.0
      %1985 = vmatprep.subr.mxu0 0.0
      %1986 = vmatpush1.msra.mxu0 0.0
      %1987 = vmatprep.subr.mxu0 0.0
      %1988 = vmatpush1.msra.mxu0 0.0
      %1989 = vmatprep.subr.mxu0 0.0
      %1990 = vmatpush1.msra.mxu0 0.0
      %1991 = vmatprep.subr.mxu0 0.0
      %1992 = vmatpush1.msra.mxu0 0.0
      %1993 = vmatprep.subr.mxu0 0.0
      %1994 = vmatpush1.msra.mxu0 0.0
      %1995 = vmatprep.subr.mxu0 0.0
      %1996 = vmatpush1.msra.mxu0 0.0
      %1997 = vmatprep.subr.mxu0 0.0
      %1998 = vmatpush1.msra.mxu0 0.0
      %1999 = vmatprep.subr.mxu0 0.0
      %2000 = vmatpush1.msra.mxu0 0.0
      %2001 = vmatprep.subr.mxu0 0.0
      %2002 = vmatpush1.msra.mxu0 0.0
      %2003 = vmatprep.subr.mxu0 0.0
      %2004 = vmatpush1.msra.mxu0 0.0
      %2005 = vmatprep.subr.mxu0 0.0
      %2006 = vmatpush1.msra.mxu0 0.0
      %2007 = vmatprep.subr.mxu0 0.0
      %2008 = vmatpush1.msra.mxu0 0.0
      %2009 = vmatprep.subr.mxu0 0.0
      %2010 = vmatpush1.msra.mxu0 0.0
      %2011 = vmatprep.subr.mxu0 0.0
      %2012 = vmatpush1.msra.mxu0 0.0
      %2013 = vmatprep.subr.mxu0 0.0
      %2014 = vmatpush1.msra.mxu0 0.0
      %2015 = vmatprep.subr.mxu0 0.0
      %2016 = vmatpush1.msra.mxu0 0.0
      %2017 = vmatprep.subr.mxu0 0.0
      %2018 = vmatpush1.msra.mxu0 0.0
      %2019 = vmatprep.mubr.f32.mxu0 0.0
      %2020 = vmatmul.mubr.f32.gmra.mrb[0].mxu0 %v1953
      %v2021 = vpop.f32.mrb[0].mxu0
      %v2022 = vadd.f32 %v927, %v2021
      %v2023 = vpop.f32.mrb[0].mxu0
      %2024 = vdwg.mxu0
      %v2026 = vsel %vm929, %v265, 0
      %2028 = vmatprep.subr.mxu0 0.0
      %2029 = vmatpush1.msra.mxu0 %v598
      %2030 = vmatprep.subr.mxu0 0.0
      %2031 = vmatpush1.msra.mxu0 %v600
      %2032 = vmatprep.subr.mxu0 0.0
      %2033 = vmatpush1.msra.mxu0 0.0
      %2034 = vmatprep.subr.mxu0 0.0
      %2035 = vmatpush1.msra.mxu0 0.0
      %2036 = vmatprep.subr.mxu0 0.0
      %2037 = vmatpush1.msra.mxu0 0.0
      %2038 = vmatprep.subr.mxu0 0.0
      %2039 = vmatpush1.msra.mxu0 0.0
      %2040 = vmatprep.subr.mxu0 0.0
      %2041 = vmatpush1.msra.mxu0 0.0
      %2042 = vmatprep.subr.mxu0 0.0
      %2043 = vmatpush1.msra.mxu0 0.0
      %2044 = vmatprep.subr.mxu0 0.0
      %2045 = vmatpush1.msra.mxu0 0.0
      %2046 = vmatprep.subr.mxu0 0.0
      %2047 = vmatpush1.msra.mxu0 0.0
      %2048 = vmatprep.subr.mxu0 0.0
      %2049 = vmatpush1.msra.mxu0 0.0
      %2050 = vmatprep.subr.mxu0 0.0
      %2051 = vmatpush1.msra.mxu0 0.0
      %2052 = vmatprep.subr.mxu0 0.0
      %2053 = vmatpush1.msra.mxu0 0.0
      %2054 = vmatprep.subr.mxu0 0.0
      %2055 = vmatpush1.msra.mxu0 0.0
      %2056 = vmatprep.subr.mxu0 0.0
      %2057 = vmatpush1.msra.mxu0 0.0
      %2058 = vmatprep.subr.mxu0 0.0
      %2059 = vmatpush1.msra.mxu0 0.0
      %2060 = vmatprep.subr.mxu0 0.0
      %2061 = vmatpush1.msra.mxu0 0.0
      %2062 = vmatprep.subr.mxu0 0.0
      %2063 = vmatpush1.msra.mxu0 0.0
      %2064 = vmatprep.subr.mxu0 0.0
      %2065 = vmatpush1.msra.mxu0 0.0
      %2066 = vmatprep.subr.mxu0 0.0
      %2067 = vmatpush1.msra.mxu0 0.0
      %2068 = vmatprep.subr.mxu0 0.0
      %2069 = vmatpush1.msra.mxu0 0.0
      %2070 = vmatprep.subr.mxu0 0.0
      %2071 = vmatpush1.msra.mxu0 0.0
      %2072 = vmatprep.subr.mxu0 0.0
      %2073 = vmatpush1.msra.mxu0 0.0
      %2074 = vmatprep.subr.mxu0 0.0
      %2075 = vmatpush1.msra.mxu0 0.0
      %2076 = vmatprep.subr.mxu0 0.0
      %2077 = vmatpush1.msra.mxu0 0.0
      %2078 = vmatprep.subr.mxu0 0.0
      %2079 = vmatpush1.msra.mxu0 0.0
      %2080 = vmatprep.subr.mxu0 0.0
      %2081 = vmatpush1.msra.mxu0 0.0
      %2082 = vmatprep.subr.mxu0 0.0
      %2083 = vmatpush1.msra.mxu0 0.0
      %2084 = vmatprep.subr.mxu0 0.0
      %2085 = vmatpush1.msra.mxu0 0.0
      %2086 = vmatprep.subr.mxu0 0.0
      %2087 = vmatpush1.msra.mxu0 0.0
      %2088 = vmatprep.subr.mxu0 0.0
      %2089 = vmatpush1.msra.mxu0 0.0
      %2090 = vmatprep.subr.mxu0 0.0
      %2091 = vmatpush1.msra.mxu0 0.0
      %2092 = vmatprep.mubr.f32.mxu0 0.0
      %2093 = vmatmul.mubr.f32.gmra.mrb[0].mxu0 %v2026
      %v2094 = vpop.f32.mrb[0].mxu0
      %v2095 = vadd.f32 %v927, %v2094
      %v2096 = vpop.f32.mrb[0].mxu0
      %2097 = vdwg.mxu0
      %v2099 = vsel %vm929, %v266, 0
      %2101 = vmatprep.subr.mxu0 0.0
      %2102 = vmatpush1.msra.mxu0 %v604
      %2103 = vmatprep.subr.mxu0 0.0
      %2104 = vmatpush1.msra.mxu0 %v606
      %2105 = vmatprep.subr.mxu0 0.0
      %2106 = vmatpush1.msra.mxu0 0.0
      %2107 = vmatprep.subr.mxu0 0.0
      %2108 = vmatpush1.msra.mxu0 0.0
      %2109 = vmatprep.subr.mxu0 0.0
      %2110 = vmatpush1.msra.mxu0 0.0
      %2111 = vmatprep.subr.mxu0 0.0
      %2112 = vmatpush1.msra.mxu0 0.0
      %2113 = vmatprep.subr.mxu0 0.0
      %2114 = vmatpush1.msra.mxu0 0.0
      %2115 = vmatprep.subr.mxu0 0.0
      %2116 = vmatpush1.msra.mxu0 0.0
      %2117 = vmatprep.subr.mxu0 0.0
      %2118 = vmatpush1.msra.mxu0 0.0
      %2119 = vmatprep.subr.mxu0 0.0
      %2120 = vmatpush1.msra.mxu0 0.0
      %2121 = vmatprep.subr.mxu0 0.0
      %2122 = vmatpush1.msra.mxu0 0.0
      %2123 = vmatprep.subr.mxu0 0.0
      %2124 = vmatpush1.msra.mxu0 0.0
      %2125 = vmatprep.subr.mxu0 0.0
      %2126 = vmatpush1.msra.mxu0 0.0
      %2127 = vmatprep.subr.mxu0 0.0
      %2128 = vmatpush1.msra.mxu0 0.0
      %2129 = vmatprep.subr.mxu0 0.0
      %2130 = vmatpush1.msra.mxu0 0.0
      %2131 = vmatprep.subr.mxu0 0.0
      %2132 = vmatpush1.msra.mxu0 0.0
      %2133 = vmatprep.subr.mxu0 0.0
      %2134 = vmatpush1.msra.mxu0 0.0
      %2135 = vmatprep.subr.mxu0 0.0
      %2136 = vmatpush1.msra.mxu0 0.0
      %2137 = vmatprep.subr.mxu0 0.0
      %2138 = vmatpush1.msra.mxu0 0.0
      %2139 = vmatprep.subr.mxu0 0.0
      %2140 = vmatpush1.msra.mxu0 0.0
      %2141 = vmatprep.subr.mxu0 0.0
      %2142 = vmatpush1.msra.mxu0 0.0
      %2143 = vmatprep.subr.mxu0 0.0
      %2144 = vmatpush1.msra.mxu0 0.0
      %2145 = vmatprep.subr.mxu0 0.0
      %2146 = vmatpush1.msra.mxu0 0.0
      %2147 = vmatprep.subr.mxu0 0.0
      %2148 = vmatpush1.msra.mxu0 0.0
      %2149 = vmatprep.subr.mxu0 0.0
      %2150 = vmatpush1.msra.mxu0 0.0
      %2151 = vmatprep.subr.mxu0 0.0
      %2152 = vmatpush1.msra.mxu0 0.0
      %2153 = vmatprep.subr.mxu0 0.0
      %2154 = vmatpush1.msra.mxu0 0.0
      %2155 = vmatprep.subr.mxu0 0.0
      %2156 = vmatpush1.msra.mxu0 0.0
      %2157 = vmatprep.subr.mxu0 0.0
      %2158 = vmatpush1.msra.mxu0 0.0
      %2159 = vmatprep.subr.mxu0 0.0
      %2160 = vmatpush1.msra.mxu0 0.0
      %2161 = vmatprep.subr.mxu0 0.0
      %2162 = vmatpush1.msra.mxu0 0.0
      %2163 = vmatprep.subr.mxu0 0.0
      %2164 = vmatpush1.msra.mxu0 0.0
      %2165 = vmatprep.mubr.f32.mxu0 0.0
      %2166 = vmatmul.mubr.f32.gmra.mrb[0].mxu0 %v2099
      %v2167 = vpop.f32.mrb[0].mxu0
      %v2168 = vadd.f32 %v927, %v2167
      %v2169 = vpop.f32.mrb[0].mxu0
      %2170 = vdwg.mxu0
      %v2172 = vsel %vm929, %v267, 0
      %2174 = vmatprep.subr.mxu0 0.0
      %2175 = vmatpush1.msra.mxu0 %v610
      %2176 = vmatprep.subr.mxu0 0.0
      %2177 = vmatpush1.msra.mxu0 %v612
      %2178 = vmatprep.subr.mxu0 0.0
      %2179 = vmatpush1.msra.mxu0 0.0
      %2180 = vmatprep.subr.mxu0 0.0
      %2181 = vmatpush1.msra.mxu0 0.0
      %2182 = vmatprep.subr.mxu0 0.0
      %2183 = vmatpush1.msra.mxu0 0.0
      %2184 = vmatprep.subr.mxu0 0.0
      %2185 = vmatpush1.msra.mxu0 0.0
      %2186 = vmatprep.subr.mxu0 0.0
      %2187 = vmatpush1.msra.mxu0 0.0
      %2188 = vmatprep.subr.mxu0 0.0
      %2189 = vmatpush1.msra.mxu0 0.0
      %2190 = vmatprep.subr.mxu0 0.0
      %2191 = vmatpush1.msra.mxu0 0.0
      %2192 = vmatprep.subr.mxu0 0.0
      %2193 = vmatpush1.msra.mxu0 0.0
      %2194 = vmatprep.subr.mxu0 0.0
      %2195 = vmatpush1.msra.mxu0 0.0
      %2196 = vmatprep.subr.mxu0 0.0
      %2197 = vmatpush1.msra.mxu0 0.0
      %2198 = vmatprep.subr.mxu0 0.0
      %2199 = vmatpush1.msra.mxu0 0.0
      %2200 = vmatprep.subr.mxu0 0.0
      %2201 = vmatpush1.msra.mxu0 0.0
      %2202 = vmatprep.subr.mxu0 0.0
      %2203 = vmatpush1.msra.mxu0 0.0
      %2204 = vmatprep.subr.mxu0 0.0
      %2205 = vmatpush1.msra.mxu0 0.0
      %2206 = vmatprep.subr.mxu0 0.0
      %2207 = vmatpush1.msra.mxu0 0.0
      %2208 = vmatprep.subr.mxu0 0.0
      %2209 = vmatpush1.msra.mxu0 0.0
      %2210 = vmatprep.subr.mxu0 0.0
      %2211 = vmatpush1.msra.mxu0 0.0
      %2212 = vmatprep.subr.mxu0 0.0
      %2213 = vmatpush1.msra.mxu0 0.0
      %2214 = vmatprep.subr.mxu0 0.0
      %2215 = vmatpush1.msra.mxu0 0.0
      %2216 = vmatprep.subr.mxu0 0.0
      %2217 = vmatpush1.msra.mxu0 0.0
      %2218 = vmatprep.subr.mxu0 0.0
      %2219 = vmatpush1.msra.mxu0 0.0
      %2220 = vmatprep.subr.mxu0 0.0
      %2221 = vmatpush1.msra.mxu0 0.0
      %2222 = vmatprep.subr.mxu0 0.0
      %2223 = vmatpush1.msra.mxu0 0.0
      %2224 = vmatprep.subr.mxu0 0.0
      %2225 = vmatpush1.msra.mxu0 0.0
      %2226 = vmatprep.subr.mxu0 0.0
      %2227 = vmatpush1.msra.mxu0 0.0
      %2228 = vmatprep.subr.mxu0 0.0
      %2229 = vmatpush1.msra.mxu0 0.0
      %2230 = vmatprep.subr.mxu0 0.0
      %2231 = vmatpush1.msra.mxu0 0.0
      %2232 = vmatprep.subr.mxu0 0.0
      %2233 = vmatpush1.msra.mxu0 0.0
      %2234 = vmatprep.subr.mxu0 0.0
      %2235 = vmatpush1.msra.mxu0 0.0
      %2236 = vmatprep.subr.mxu0 0.0
      %2237 = vmatpush1.msra.mxu0 0.0
      %2238 = vmatprep.mubr.f32.mxu0 0.0
      %2239 = vmatmul.mubr.f32.gmra.mrb[0].mxu0 %v2172
      %v2240 = vpop.f32.mrb[0].mxu0
      %v2241 = vadd.f32 %v927, %v2240
      %v2242 = vpop.f32.mrb[0].mxu0
      %2243 = vdwg.mxu0
      %v2245 = vsel %vm929, %v268, 0
      %2247 = vmatprep.subr.mxu0 0.0
      %2248 = vmatpush1.msra.mxu0 %v616
      %2249 = vmatprep.subr.mxu0 0.0
      %2250 = vmatpush1.msra.mxu0 %v618
      %2251 = vmatprep.subr.mxu0 0.0
      %2252 = vmatpush1.msra.mxu0 0.0
      %2253 = vmatprep.subr.mxu0 0.0
      %2254 = vmatpush1.msra.mxu0 0.0
      %2255 = vmatprep.subr.mxu0 0.0
      %2256 = vmatpush1.msra.mxu0 0.0
      %2257 = vmatprep.subr.mxu0 0.0
      %2258 = vmatpush1.msra.mxu0 0.0
      %2259 = vmatprep.subr.mxu0 0.0
      %2260 = vmatpush1.msra.mxu0 0.0
      %2261 = vmatprep.subr.mxu0 0.0
      %2262 = vmatpush1.msra.mxu0 0.0
      %2263 = vmatprep.subr.mxu0 0.0
      %2264 = vmatpush1.msra.mxu0 0.0
      %2265 = vmatprep.subr.mxu0 0.0
      %2266 = vmatpush1.msra.mxu0 0.0
      %2267 = vmatprep.subr.mxu0 0.0
      %2268 = vmatpush1.msra.mxu0 0.0
      %2269 = vmatprep.subr.mxu0 0.0
      %2270 = vmatpush1.msra.mxu0 0.0
      %2271 = vmatprep.subr.mxu0 0.0
      %2272 = vmatpush1.msra.mxu0 0.0
      %2273 = vmatprep.subr.mxu0 0.0
      %2274 = vmatpush1.msra.mxu0 0.0
      %2275 = vmatprep.subr.mxu0 0.0
      %2276 = vmatpush1.msra.mxu0 0.0
      %2277 = vmatprep.subr.mxu0 0.0
      %2278 = vmatpush1.msra.mxu0 0.0
      %2279 = vmatprep.subr.mxu0 0.0
      %2280 = vmatpush1.msra.mxu0 0.0
      %2281 = vmatprep.subr.mxu0 0.0
      %2282 = vmatpush1.msra.mxu0 0.0
      %2283 = vmatprep.subr.mxu0 0.0
      %2284 = vmatpush1.msra.mxu0 0.0
      %2285 = vmatprep.subr.mxu0 0.0
      %2286 = vmatpush1.msra.mxu0 0.0
      %2287 = vmatprep.subr.mxu0 0.0
      %2288 = vmatpush1.msra.mxu0 0.0
      %2289 = vmatprep.subr.mxu0 0.0
      %2290 = vmatpush1.msra.mxu0 0.0
      %2291 = vmatprep.subr.mxu0 0.0
      %2292 = vmatpush1.msra.mxu0 0.0
      %2293 = vmatprep.subr.mxu0 0.0
      %2294 = vmatpush1.msra.mxu0 0.0
      %2295 = vmatprep.subr.mxu0 0.0
      %2296 = vmatpush1.msra.mxu0 0.0
      %2297 = vmatprep.subr.mxu0 0.0
      %2298 = vmatpush1.msra.mxu0 0.0
      %2299 = vmatprep.subr.mxu0 0.0
      %2300 = vmatpush1.msra.mxu0 0.0
      %2301 = vmatprep.subr.mxu0 0.0
      %2302 = vmatpush1.msra.mxu0 0.0
      %2303 = vmatprep.subr.mxu0 0.0
      %2304 = vmatpush1.msra.mxu0 0.0
      %2305 = vmatprep.subr.mxu0 0.0
      %2306 = vmatpush1.msra.mxu0 0.0
      %2307 = vmatprep.subr.mxu0 0.0
      %2308 = vmatpush1.msra.mxu0 0.0
      %2309 = vmatprep.subr.mxu0 0.0
      %2310 = vmatpush1.msra.mxu0 0.0
      %2311 = vmatprep.mubr.f32.mxu0 0.0
      %2312 = vmatmul.mubr.f32.gmra.mrb[0].mxu0 %v2245
      %v2313 = vpop.f32.mrb[0].mxu0
      %v2314 = vadd.f32 %v927, %v2313
      %v2315 = vpop.f32.mrb[0].mxu0
      %2316 = vdwg.mxu0
      %v2318 = vsel %vm929, %v269, 0
      %2320 = vmatprep.subr.mxu0 0.0
      %2321 = vmatpush1.msra.mxu0 %v622
      %2322 = vmatprep.subr.mxu0 0.0
      %2323 = vmatpush1.msra.mxu0 %v624
      %2324 = vmatprep.subr.mxu0 0.0
      %2325 = vmatpush1.msra.mxu0 0.0
      %2326 = vmatprep.subr.mxu0 0.0
      %2327 = vmatpush1.msra.mxu0 0.0
      %2328 = vmatprep.subr.mxu0 0.0
      %2329 = vmatpush1.msra.mxu0 0.0
      %2330 = vmatprep.subr.mxu0 0.0
      %2331 = vmatpush1.msra.mxu0 0.0
      %2332 = vmatprep.subr.mxu0 0.0
      %2333 = vmatpush1.msra.mxu0 0.0
      %2334 = vmatprep.subr.mxu0 0.0
      %2335 = vmatpush1.msra.mxu0 0.0
      %2336 = vmatprep.subr.mxu0 0.0
      %2337 = vmatpush1.msra.mxu0 0.0
      %2338 = vmatprep.subr.mxu0 0.0
      %2339 = vmatpush1.msra.mxu0 0.0
      %2340 = vmatprep.subr.mxu0 0.0
      %2341 = vmatpush1.msra.mxu0 0.0
      %2342 = vmatprep.subr.mxu0 0.0
      %2343 = vmatpush1.msra.mxu0 0.0
      %2344 = vmatprep.subr.mxu0 0.0
      %2345 = vmatpush1.msra.mxu0 0.0
      %2346 = vmatprep.subr.mxu0 0.0
      %2347 = vmatpush1.msra.mxu0 0.0
      %2348 = vmatprep.subr.mxu0 0.0
      %2349 = vmatpush1.msra.mxu0 0.0
      %2350 = vmatprep.subr.mxu0 0.0
      %2351 = vmatpush1.msra.mxu0 0.0
      %2352 = vmatprep.subr.mxu0 0.0
      %2353 = vmatpush1.msra.mxu0 0.0
      %2354 = vmatprep.subr.mxu0 0.0
      %2355 = vmatpush1.msra.mxu0 0.0
      %2356 = vmatprep.subr.mxu0 0.0
      %2357 = vmatpush1.msra.mxu0 0.0
      %2358 = vmatprep.subr.mxu0 0.0
      %2359 = vmatpush1.msra.mxu0 0.0
      %2360 = vmatprep.subr.mxu0 0.0
      %2361 = vmatpush1.msra.mxu0 0.0
      %2362 = vmatprep.subr.mxu0 0.0
      %2363 = vmatpush1.msra.mxu0 0.0
      %2364 = vmatprep.subr.mxu0 0.0
      %2365 = vmatpush1.msra.mxu0 0.0
      %2366 = vmatprep.subr.mxu0 0.0
      %2367 = vmatpush1.msra.mxu0 0.0
      %2368 = vmatprep.subr.mxu0 0.0
      %2369 = vmatpush1.msra.mxu0 0.0
      %2370 = vmatprep.subr.mxu0 0.0
      %2371 = vmatpush1.msra.mxu0 0.0
      %2372 = vmatprep.subr.mxu0 0.0
      %2373 = vmatpush1.msra.mxu0 0.0
      %2374 = vmatprep.subr.mxu0 0.0
      %2375 = vmatpush1.msra.mxu0 0.0
      %2376 = vmatprep.subr.mxu0 0.0
      %2377 = vmatpush1.msra.mxu0 0.0
      %2378 = vmatprep.subr.mxu0 0.0
      %2379 = vmatpush1.msra.mxu0 0.0
      %2380 = vmatprep.subr.mxu0 0.0
      %2381 = vmatpush1.msra.mxu0 0.0
      %2382 = vmatprep.subr.mxu0 0.0
      %2383 = vmatpush1.msra.mxu0 0.0
      %2384 = vmatprep.mubr.f32.mxu0 0.0
      %2385 = vmatmul.mubr.f32.gmra.mrb[0].mxu0 %v2318
      %v2386 = vpop.f32.mrb[0].mxu0
      %v2387 = vadd.f32 %v927, %v2386
      %v2388 = vpop.f32.mrb[0].mxu0
      %2389 = vdwg.mxu0
      %v2391 = vsel %vm929, %v270, 0
      %2393 = vmatprep.subr.mxu0 0.0
      %2394 = vmatpush1.msra.mxu0 %v628
      %2395 = vmatprep.subr.mxu0 0.0
      %2396 = vmatpush1.msra.mxu0 %v630
      %2397 = vmatprep.subr.mxu0 0.0
      %2398 = vmatpush1.msra.mxu0 0.0
      %2399 = vmatprep.subr.mxu0 0.0
      %2400 = vmatpush1.msra.mxu0 0.0
      %2401 = vmatprep.subr.mxu0 0.0
      %2402 = vmatpush1.msra.mxu0 0.0
      %2403 = vmatprep.subr.mxu0 0.0
      %2404 = vmatpush1.msra.mxu0 0.0
      %2405 = vmatprep.subr.mxu0 0.0
      %2406 = vmatpush1.msra.mxu0 0.0
      %2407 = vmatprep.subr.mxu0 0.0
      %2408 = vmatpush1.msra.mxu0 0.0
      %2409 = vmatprep.subr.mxu0 0.0
      %2410 = vmatpush1.msra.mxu0 0.0
      %2411 = vmatprep.subr.mxu0 0.0
      %2412 = vmatpush1.msra.mxu0 0.0
      %2413 = vmatprep.subr.mxu0 0.0
      %2414 = vmatpush1.msra.mxu0 0.0
      %2415 = vmatprep.subr.mxu0 0.0
      %2416 = vmatpush1.msra.mxu0 0.0
      %2417 = vmatprep.subr.mxu0 0.0
      %2418 = vmatpush1.msra.mxu0 0.0
      %2419 = vmatprep.subr.mxu0 0.0
      %2420 = vmatpush1.msra.mxu0 0.0
      %2421 = vmatprep.subr.mxu0 0.0
      %2422 = vmatpush1.msra.mxu0 0.0
      %2423 = vmatprep.subr.mxu0 0.0
      %2424 = vmatpush1.msra.mxu0 0.0
      %2425 = vmatprep.subr.mxu0 0.0
      %2426 = vmatpush1.msra.mxu0 0.0
      %2427 = vmatprep.subr.mxu0 0.0
      %2428 = vmatpush1.msra.mxu0 0.0
      %2429 = vmatprep.subr.mxu0 0.0
      %2430 = vmatpush1.msra.mxu0 0.0
      %2431 = vmatprep.subr.mxu0 0.0
      %2432 = vmatpush1.msra.mxu0 0.0
      %2433 = vmatprep.subr.mxu0 0.0
      %2434 = vmatpush1.msra.mxu0 0.0
      %2435 = vmatprep.subr.mxu0 0.0
      %2436 = vmatpush1.msra.mxu0 0.0
      %2437 = vmatprep.subr.mxu0 0.0
      %2438 = vmatpush1.msra.mxu0 0.0
      %2439 = vmatprep.subr.mxu0 0.0
      %2440 = vmatpush1.msra.mxu0 0.0
      %2441 = vmatprep.subr.mxu0 0.0
      %2442 = vmatpush1.msra.mxu0 0.0
      %2443 = vmatprep.subr.mxu0 0.0
      %2444 = vmatpush1.msra.mxu0 0.0
      %2445 = vmatprep.subr.mxu0 0.0
      %2446 = vmatpush1.msra.mxu0 0.0
      %2447 = vmatprep.subr.mxu0 0.0
      %2448 = vmatpush1.msra.mxu0 0.0
      %2449 = vmatprep.subr.mxu0 0.0
      %2450 = vmatpush1.msra.mxu0 0.0
      %2451 = vmatprep.subr.mxu0 0.0
      %2452 = vmatpush1.msra.mxu0 0.0
      %2453 = vmatprep.subr.mxu0 0.0
      %2454 = vmatpush1.msra.mxu0 0.0
      %2455 = vmatprep.subr.mxu0 0.0
      %2456 = vmatpush1.msra.mxu0 0.0
      %2457 = vmatprep.mubr.f32.mxu0 0.0
      %2458 = vmatmul.mubr.f32.gmra.mrb[0].mxu0 %v2391
      %v2459 = vpop.f32.mrb[0].mxu0
      %v2460 = vadd.f32 %v927, %v2459
      %v2461 = vpop.f32.mrb[0].mxu0
      %2462 = vdwg.mxu0
      %v2464 = vsel %vm929, %v271, 0
      %2466 = vmatprep.subr.mxu0 0.0
      %2467 = vmatpush1.msra.mxu0 %v634
      %2468 = vmatprep.subr.mxu0 0.0
      %2469 = vmatpush1.msra.mxu0 %v636
      %2470 = vmatprep.subr.mxu0 0.0
      %2471 = vmatpush1.msra.mxu0 0.0
      %2472 = vmatprep.subr.mxu0 0.0
      %2473 = vmatpush1.msra.mxu0 0.0
      %2474 = vmatprep.subr.mxu0 0.0
      %2475 = vmatpush1.msra.mxu0 0.0
      %2476 = vmatprep.subr.mxu0 0.0
      %2477 = vmatpush1.msra.mxu0 0.0
      %2478 = vmatprep.subr.mxu0 0.0
      %2479 = vmatpush1.msra.mxu0 0.0
      %2480 = vmatprep.subr.mxu0 0.0
      %2481 = vmatpush1.msra.mxu0 0.0
      %2482 = vmatprep.subr.mxu0 0.0
      %2483 = vmatpush1.msra.mxu0 0.0
      %2484 = vmatprep.subr.mxu0 0.0
      %2485 = vmatpush1.msra.mxu0 0.0
      %2486 = vmatprep.subr.mxu0 0.0
      %2487 = vmatpush1.msra.mxu0 0.0
      %2488 = vmatprep.subr.mxu0 0.0
      %2489 = vmatpush1.msra.mxu0 0.0
      %2490 = vmatprep.subr.mxu0 0.0
      %2491 = vmatpush1.msra.mxu0 0.0
      %2492 = vmatprep.subr.mxu0 0.0
      %2493 = vmatpush1.msra.mxu0 0.0
      %2494 = vmatprep.subr.mxu0 0.0
      %2495 = vmatpush1.msra.mxu0 0.0
      %2496 = vmatprep.subr.mxu0 0.0
      %2497 = vmatpush1.msra.mxu0 0.0
      %2498 = vmatprep.subr.mxu0 0.0
      %2499 = vmatpush1.msra.mxu0 0.0
      %2500 = vmatprep.subr.mxu0 0.0
      %2501 = vmatpush1.msra.mxu0 0.0
      %2502 = vmatprep.subr.mxu0 0.0
      %2503 = vmatpush1.msra.mxu0 0.0
      %2504 = vmatprep.subr.mxu0 0.0
      %2505 = vmatpush1.msra.mxu0 0.0
      %2506 = vmatprep.subr.mxu0 0.0
      %2507 = vmatpush1.msra.mxu0 0.0
      %2508 = vmatprep.subr.mxu0 0.0
      %2509 = vmatpush1.msra.mxu0 0.0
      %2510 = vmatprep.subr.mxu0 0.0
      %2511 = vmatpush1.msra.mxu0 0.0
      %2512 = vmatprep.subr.mxu0 0.0
      %2513 = vmatpush1.msra.mxu0 0.0
      %2514 = vmatprep.subr.mxu0 0.0
      %2515 = vmatpush1.msra.mxu0 0.0
      %2516 = vmatprep.subr.mxu0 0.0
      %2517 = vmatpush1.msra.mxu0 0.0
      %2518 = vmatprep.subr.mxu0 0.0
      %2519 = vmatpush1.msra.mxu0 0.0
      %2520 = vmatprep.subr.mxu0 0.0
      %2521 = vmatpush1.msra.mxu0 0.0
      %2522 = vmatprep.subr.mxu0 0.0
      %2523 = vmatpush1.msra.mxu0 0.0
      %2524 = vmatprep.subr.mxu0 0.0
      %2525 = vmatpush1.msra.mxu0 0.0
      %2526 = vmatprep.subr.mxu0 0.0
      %2527 = vmatpush1.msra.mxu0 0.0
      %2528 = vmatprep.subr.mxu0 0.0
      %2529 = vmatpush1.msra.mxu0 0.0
      %2530 = vmatprep.mubr.f32.mxu0 0.0
      %2531 = vmatmul.mubr.f32.gmra.mrb[0].mxu0 %v2464
      %v2532 = vpop.f32.mrb[0].mxu0
      %v2533 = vadd.f32 %v927, %v2532
      %v2534 = vpop.f32.mrb[0].mxu0
      %2535 = vdwg.mxu0
      %v2537 = vsel %vm929, %v272, 0
      %2539 = vmatprep.subr.mxu0 0.0
      %2540 = vmatpush1.msra.mxu0 %v640
      %2541 = vmatprep.subr.mxu0 0.0
      %2542 = vmatpush1.msra.mxu0 %v642
      %2543 = vmatprep.subr.mxu0 0.0
      %2544 = vmatpush1.msra.mxu0 0.0
      %2545 = vmatprep.subr.mxu0 0.0
      %2546 = vmatpush1.msra.mxu0 0.0
      %2547 = vmatprep.subr.mxu0 0.0
      %2548 = vmatpush1.msra.mxu0 0.0
      %2549 = vmatprep.subr.mxu0 0.0
      %2550 = vmatpush1.msra.mxu0 0.0
      %2551 = vmatprep.subr.mxu0 0.0
      %2552 = vmatpush1.msra.mxu0 0.0
      %2553 = vmatprep.subr.mxu0 0.0
      %2554 = vmatpush1.msra.mxu0 0.0
      %2555 = vmatprep.subr.mxu0 0.0
      %2556 = vmatpush1.msra.mxu0 0.0
      %2557 = vmatprep.subr.mxu0 0.0
      %2558 = vmatpush1.msra.mxu0 0.0
      %2559 = vmatprep.subr.mxu0 0.0
      %2560 = vmatpush1.msra.mxu0 0.0
      %2561 = vmatprep.subr.mxu0 0.0
      %2562 = vmatpush1.msra.mxu0 0.0
      %2563 = vmatprep.subr.mxu0 0.0
      %2564 = vmatpush1.msra.mxu0 0.0
      %2565 = vmatprep.subr.mxu0 0.0
      %2566 = vmatpush1.msra.mxu0 0.0
      %2567 = vmatprep.subr.mxu0 0.0
      %2568 = vmatpush1.msra.mxu0 0.0
      %2569 = vmatprep.subr.mxu0 0.0
      %2570 = vmatpush1.msra.mxu0 0.0
      %2571 = vmatprep.subr.mxu0 0.0
      %2572 = vmatpush1.msra.mxu0 0.0
      %2573 = vmatprep.subr.mxu0 0.0
      %2574 = vmatpush1.msra.mxu0 0.0
      %2575 = vmatprep.subr.mxu0 0.0
      %2576 = vmatpush1.msra.mxu0 0.0
      %2577 = vmatprep.subr.mxu0 0.0
      %2578 = vmatpush1.msra.mxu0 0.0
      %2579 = vmatprep.subr.mxu0 0.0
      %2580 = vmatpush1.msra.mxu0 0.0
      %2581 = vmatprep.subr.mxu0 0.0
      %2582 = vmatpush1.msra.mxu0 0.0
      %2583 = vmatprep.subr.mxu0 0.0
      %2584 = vmatpush1.msra.mxu0 0.0
      %2585 = vmatprep.subr.mxu0 0.0
      %2586 = vmatpush1.msra.mxu0 0.0
      %2587 = vmatprep.subr.mxu0 0.0
      %2588 = vmatpush1.msra.mxu0 0.0
      %2589 = vmatprep.subr.mxu0 0.0
      %2590 = vmatpush1.msra.mxu0 0.0
      %2591 = vmatprep.subr.mxu0 0.0
      %2592 = vmatpush1.msra.mxu0 0.0
      %2593 = vmatprep.subr.mxu0 0.0
      %2594 = vmatpush1.msra.mxu0 0.0
      %2595 = vmatprep.subr.mxu0 0.0
      %2596 = vmatpush1.msra.mxu0 0.0
      %2597 = vmatprep.subr.mxu0 0.0
      %2598 = vmatpush1.msra.mxu0 0.0
      %2599 = vmatprep.subr.mxu0 0.0
      %2600 = vmatpush1.msra.mxu0 0.0
      %2601 = vmatprep.subr.mxu0 0.0
      %2602 = vmatpush1.msra.mxu0 0.0
      %2603 = vmatprep.mubr.f32.mxu0 0.0
      %2604 = vmatmul.mubr.f32.gmra.mrb[0].mxu0 %v2537
      %v2605 = vpop.f32.mrb[0].mxu0
      %v2606 = vadd.f32 %v927, %v2605
      %v2607 = vpop.f32.mrb[0].mxu0
      %2608 = vdwg.mxu0
      %v2610 = vsel %vm929, %v273, 0
      %2612 = vmatprep.subr.mxu0 0.0
      %2613 = vmatpush1.msra.mxu0 %v646
      %2614 = vmatprep.subr.mxu0 0.0
      %2615 = vmatpush1.msra.mxu0 %v648
      %2616 = vmatprep.subr.mxu0 0.0
      %2617 = vmatpush1.msra.mxu0 0.0
      %2618 = vmatprep.subr.mxu0 0.0
      %2619 = vmatpush1.msra.mxu0 0.0
      %2620 = vmatprep.subr.mxu0 0.0
      %2621 = vmatpush1.msra.mxu0 0.0
      %2622 = vmatprep.subr.mxu0 0.0
      %2623 = vmatpush1.msra.mxu0 0.0
      %2624 = vmatprep.subr.mxu0 0.0
      %2625 = vmatpush1.msra.mxu0 0.0
      %2626 = vmatprep.subr.mxu0 0.0
      %2627 = vmatpush1.msra.mxu0 0.0
      %2628 = vmatprep.subr.mxu0 0.0
      %2629 = vmatpush1.msra.mxu0 0.0
      %2630 = vmatprep.subr.mxu0 0.0
      %2631 = vmatpush1.msra.mxu0 0.0
      %2632 = vmatprep.subr.mxu0 0.0
      %2633 = vmatpush1.msra.mxu0 0.0
      %2634 = vmatprep.subr.mxu0 0.0
      %2635 = vmatpush1.msra.mxu0 0.0
      %2636 = vmatprep.subr.mxu0 0.0
      %2637 = vmatpush1.msra.mxu0 0.0
      %2638 = vmatprep.subr.mxu0 0.0
      %2639 = vmatpush1.msra.mxu0 0.0
      %2640 = vmatprep.subr.mxu0 0.0
      %2641 = vmatpush1.msra.mxu0 0.0
      %2642 = vmatprep.subr.mxu0 0.0
      %2643 = vmatpush1.msra.mxu0 0.0
      %2644 = vmatprep.subr.mxu0 0.0
      %2645 = vmatpush1.msra.mxu0 0.0
      %2646 = vmatprep.subr.mxu0 0.0
      %2647 = vmatpush1.msra.mxu0 0.0
      %2648 = vmatprep.subr.mxu0 0.0
      %2649 = vmatpush1.msra.mxu0 0.0
      %2650 = vmatprep.subr.mxu0 0.0
      %2651 = vmatpush1.msra.mxu0 0.0
      %2652 = vmatprep.subr.mxu0 0.0
      %2653 = vmatpush1.msra.mxu0 0.0
      %2654 = vmatprep.subr.mxu0 0.0
      %2655 = vmatpush1.msra.mxu0 0.0
      %2656 = vmatprep.subr.mxu0 0.0
      %2657 = vmatpush1.msra.mxu0 0.0
      %2658 = vmatprep.subr.mxu0 0.0
      %2659 = vmatpush1.msra.mxu0 0.0
      %2660 = vmatprep.subr.mxu0 0.0
      %2661 = vmatpush1.msra.mxu0 0.0
      %2662 = vmatprep.subr.mxu0 0.0
      %2663 = vmatpush1.msra.mxu0 0.0
      %2664 = vmatprep.subr.mxu0 0.0
      %2665 = vmatpush1.msra.mxu0 0.0
      %2666 = vmatprep.subr.mxu0 0.0
      %2667 = vmatpush1.msra.mxu0 0.0
      %2668 = vmatprep.subr.mxu0 0.0
      %2669 = vmatpush1.msra.mxu0 0.0
      %2670 = vmatprep.subr.mxu0 0.0
      %2671 = vmatpush1.msra.mxu0 0.0
      %2672 = vmatprep.subr.mxu0 0.0
      %2673 = vmatpush1.msra.mxu0 0.0
      %2674 = vmatprep.subr.mxu0 0.0
      %2675 = vmatpush1.msra.mxu0 0.0
      %2676 = vmatprep.mubr.f32.mxu0 0.0
      %2677 = vmatmul.mubr.f32.gmra.mrb[0].mxu0 %v2610
      %v2678 = vpop.f32.mrb[0].mxu0
      %v2679 = vadd.f32 %v927, %v2678
      %v2680 = vpop.f32.mrb[0].mxu0
      %2681 = vdwg.mxu0
      %v2683 = vsel %vm929, %v274, 0
      %2685 = vmatprep.subr.mxu0 0.0
      %2686 = vmatpush1.msra.mxu0 %v652
      %2687 = vmatprep.subr.mxu0 0.0
      %2688 = vmatpush1.msra.mxu0 %v654
      %2689 = vmatprep.subr.mxu0 0.0
      %2690 = vmatpush1.msra.mxu0 0.0
      %2691 = vmatprep.subr.mxu0 0.0
      %2692 = vmatpush1.msra.mxu0 0.0
      %2693 = vmatprep.subr.mxu0 0.0
      %2694 = vmatpush1.msra.mxu0 0.0
      %2695 = vmatprep.subr.mxu0 0.0
      %2696 = vmatpush1.msra.mxu0 0.0
      %2697 = vmatprep.subr.mxu0 0.0
      %2698 = vmatpush1.msra.mxu0 0.0
      %2699 = vmatprep.subr.mxu0 0.0
      %2700 = vmatpush1.msra.mxu0 0.0
      %2701 = vmatprep.subr.mxu0 0.0
      %2702 = vmatpush1.msra.mxu0 0.0
      %2703 = vmatprep.subr.mxu0 0.0
      %2704 = vmatpush1.msra.mxu0 0.0
      %2705 = vmatprep.subr.mxu0 0.0
      %2706 = vmatpush1.msra.mxu0 0.0
      %2707 = vmatprep.subr.mxu0 0.0
      %2708 = vmatpush1.msra.mxu0 0.0
      %2709 = vmatprep.subr.mxu0 0.0
      %2710 = vmatpush1.msra.mxu0 0.0
      %2711 = vmatprep.subr.mxu0 0.0
      %2712 = vmatpush1.msra.mxu0 0.0
      %2713 = vmatprep.subr.mxu0 0.0
      %2714 = vmatpush1.msra.mxu0 0.0
      %2715 = vmatprep.subr.mxu0 0.0
      %2716 = vmatpush1.msra.mxu0 0.0
      %2717 = vmatprep.subr.mxu0 0.0
      %2718 = vmatpush1.msra.mxu0 0.0
      %2719 = vmatprep.subr.mxu0 0.0
      %2720 = vmatpush1.msra.mxu0 0.0
      %2721 = vmatprep.subr.mxu0 0.0
      %2722 = vmatpush1.msra.mxu0 0.0
      %2723 = vmatprep.subr.mxu0 0.0
      %2724 = vmatpush1.msra.mxu0 0.0
      %2725 = vmatprep.subr.mxu0 0.0
      %2726 = vmatpush1.msra.mxu0 0.0
      %2727 = vmatprep.subr.mxu0 0.0
      %2728 = vmatpush1.msra.mxu0 0.0
      %2729 = vmatprep.subr.mxu0 0.0
      %2730 = vmatpush1.msra.mxu0 0.0
      %2731 = vmatprep.subr.mxu0 0.0
      %2732 = vmatpush1.msra.mxu0 0.0
      %2733 = vmatprep.subr.mxu0 0.0
      %2734 = vmatpush1.msra.mxu0 0.0
      %2735 = vmatprep.subr.mxu0 0.0
      %2736 = vmatpush1.msra.mxu0 0.0
      %2737 = vmatprep.subr.mxu0 0.0
      %2738 = vmatpush1.msra.mxu0 0.0
      %2739 = vmatprep.subr.mxu0 0.0
      %2740 = vmatpush1.msra.mxu0 0.0
      %2741 = vmatprep.subr.mxu0 0.0
      %2742 = vmatpush1.msra.mxu0 0.0
      %2743 = vmatprep.subr.mxu0 0.0
      %2744 = vmatpush1.msra.mxu0 0.0
      %2745 = vmatprep.subr.mxu0 0.0
      %2746 = vmatpush1.msra.mxu0 0.0
      %2747 = vmatprep.subr.mxu0 0.0
      %2748 = vmatpush1.msra.mxu0 0.0
      %2749 = vmatprep.mubr.f32.mxu0 0.0
      %2750 = vmatmul.mubr.f32.gmra.mrb[0].mxu0 %v2683
      %v2751 = vpop.f32.mrb[0].mxu0
      %v2752 = vadd.f32 %v927, %v2751
      %v2753 = vpop.f32.mrb[0].mxu0
      %2754 = vdwg.mxu0
      %v2756 = vsel %vm929, %v275, 0
      %2758 = vmatprep.subr.mxu0 0.0
      %2759 = vmatpush1.msra.mxu0 %v658
      %2760 = vmatprep.subr.mxu0 0.0
      %2761 = vmatpush1.msra.mxu0 %v660
      %2762 = vmatprep.subr.mxu0 0.0
      %2763 = vmatpush1.msra.mxu0 0.0
      %2764 = vmatprep.subr.mxu0 0.0
      %2765 = vmatpush1.msra.mxu0 0.0
      %2766 = vmatprep.subr.mxu0 0.0
      %2767 = vmatpush1.msra.mxu0 0.0
      %2768 = vmatprep.subr.mxu0 0.0
      %2769 = vmatpush1.msra.mxu0 0.0
      %2770 = vmatprep.subr.mxu0 0.0
      %2771 = vmatpush1.msra.mxu0 0.0
      %2772 = vmatprep.subr.mxu0 0.0
      %2773 = vmatpush1.msra.mxu0 0.0
      %2774 = vmatprep.subr.mxu0 0.0
      %2775 = vmatpush1.msra.mxu0 0.0
      %2776 = vmatprep.subr.mxu0 0.0
      %2777 = vmatpush1.msra.mxu0 0.0
      %2778 = vmatprep.subr.mxu0 0.0
      %2779 = vmatpush1.msra.mxu0 0.0
      %2780 = vmatprep.subr.mxu0 0.0
      %2781 = vmatpush1.msra.mxu0 0.0
      %2782 = vmatprep.subr.mxu0 0.0
      %2783 = vmatpush1.msra.mxu0 0.0
      %2784 = vmatprep.subr.mxu0 0.0
      %2785 = vmatpush1.msra.mxu0 0.0
      %2786 = vmatprep.subr.mxu0 0.0
      %2787 = vmatpush1.msra.mxu0 0.0
      %2788 = vmatprep.subr.mxu0 0.0
      %2789 = vmatpush1.msra.mxu0 0.0
      %2790 = vmatprep.subr.mxu0 0.0
      %2791 = vmatpush1.msra.mxu0 0.0
      %2792 = vmatprep.subr.mxu0 0.0
      %2793 = vmatpush1.msra.mxu0 0.0
      %2794 = vmatprep.subr.mxu0 0.0
      %2795 = vmatpush1.msra.mxu0 0.0
      %2796 = vmatprep.subr.mxu0 0.0
      %2797 = vmatpush1.msra.mxu0 0.0
      %2798 = vmatprep.subr.mxu0 0.0
      %2799 = vmatpush1.msra.mxu0 0.0
      %2800 = vmatprep.subr.mxu0 0.0
      %2801 = vmatpush1.msra.mxu0 0.0
      %2802 = vmatprep.subr.mxu0 0.0
      %2803 = vmatpush1.msra.mxu0 0.0
      %2804 = vmatprep.subr.mxu0 0.0
      %2805 = vmatpush1.msra.mxu0 0.0
      %2806 = vmatprep.subr.mxu0 0.0
      %2807 = vmatpush1.msra.mxu0 0.0
      %2808 = vmatprep.subr.mxu0 0.0
      %2809 = vmatpush1.msra.mxu0 0.0
      %2810 = vmatprep.subr.mxu0 0.0
      %2811 = vmatpush1.msra.mxu0 0.0
      %2812 = vmatprep.subr.mxu0 0.0
      %2813 = vmatpush1.msra.mxu0 0.0
      %2814 = vmatprep.subr.mxu0 0.0
      %2815 = vmatpush1.msra.mxu0 0.0
      %2816 = vmatprep.subr.mxu0 0.0
      %2817 = vmatpush1.msra.mxu0 0.0
      %2818 = vmatprep.subr.mxu0 0.0
      %2819 = vmatpush1.msra.mxu0 0.0
      %2820 = vmatprep.subr.mxu0 0.0
      %2821 = vmatpush1.msra.mxu0 0.0
      %2822 = vmatprep.mubr.f32.mxu0 0.0
      %2823 = vmatmul.mubr.f32.gmra.mrb[0].mxu0 %v2756
      %v2824 = vpop.f32.mrb[0].mxu0
      %v2825 = vadd.f32 %v927, %v2824
      %v2826 = vpop.f32.mrb[0].mxu0
      %2827 = vdwg.mxu0
      %v2829 = vsel %vm929, %v276, 0
      %2831 = vmatprep.subr.mxu0 0.0
      %2832 = vmatpush1.msra.mxu0 %v664
      %2833 = vmatprep.subr.mxu0 0.0
      %2834 = vmatpush1.msra.mxu0 %v666
      %2835 = vmatprep.subr.mxu0 0.0
      %2836 = vmatpush1.msra.mxu0 0.0
      %2837 = vmatprep.subr.mxu0 0.0
      %2838 = vmatpush1.msra.mxu0 0.0
      %2839 = vmatprep.subr.mxu0 0.0
      %2840 = vmatpush1.msra.mxu0 0.0
      %2841 = vmatprep.subr.mxu0 0.0
      %2842 = vmatpush1.msra.mxu0 0.0
      %2843 = vmatprep.subr.mxu0 0.0
      %2844 = vmatpush1.msra.mxu0 0.0
      %2845 = vmatprep.subr.mxu0 0.0
      %2846 = vmatpush1.msra.mxu0 0.0
      %2847 = vmatprep.subr.mxu0 0.0
      %2848 = vmatpush1.msra.mxu0 0.0
      %2849 = vmatprep.subr.mxu0 0.0
      %2850 = vmatpush1.msra.mxu0 0.0
      %2851 = vmatprep.subr.mxu0 0.0
      %2852 = vmatpush1.msra.mxu0 0.0
      %2853 = vmatprep.subr.mxu0 0.0
      %2854 = vmatpush1.msra.mxu0 0.0
      %2855 = vmatprep.subr.mxu0 0.0
      %2856 = vmatpush1.msra.mxu0 0.0
      %2857 = vmatprep.subr.mxu0 0.0
      %2858 = vmatpush1.msra.mxu0 0.0
      %2859 = vmatprep.subr.mxu0 0.0
      %2860 = vmatpush1.msra.mxu0 0.0
      %2861 = vmatprep.subr.mxu0 0.0
      %2862 = vmatpush1.msra.mxu0 0.0
      %2863 = vmatprep.subr.mxu0 0.0
      %2864 = vmatpush1.msra.mxu0 0.0
      %2865 = vmatprep.subr.mxu0 0.0
      %2866 = vmatpush1.msra.mxu0 0.0
      %2867 = vmatprep.subr.mxu0 0.0
      %2868 = vmatpush1.msra.mxu0 0.0
      %2869 = vmatprep.subr.mxu0 0.0
      %2870 = vmatpush1.msra.mxu0 0.0
      %2871 = vmatprep.subr.mxu0 0.0
      %2872 = vmatpush1.msra.mxu0 0.0
      %2873 = vmatprep.subr.mxu0 0.0
      %2874 = vmatpush1.msra.mxu0 0.0
      %2875 = vmatprep.subr.mxu0 0.0
      %2876 = vmatpush1.msra.mxu0 0.0
      %2877 = vmatprep.subr.mxu0 0.0
      %2878 = vmatpush1.msra.mxu0 0.0
      %2879 = vmatprep.subr.mxu0 0.0
      %2880 = vmatpush1.msra.mxu0 0.0
      %2881 = vmatprep.subr.mxu0 0.0
      %2882 = vmatpush1.msra.mxu0 0.0
      %2883 = vmatprep.subr.mxu0 0.0
      %2884 = vmatpush1.msra.mxu0 0.0
      %2885 = vmatprep.subr.mxu0 0.0
      %2886 = vmatpush1.msra.mxu0 0.0
      %2887 = vmatprep.subr.mxu0 0.0
      %2888 = vmatpush1.msra.mxu0 0.0
      %2889 = vmatprep.subr.mxu0 0.0
      %2890 = vmatpush1.msra.mxu0 0.0
      %2891 = vmatprep.subr.mxu0 0.0
      %2892 = vmatpush1.msra.mxu0 0.0
      %2893 = vmatprep.subr.mxu0 0.0
      %2894 = vmatpush1.msra.mxu0 0.0
      %2895 = vmatprep.mubr.f32.mxu0 0.0
      %2896 = vmatmul.mubr.f32.gmra.mrb[0].mxu0 %v2829
      %v2897 = vpop.f32.mrb[0].mxu0
      %v2898 = vadd.f32 %v927, %v2897
      %v2899 = vpop.f32.mrb[0].mxu0
      %2900 = vdwg.mxu0
      %v2902 = vsel %vm929, %v277, 0
      %2904 = vmatprep.subr.mxu0 0.0
      %2905 = vmatpush1.msra.mxu0 %v670
      %2906 = vmatprep.subr.mxu0 0.0
      %2907 = vmatpush1.msra.mxu0 %v672
      %2908 = vmatprep.subr.mxu0 0.0
      %2909 = vmatpush1.msra.mxu0 0.0
      %2910 = vmatprep.subr.mxu0 0.0
      %2911 = vmatpush1.msra.mxu0 0.0
      %2912 = vmatprep.subr.mxu0 0.0
      %2913 = vmatpush1.msra.mxu0 0.0
      %2914 = vmatprep.subr.mxu0 0.0
      %2915 = vmatpush1.msra.mxu0 0.0
      %2916 = vmatprep.subr.mxu0 0.0
      %2917 = vmatpush1.msra.mxu0 0.0
      %2918 = vmatprep.subr.mxu0 0.0
      %2919 = vmatpush1.msra.mxu0 0.0
      %2920 = vmatprep.subr.mxu0 0.0
      %2921 = vmatpush1.msra.mxu0 0.0
      %2922 = vmatprep.subr.mxu0 0.0
      %2923 = vmatpush1.msra.mxu0 0.0
      %2924 = vmatprep.subr.mxu0 0.0
      %2925 = vmatpush1.msra.mxu0 0.0
      %2926 = vmatprep.subr.mxu0 0.0
      %2927 = vmatpush1.msra.mxu0 0.0
      %2928 = vmatprep.subr.mxu0 0.0
      %2929 = vmatpush1.msra.mxu0 0.0
      %2930 = vmatprep.subr.mxu0 0.0
      %2931 = vmatpush1.msra.mxu0 0.0
      %2932 = vmatprep.subr.mxu0 0.0
      %2933 = vmatpush1.msra.mxu0 0.0
      %2934 = vmatprep.subr.mxu0 0.0
      %2935 = vmatpush1.msra.mxu0 0.0
      %2936 = vmatprep.subr.mxu0 0.0
      %2937 = vmatpush1.msra.mxu0 0.0
      %2938 = vmatprep.subr.mxu0 0.0
      %2939 = vmatpush1.msra.mxu0 0.0
      %2940 = vmatprep.subr.mxu0 0.0
      %2941 = vmatpush1.msra.mxu0 0.0
      %2942 = vmatprep.subr.mxu0 0.0
      %2943 = vmatpush1.msra.mxu0 0.0
      %2944 = vmatprep.subr.mxu0 0.0
      %2945 = vmatpush1.msra.mxu0 0.0
      %2946 = vmatprep.subr.mxu0 0.0
      %2947 = vmatpush1.msra.mxu0 0.0
      %2948 = vmatprep.subr.mxu0 0.0
      %2949 = vmatpush1.msra.mxu0 0.0
      %2950 = vmatprep.subr.mxu0 0.0
      %2951 = vmatpush1.msra.mxu0 0.0
      %2952 = vmatprep.subr.mxu0 0.0
      %2953 = vmatpush1.msra.mxu0 0.0
      %2954 = vmatprep.subr.mxu0 0.0
      %2955 = vmatpush1.msra.mxu0 0.0
      %2956 = vmatprep.subr.mxu0 0.0
      %2957 = vmatpush1.msra.mxu0 0.0
      %2958 = vmatprep.subr.mxu0 0.0
      %2959 = vmatpush1.msra.mxu0 0.0
      %2960 = vmatprep.subr.mxu0 0.0
      %2961 = vmatpush1.msra.mxu0 0.0
      %2962 = vmatprep.subr.mxu0 0.0
      %2963 = vmatpush1.msra.mxu0 0.0
      %2964 = vmatprep.subr.mxu0 0.0
      %2965 = vmatpush1.msra.mxu0 0.0
      %2966 = vmatprep.subr.mxu0 0.0
      %2967 = vmatpush1.msra.mxu0 0.0
      %2968 = vmatprep.mubr.f32.mxu0 0.0
      %2969 = vmatmul.mubr.f32.gmra.mrb[0].mxu0 %v2902
      %v2970 = vpop.f32.mrb[0].mxu0
      %v2971 = vadd.f32 %v927, %v2970
      %v2972 = vpop.f32.mrb[0].mxu0
      %2973 = vdwg.mxu0
      %v2975 = vsel %vm929, %v278, 0
      %2977 = vmatprep.subr.mxu0 0.0
      %2978 = vmatpush1.msra.mxu0 %v676
      %2979 = vmatprep.subr.mxu0 0.0
      %2980 = vmatpush1.msra.mxu0 %v678
      %2981 = vmatprep.subr.mxu0 0.0
      %2982 = vmatpush1.msra.mxu0 0.0
      %2983 = vmatprep.subr.mxu0 0.0
      %2984 = vmatpush1.msra.mxu0 0.0
      %2985 = vmatprep.subr.mxu0 0.0
      %2986 = vmatpush1.msra.mxu0 0.0
      %2987 = vmatprep.subr.mxu0 0.0
      %2988 = vmatpush1.msra.mxu0 0.0
      %2989 = vmatprep.subr.mxu0 0.0
      %2990 = vmatpush1.msra.mxu0 0.0
      %2991 = vmatprep.subr.mxu0 0.0
      %2992 = vmatpush1.msra.mxu0 0.0
      %2993 = vmatprep.subr.mxu0 0.0
      %2994 = vmatpush1.msra.mxu0 0.0
      %2995 = vmatprep.subr.mxu0 0.0
      %2996 = vmatpush1.msra.mxu0 0.0
      %2997 = vmatprep.subr.mxu0 0.0
      %2998 = vmatpush1.msra.mxu0 0.0
      %2999 = vmatprep.subr.mxu0 0.0
      %3000 = vmatpush1.msra.mxu0 0.0
      %3001 = vmatprep.subr.mxu0 0.0
      %3002 = vmatpush1.msra.mxu0 0.0
      %3003 = vmatprep.subr.mxu0 0.0
      %3004 = vmatpush1.msra.mxu0 0.0
      %3005 = vmatprep.subr.mxu0 0.0
      %3006 = vmatpush1.msra.mxu0 0.0
      %3007 = vmatprep.subr.mxu0 0.0
      %3008 = vmatpush1.msra.mxu0 0.0
      %3009 = vmatprep.subr.mxu0 0.0
      %3010 = vmatpush1.msra.mxu0 0.0
      %3011 = vmatprep.subr.mxu0 0.0
      %3012 = vmatpush1.msra.mxu0 0.0
      %3013 = vmatprep.subr.mxu0 0.0
      %3014 = vmatpush1.msra.mxu0 0.0
      %3015 = vmatprep.subr.mxu0 0.0
      %3016 = vmatpush1.msra.mxu0 0.0
      %3017 = vmatprep.subr.mxu0 0.0
      %3018 = vmatpush1.msra.mxu0 0.0
      %3019 = vmatprep.subr.mxu0 0.0
      %3020 = vmatpush1.msra.mxu0 0.0
      %3021 = vmatprep.subr.mxu0 0.0
      %3022 = vmatpush1.msra.mxu0 0.0
      %3023 = vmatprep.subr.mxu0 0.0
      %3024 = vmatpush1.msra.mxu0 0.0
      %3025 = vmatprep.subr.mxu0 0.0
      %3026 = vmatpush1.msra.mxu0 0.0
      %3027 = vmatprep.subr.mxu0 0.0
      %3028 = vmatpush1.msra.mxu0 0.0
      %3029 = vmatprep.subr.mxu0 0.0
      %3030 = vmatpush1.msra.mxu0 0.0
      %3031 = vmatprep.subr.mxu0 0.0
      %3032 = vmatpush1.msra.mxu0 0.0
      %3033 = vmatprep.subr.mxu0 0.0
      %3034 = vmatpush1.msra.mxu0 0.0
      %3035 = vmatprep.subr.mxu0 0.0
      %3036 = vmatpush1.msra.mxu0 0.0
      %3037 = vmatprep.subr.mxu0 0.0
      %3038 = vmatpush1.msra.mxu0 0.0
      %3039 = vmatprep.subr.mxu0 0.0
      %3040 = vmatpush1.msra.mxu0 0.0
      %3041 = vmatprep.mubr.f32.mxu0 0.0
      %3042 = vmatmul.mubr.f32.gmra.mrb[0].mxu0 %v2975
      %v3043 = vpop.f32.mrb[0].mxu0
      %v3044 = vadd.f32 %v927, %v3043
      %v3045 = vpop.f32.mrb[0].mxu0
      %3046 = vdwg.mxu0
      %v3048 = vsel %vm929, %v279, 0
      %3050 = vmatprep.subr.mxu0 0.0
      %3051 = vmatpush1.msra.mxu0 %v682
      %3052 = vmatprep.subr.mxu0 0.0
      %3053 = vmatpush1.msra.mxu0 %v684
      %3054 = vmatprep.subr.mxu0 0.0
      %3055 = vmatpush1.msra.mxu0 0.0
      %3056 = vmatprep.subr.mxu0 0.0
      %3057 = vmatpush1.msra.mxu0 0.0
      %3058 = vmatprep.subr.mxu0 0.0
      %3059 = vmatpush1.msra.mxu0 0.0
      %3060 = vmatprep.subr.mxu0 0.0
      %3061 = vmatpush1.msra.mxu0 0.0
      %3062 = vmatprep.subr.mxu0 0.0
      %3063 = vmatpush1.msra.mxu0 0.0
      %3064 = vmatprep.subr.mxu0 0.0
      %3065 = vmatpush1.msra.mxu0 0.0
      %3066 = vmatprep.subr.mxu0 0.0
      %3067 = vmatpush1.msra.mxu0 0.0
      %3068 = vmatprep.subr.mxu0 0.0
      %3069 = vmatpush1.msra.mxu0 0.0
      %3070 = vmatprep.subr.mxu0 0.0
      %3071 = vmatpush1.msra.mxu0 0.0
      %3072 = vmatprep.subr.mxu0 0.0
      %3073 = vmatpush1.msra.mxu0 0.0
      %3074 = vmatprep.subr.mxu0 0.0
      %3075 = vmatpush1.msra.mxu0 0.0
      %3076 = vmatprep.subr.mxu0 0.0
      %3077 = vmatpush1.msra.mxu0 0.0
      %3078 = vmatprep.subr.mxu0 0.0
      %3079 = vmatpush1.msra.mxu0 0.0
      %3080 = vmatprep.subr.mxu0 0.0
      %3081 = vmatpush1.msra.mxu0 0.0
      %3082 = vmatprep.subr.mxu0 0.0
      %3083 = vmatpush1.msra.mxu0 0.0
      %3084 = vmatprep.subr.mxu0 0.0
      %3085 = vmatpush1.msra.mxu0 0.0
      %3086 = vmatprep.subr.mxu0 0.0
      %3087 = vmatpush1.msra.mxu0 0.0
      %3088 = vmatprep.subr.mxu0 0.0
      %3089 = vmatpush1.msra.mxu0 0.0
      %3090 = vmatprep.subr.mxu0 0.0
      %3091 = vmatpush1.msra.mxu0 0.0
      %3092 = vmatprep.subr.mxu0 0.0
      %3093 = vmatpush1.msra.mxu0 0.0
      %3094 = vmatprep.subr.mxu0 0.0
      %3095 = vmatpush1.msra.mxu0 0.0
      %3096 = vmatprep.subr.mxu0 0.0
      %3097 = vmatpush1.msra.mxu0 0.0
      %3098 = vmatprep.subr.mxu0 0.0
      %3099 = vmatpush1.msra.mxu0 0.0
      %3100 = vmatprep.subr.mxu0 0.0
      %3101 = vmatpush1.msra.mxu0 0.0
      %3102 = vmatprep.subr.mxu0 0.0
      %3103 = vmatpush1.msra.mxu0 0.0
      %3104 = vmatprep.subr.mxu0 0.0
      %3105 = vmatpush1.msra.mxu0 0.0
      %3106 = vmatprep.subr.mxu0 0.0
      %3107 = vmatpush1.msra.mxu0 0.0
      %3108 = vmatprep.subr.mxu0 0.0
      %3109 = vmatpush1.msra.mxu0 0.0
      %3110 = vmatprep.subr.mxu0 0.0
      %3111 = vmatpush1.msra.mxu0 0.0
      %3112 = vmatprep.subr.mxu0 0.0
      %3113 = vmatpush1.msra.mxu0 0.0
      %3114 = vmatprep.mubr.f32.mxu0 0.0
      %3115 = vmatmul.mubr.f32.gmra.mrb[0].mxu0 %v3048
      %v3116 = vpop.f32.mrb[0].mxu0
      %v3117 = vadd.f32 %v927, %v3116
      %v3118 = vpop.f32.mrb[0].mxu0
      %3119 = vdwg.mxu0
      %v3121 = vsel %vm929, %v280, 0
      %3123 = vmatprep.subr.mxu0 0.0
      %3124 = vmatpush1.msra.mxu0 %v688
      %3125 = vmatprep.subr.mxu0 0.0
      %3126 = vmatpush1.msra.mxu0 %v690
      %3127 = vmatprep.subr.mxu0 0.0
      %3128 = vmatpush1.msra.mxu0 0.0
      %3129 = vmatprep.subr.mxu0 0.0
      %3130 = vmatpush1.msra.mxu0 0.0
      %3131 = vmatprep.subr.mxu0 0.0
      %3132 = vmatpush1.msra.mxu0 0.0
      %3133 = vmatprep.subr.mxu0 0.0
      %3134 = vmatpush1.msra.mxu0 0.0
      %3135 = vmatprep.subr.mxu0 0.0
      %3136 = vmatpush1.msra.mxu0 0.0
      %3137 = vmatprep.subr.mxu0 0.0
      %3138 = vmatpush1.msra.mxu0 0.0
      %3139 = vmatprep.subr.mxu0 0.0
      %3140 = vmatpush1.msra.mxu0 0.0
      %3141 = vmatprep.subr.mxu0 0.0
      %3142 = vmatpush1.msra.mxu0 0.0
      %3143 = vmatprep.subr.mxu0 0.0
      %3144 = vmatpush1.msra.mxu0 0.0
      %3145 = vmatprep.subr.mxu0 0.0
      %3146 = vmatpush1.msra.mxu0 0.0
      %3147 = vmatprep.subr.mxu0 0.0
      %3148 = vmatpush1.msra.mxu0 0.0
      %3149 = vmatprep.subr.mxu0 0.0
      %3150 = vmatpush1.msra.mxu0 0.0
      %3151 = vmatprep.subr.mxu0 0.0
      %3152 = vmatpush1.msra.mxu0 0.0
      %3153 = vmatprep.subr.mxu0 0.0
      %3154 = vmatpush1.msra.mxu0 0.0
      %3155 = vmatprep.subr.mxu0 0.0
      %3156 = vmatpush1.msra.mxu0 0.0
      %3157 = vmatprep.subr.mxu0 0.0
      %3158 = vmatpush1.msra.mxu0 0.0
      %3159 = vmatprep.subr.mxu0 0.0
      %3160 = vmatpush1.msra.mxu0 0.0
      %3161 = vmatprep.subr.mxu0 0.0
      %3162 = vmatpush1.msra.mxu0 0.0
      %3163 = vmatprep.subr.mxu0 0.0
      %3164 = vmatpush1.msra.mxu0 0.0
      %3165 = vmatprep.subr.mxu0 0.0
      %3166 = vmatpush1.msra.mxu0 0.0
      %3167 = vmatprep.subr.mxu0 0.0
      %3168 = vmatpush1.msra.mxu0 0.0
      %3169 = vmatprep.subr.mxu0 0.0
      %3170 = vmatpush1.msra.mxu0 0.0
      %3171 = vmatprep.subr.mxu0 0.0
      %3172 = vmatpush1.msra.mxu0 0.0
      %3173 = vmatprep.subr.mxu0 0.0
      %3174 = vmatpush1.msra.mxu0 0.0
      %3175 = vmatprep.subr.mxu0 0.0
      %3176 = vmatpush1.msra.mxu0 0.0
      %3177 = vmatprep.subr.mxu0 0.0
      %3178 = vmatpush1.msra.mxu0 0.0
      %3179 = vmatprep.subr.mxu0 0.0
      %3180 = vmatpush1.msra.mxu0 0.0
      %3181 = vmatprep.subr.mxu0 0.0
      %3182 = vmatpush1.msra.mxu0 0.0
      %3183 = vmatprep.subr.mxu0 0.0
      %3184 = vmatpush1.msra.mxu0 0.0
      %3185 = vmatprep.subr.mxu0 0.0
      %3186 = vmatpush1.msra.mxu0 0.0
      %3187 = vmatprep.mubr.f32.mxu0 0.0
      %3188 = vmatmul.mubr.f32.gmra.mrb[0].mxu0 %v3121
      %v3189 = vpop.f32.mrb[0].mxu0
      %v3190 = vadd.f32 %v927, %v3189
      %v3191 = vpop.f32.mrb[0].mxu0
      %3192 = vdwg.mxu0
      %v3194 = vsel %vm929, %v281, 0
      %3196 = vmatprep.subr.mxu0 0.0
      %3197 = vmatpush1.msra.mxu0 %v694
      %3198 = vmatprep.subr.mxu0 0.0
      %3199 = vmatpush1.msra.mxu0 %v696
      %3200 = vmatprep.subr.mxu0 0.0
      %3201 = vmatpush1.msra.mxu0 0.0
      %3202 = vmatprep.subr.mxu0 0.0
      %3203 = vmatpush1.msra.mxu0 0.0
      %3204 = vmatprep.subr.mxu0 0.0
      %3205 = vmatpush1.msra.mxu0 0.0
      %3206 = vmatprep.subr.mxu0 0.0
      %3207 = vmatpush1.msra.mxu0 0.0
      %3208 = vmatprep.subr.mxu0 0.0
      %3209 = vmatpush1.msra.mxu0 0.0
      %3210 = vmatprep.subr.mxu0 0.0
      %3211 = vmatpush1.msra.mxu0 0.0
      %3212 = vmatprep.subr.mxu0 0.0
      %3213 = vmatpush1.msra.mxu0 0.0
      %3214 = vmatprep.subr.mxu0 0.0
      %3215 = vmatpush1.msra.mxu0 0.0
      %3216 = vmatprep.subr.mxu0 0.0
      %3217 = vmatpush1.msra.mxu0 0.0
      %3218 = vmatprep.subr.mxu0 0.0
      %3219 = vmatpush1.msra.mxu0 0.0
      %3220 = vmatprep.subr.mxu0 0.0
      %3221 = vmatpush1.msra.mxu0 0.0
      %3222 = vmatprep.subr.mxu0 0.0
      %3223 = vmatpush1.msra.mxu0 0.0
      %3224 = vmatprep.subr.mxu0 0.0
      %3225 = vmatpush1.msra.mxu0 0.0
      %3226 = vmatprep.subr.mxu0 0.0
      %3227 = vmatpush1.msra.mxu0 0.0
      %3228 = vmatprep.subr.mxu0 0.0
      %3229 = vmatpush1.msra.mxu0 0.0
      %3230 = vmatprep.subr.mxu0 0.0
      %3231 = vmatpush1.msra.mxu0 0.0
      %3232 = vmatprep.subr.mxu0 0.0
      %3233 = vmatpush1.msra.mxu0 0.0
      %3234 = vmatprep.subr.mxu0 0.0
      %3235 = vmatpush1.msra.mxu0 0.0
      %3236 = vmatprep.subr.mxu0 0.0
      %3237 = vmatpush1.msra.mxu0 0.0
      %3238 = vmatprep.subr.mxu0 0.0
      %3239 = vmatpush1.msra.mxu0 0.0
      %3240 = vmatprep.subr.mxu0 0.0
      %3241 = vmatpush1.msra.mxu0 0.0
      %3242 = vmatprep.subr.mxu0 0.0
      %3243 = vmatpush1.msra.mxu0 0.0
      %3244 = vmatprep.subr.mxu0 0.0
      %3245 = vmatpush1.msra.mxu0 0.0
      %3246 = vmatprep.subr.mxu0 0.0
      %3247 = vmatpush1.msra.mxu0 0.0
      %3248 = vmatprep.subr.mxu0 0.0
      %3249 = vmatpush1.msra.mxu0 0.0
      %3250 = vmatprep.subr.mxu0 0.0
      %3251 = vmatpush1.msra.mxu0 0.0
      %3252 = vmatprep.subr.mxu0 0.0
      %3253 = vmatpush1.msra.mxu0 0.0
      %3254 = vmatprep.subr.mxu0 0.0
      %3255 = vmatpush1.msra.mxu0 0.0
      %3256 = vmatprep.subr.mxu0 0.0
      %3257 = vmatpush1.msra.mxu0 0.0
      %3258 = vmatprep.subr.mxu0 0.0
      %3259 = vmatpush1.msra.mxu0 0.0
      %3260 = vmatprep.mubr.f32.mxu0 0.0
      %3261 = vmatmul.mubr.f32.gmra.mrb[0].mxu0 %v3194
      %v3262 = vpop.f32.mrb[0].mxu0
      %v3263 = vadd.f32 %v927, %v3262
      %v3264 = vpop.f32.mrb[0].mxu0
      %3265 = vdwg.mxu0
      %v3266 = vadd.f32 %v1000, %v765
      %v3267 = vadd.f32 %v1073, %v770
      %v3268 = vadd.f32 %v1146, %v775
      %v3269 = vadd.f32 %v1219, %v780
      %v3270 = vadd.f32 %v1292, %v785
      %v3271 = vadd.f32 %v1365, %v790
      %v3272 = vadd.f32 %v1438, %v795
      %v3273 = vadd.f32 %v1511, %v800
      %v3274 = vadd.f32 %v1584, %v805
      %v3275 = vadd.f32 %v1657, %v810
      %v3276 = vadd.f32 %v1730, %v815
      %v3277 = vadd.f32 %v1803, %v820
      %v3278 = vadd.f32 %v1876, %v825
      %v3279 = vadd.f32 %v1949, %v830
      %v3280 = vadd.f32 %v2022, %v835
      %v3281 = vadd.f32 %v2095, %v840
      %v3282 = vadd.f32 %v2168, %v845
      %v3283 = vadd.f32 %v2241, %v850
      %v3284 = vadd.f32 %v2314, %v855
      %v3285 = vadd.f32 %v2387, %v860
      %v3286 = vadd.f32 %v2460, %v865
      %v3287 = vadd.f32 %v2533, %v870
      %v3288 = vadd.f32 %v2606, %v875
      %v3289 = vadd.f32 %v2679, %v880
      %v3290 = vadd.f32 %v2752, %v885
      %v3291 = vadd.f32 %v2825, %v890
      %v3292 = vadd.f32 %v2898, %v895
      %v3293 = vadd.f32 %v2971, %v900
      %v3294 = vadd.f32 %v3044, %v905
      %v3295 = vadd.f32 %v3117, %v910
      %v3296 = vadd.f32 %v3190, %v915
      %v3297 = vadd.f32 %v3263, %v920
      %v3298 = vxor.u32 %v3266, 2147483648
      %v3299 = vxor.u32 %v3267, 2147483648
      %v3300 = vxor.u32 %v3268, 2147483648
      %v3301 = vxor.u32 %v3269, 2147483648
      %v3302 = vxor.u32 %v3270, 2147483648
      %v3303 = vxor.u32 %v3271, 2147483648
      %v3304 = vxor.u32 %v3272, 2147483648
      %v3305 = vxor.u32 %v3273, 2147483648
      %v3306 = vxor.u32 %v3274, 2147483648
      %v3307 = vxor.u32 %v3275, 2147483648
      %v3308 = vxor.u32 %v3276, 2147483648
      %v3309 = vxor.u32 %v3277, 2147483648
      %v3310 = vxor.u32 %v3278, 2147483648
      %v3311 = vxor.u32 %v3279, 2147483648
      %v3312 = vxor.u32 %v3280, 2147483648
      %v3313 = vxor.u32 %v3281, 2147483648
      %v3314 = vxor.u32 %v3282, 2147483648
      %v3315 = vxor.u32 %v3283, 2147483648
      %v3316 = vxor.u32 %v3284, 2147483648
      %v3317 = vxor.u32 %v3285, 2147483648
      %v3318 = vxor.u32 %v3286, 2147483648
      %v3319 = vxor.u32 %v3287, 2147483648
      %v3320 = vxor.u32 %v3288, 2147483648
      %v3321 = vxor.u32 %v3289, 2147483648
      %v3322 = vxor.u32 %v3290, 2147483648
      %v3323 = vxor.u32 %v3291, 2147483648
      %v3324 = vxor.u32 %v3292, 2147483648
      %v3325 = vxor.u32 %v3293, 2147483648
      %v3326 = vxor.u32 %v3294, 2147483648
      %v3327 = vxor.u32 %v3295, 2147483648
      %v3328 = vxor.u32 %v3296, 2147483648
      %v3329 = vxor.u32 %v3297, 2147483648
      %v3330 = vmul.f32 %v3298, 1.442695
      %v3331 = vpow.pop %v3330
      %v3332 = vmul.f32 %v3299, 1.442695
      %v3333 = vpow.pop %v3332
      %v3334 = vmul.f32 %v3300, 1.442695
      %v3335 = vpow.pop %v3334
      %v3336 = vmul.f32 %v3301, 1.442695
      %v3337 = vpow.pop %v3336
      %v3338 = vmul.f32 %v3302, 1.442695
      %v3339 = vpow.pop %v3338
      %v3340 = vmul.f32 %v3303, 1.442695
      %v3341 = vpow.pop %v3340
      %v3342 = vmul.f32 %v3304, 1.442695
      %v3343 = vpow.pop %v3342
      %v3344 = vmul.f32 %v3305, 1.442695
      %v3345 = vpow.pop %v3344
      %v3346 = vmul.f32 %v3306, 1.442695
      %v3347 = vpow.pop %v3346
      %v3348 = vmul.f32 %v3307, 1.442695
      %v3349 = vpow.pop %v3348
      %v3350 = vmul.f32 %v3308, 1.442695
      %v3351 = vpow.pop %v3350
      %v3352 = vmul.f32 %v3309, 1.442695
      %v3353 = vpow.pop %v3352
      %v3354 = vmul.f32 %v3310, 1.442695
      %v3355 = vpow.pop %v3354
      %v3356 = vmul.f32 %v3311, 1.442695
      %v3357 = vpow.pop %v3356
      %v3358 = vmul.f32 %v3312, 1.442695
      %v3359 = vpow.pop %v3358
      %v3360 = vmul.f32 %v3313, 1.442695
      %v3361 = vpow.pop %v3360
      %v3362 = vmul.f32 %v3314, 1.442695
      %v3363 = vpow.pop %v3362
      %v3364 = vmul.f32 %v3315, 1.442695
      %v3365 = vpow.pop %v3364
      %v3366 = vmul.f32 %v3316, 1.442695
      %v3367 = vpow.pop %v3366
      %v3368 = vmul.f32 %v3317, 1.442695
      %v3369 = vpow.pop %v3368
      %v3370 = vmul.f32 %v3318, 1.442695
      %v3371 = vpow.pop %v3370
      %v3372 = vmul.f32 %v3319, 1.442695
      %v3373 = vpow.pop %v3372
      %v3374 = vmul.f32 %v3320, 1.442695
      %v3375 = vpow.pop %v3374
      %v3376 = vmul.f32 %v3321, 1.442695
      %v3377 = vpow.pop %v3376
      %v3378 = vmul.f32 %v3322, 1.442695
      %v3379 = vpow.pop %v3378
      %v3380 = vmul.f32 %v3323, 1.442695
      %v3381 = vpow.pop %v3380
      %v3382 = vmul.f32 %v3324, 1.442695
      %v3383 = vpow.pop %v3382
      %v3384 = vmul.f32 %v3325, 1.442695
      %v3385 = vpow.pop %v3384
      %v3386 = vmul.f32 %v3326, 1.442695
      %v3387 = vpow.pop %v3386
      %v3388 = vmul.f32 %v3327, 1.442695
      %v3389 = vpow.pop %v3388
      %v3390 = vmul.f32 %v3328, 1.442695
      %v3391 = vpow.pop %v3390
      %v3392 = vmul.f32 %v3329, 1.442695
      %v3393 = vpow.pop %v3392
      %v3394 = vadd.f32 %v3331, 1.0
      %v3395 = vadd.f32 %v3333, 1.0
      %v3396 = vadd.f32 %v3335, 1.0
      %v3397 = vadd.f32 %v3337, 1.0
      %v3398 = vadd.f32 %v3339, 1.0
      %v3399 = vadd.f32 %v3341, 1.0
      %v3400 = vadd.f32 %v3343, 1.0
      %v3401 = vadd.f32 %v3345, 1.0
      %v3402 = vadd.f32 %v3347, 1.0
      %v3403 = vadd.f32 %v3349, 1.0
      %v3404 = vadd.f32 %v3351, 1.0
      %v3405 = vadd.f32 %v3353, 1.0
      %v3406 = vadd.f32 %v3355, 1.0
      %v3407 = vadd.f32 %v3357, 1.0
      %v3408 = vadd.f32 %v3359, 1.0
      %v3409 = vadd.f32 %v3361, 1.0
      %v3410 = vadd.f32 %v3363, 1.0
      %v3411 = vadd.f32 %v3365, 1.0
      %v3412 = vadd.f32 %v3367, 1.0
      %v3413 = vadd.f32 %v3369, 1.0
      %v3414 = vadd.f32 %v3371, 1.0
      %v3415 = vadd.f32 %v3373, 1.0
      %v3416 = vadd.f32 %v3375, 1.0
      %v3417 = vadd.f32 %v3377, 1.0
      %v3418 = vadd.f32 %v3379, 1.0
      %v3419 = vadd.f32 %v3381, 1.0
      %v3420 = vadd.f32 %v3383, 1.0
      %v3421 = vadd.f32 %v3385, 1.0
      %v3422 = vadd.f32 %v3387, 1.0
      %v3423 = vadd.f32 %v3389, 1.0
      %v3424 = vadd.f32 %v3391, 1.0
      %v3425 = vadd.f32 %v3393, 1.0
      %v3426 = vrcp.pop %v3394
      %v3427 = vmul.f32 1.0, %v3426
      %v3428 = vrcp.pop %v3395
      %v3429 = vmul.f32 1.0, %v3428
      %v3430 = vrcp.pop %v3396
      %v3431 = vmul.f32 1.0, %v3430
      %v3432 = vrcp.pop %v3397
      %v3433 = vmul.f32 1.0, %v3432
      %v3434 = vrcp.pop %v3398
      %v3435 = vmul.f32 1.0, %v3434
      %v3436 = vrcp.pop %v3399
      %v3437 = vmul.f32 1.0, %v3436
      %v3438 = vrcp.pop %v3400
      %v3439 = vmul.f32 1.0, %v3438
      %v3440 = vrcp.pop %v3401
      %v3441 = vmul.f32 1.0, %v3440
      %v3442 = vrcp.pop %v3402
      %v3443 = vmul.f32 1.0, %v3442
      %v3444 = vrcp.pop %v3403
      %v3445 = vmul.f32 1.0, %v3444
      %v3446 = vrcp.pop %v3404
      %v3447 = vmul.f32 1.0, %v3446
      %v3448 = vrcp.pop %v3405
      %v3449 = vmul.f32 1.0, %v3448
      %v3450 = vrcp.pop %v3406
      %v3451 = vmul.f32 1.0, %v3450
      %v3452 = vrcp.pop %v3407
      %v3453 = vmul.f32 1.0, %v3452
      %v3454 = vrcp.pop %v3408
      %v3455 = vmul.f32 1.0, %v3454
      %v3456 = vrcp.pop %v3409
      %v3457 = vmul.f32 1.0, %v3456
      %v3458 = vrcp.pop %v3410
      %v3459 = vmul.f32 1.0, %v3458
      %v3460 = vrcp.pop %v3411
      %v3461 = vmul.f32 1.0, %v3460
      %v3462 = vrcp.pop %v3412
      %v3463 = vmul.f32 1.0, %v3462
      %v3464 = vrcp.pop %v3413
      %v3465 = vmul.f32 1.0, %v3464
      %v3466 = vrcp.pop %v3414
      %v3467 = vmul.f32 1.0, %v3466
      %v3468 = vrcp.pop %v3415
      %v3469 = vmul.f32 1.0, %v3468
      %v3470 = vrcp.pop %v3416
      %v3471 = vmul.f32 1.0, %v3470
      %v3472 = vrcp.pop %v3417
      %v3473 = vmul.f32 1.0, %v3472
      %v3474 = vrcp.pop %v3418
      %v3475 = vmul.f32 1.0, %v3474
      %v3476 = vrcp.pop %v3419
      %v3477 = vmul.f32 1.0, %v3476
      %v3478 = vrcp.pop %v3420
      %v3479 = vmul.f32 1.0, %v3478
      %v3480 = vrcp.pop %v3421
      %v3481 = vmul.f32 1.0, %v3480
      %v3482 = vrcp.pop %v3422
      %v3483 = vmul.f32 1.0, %v3482
      %v3484 = vrcp.pop %v3423
      %v3485 = vmul.f32 1.0, %v3484
      %v3486 = vrcp.pop %v3424
      %v3487 = vmul.f32 1.0, %v3486
      %v3488 = vrcp.pop %v3425
      %v3489 = vmul.f32 1.0, %v3488
      %3522 = vrot.lane.b32.xlu0 %v765, 64
      %v3523 = vpop.permute.xlu0 %3522
      %3524 = vrot.lane.b32.xlu0 %v770, 64
      %v3525 = vpop.permute.xlu0 %3524
      %3526 = vrot.lane.b32.xlu0 %v775, 64
      %v3527 = vpop.permute.xlu0 %3526
      %3528 = vrot.lane.b32.xlu0 %v780, 64
      %v3529 = vpop.permute.xlu0 %3528
      %3530 = vrot.lane.b32.xlu0 %v785, 64
      %v3531 = vpop.permute.xlu0 %3530
      %3532 = vrot.lane.b32.xlu0 %v790, 64
      %v3533 = vpop.permute.xlu0 %3532
      %3534 = vrot.lane.b32.xlu0 %v795, 64
      %v3535 = vpop.permute.xlu0 %3534
      %3536 = vrot.lane.b32.xlu0 %v800, 64
      %v3537 = vpop.permute.xlu0 %3536
      %3538 = vrot.lane.b32.xlu0 %v805, 64
      %v3539 = vpop.permute.xlu0 %3538
      %3540 = vrot.lane.b32.xlu0 %v810, 64
      %v3541 = vpop.permute.xlu0 %3540
      %3542 = vrot.lane.b32.xlu0 %v815, 64
      %v3543 = vpop.permute.xlu0 %3542
      %3544 = vrot.lane.b32.xlu0 %v820, 64
      %v3545 = vpop.permute.xlu0 %3544
      %3546 = vrot.lane.b32.xlu0 %v825, 64
      %v3547 = vpop.permute.xlu0 %3546
      %3548 = vrot.lane.b32.xlu0 %v830, 64
      %v3549 = vpop.permute.xlu0 %3548
      %3550 = vrot.lane.b32.xlu0 %v835, 64
      %v3551 = vpop.permute.xlu0 %3550
      %3552 = vrot.lane.b32.xlu0 %v840, 64
      %v3553 = vpop.permute.xlu0 %3552
      %3554 = vrot.lane.b32.xlu0 %v845, 64
      %v3555 = vpop.permute.xlu0 %3554
      %3556 = vrot.lane.b32.xlu0 %v850, 64
      %v3557 = vpop.permute.xlu0 %3556
      %3558 = vrot.lane.b32.xlu0 %v855, 64
      %v3559 = vpop.permute.xlu0 %3558
      %3560 = vrot.lane.b32.xlu0 %v860, 64
      %v3561 = vpop.permute.xlu0 %3560
      %3562 = vrot.lane.b32.xlu0 %v865, 64
      %v3563 = vpop.permute.xlu0 %3562
      %3564 = vrot.lane.b32.xlu0 %v870, 64
      %v3565 = vpop.permute.xlu0 %3564
      %3566 = vrot.lane.b32.xlu0 %v875, 64
      %v3567 = vpop.permute.xlu0 %3566
      %3568 = vrot.lane.b32.xlu0 %v880, 64
      %v3569 = vpop.permute.xlu0 %3568
      %3570 = vrot.lane.b32.xlu0 %v885, 64
      %v3571 = vpop.permute.xlu0 %3570
      %3572 = vrot.lane.b32.xlu0 %v890, 64
      %v3573 = vpop.permute.xlu0 %3572
      %3574 = vrot.lane.b32.xlu0 %v895, 64
      %v3575 = vpop.permute.xlu0 %3574
      %3576 = vrot.lane.b32.xlu0 %v900, 64
      %v3577 = vpop.permute.xlu0 %3576
      %3578 = vrot.lane.b32.xlu0 %v905, 64
      %v3579 = vpop.permute.xlu0 %3578
      %3580 = vrot.lane.b32.xlu0 %v910, 64
      %v3581 = vpop.permute.xlu0 %3580
      %3582 = vrot.lane.b32.xlu0 %v915, 64
      %v3583 = vpop.permute.xlu0 %3582
      %3584 = vrot.lane.b32.xlu0 %v920, 64
      %v3585 = vpop.permute.xlu0 %3584
      %v3618 = vmul.f32 %v3427, %v3523
      %v3619 = vmul.f32 %v3429, %v3525
      %v3620 = vmul.f32 %v3431, %v3527
      %v3621 = vmul.f32 %v3433, %v3529
      %v3622 = vmul.f32 %v3435, %v3531
      %v3623 = vmul.f32 %v3437, %v3533
      %v3624 = vmul.f32 %v3439, %v3535
      %v3625 = vmul.f32 %v3441, %v3537
      %v3626 = vmul.f32 %v3443, %v3539
      %v3627 = vmul.f32 %v3445, %v3541
      %v3628 = vmul.f32 %v3447, %v3543
      %v3629 = vmul.f32 %v3449, %v3545
      %v3630 = vmul.f32 %v3451, %v3547
      %v3631 = vmul.f32 %v3453, %v3549
      %v3632 = vmul.f32 %v3455, %v3551
      %v3633 = vmul.f32 %v3457, %v3553
      %v3634 = vmul.f32 %v3459, %v3555
      %v3635 = vmul.f32 %v3461, %v3557
      %v3636 = vmul.f32 %v3463, %v3559
      %v3637 = vmul.f32 %v3465, %v3561
      %v3638 = vmul.f32 %v3467, %v3563
      %v3639 = vmul.f32 %v3469, %v3565
      %v3640 = vmul.f32 %v3471, %v3567
      %v3641 = vmul.f32 %v3473, %v3569
      %v3642 = vmul.f32 %v3475, %v3571
      %v3643 = vmul.f32 %v3477, %v3573
      %v3644 = vmul.f32 %v3479, %v3575
      %v3645 = vmul.f32 %v3481, %v3577
      %v3646 = vmul.f32 %v3483, %v3579
      %v3647 = vmul.f32 %v3485, %v3581
      %v3648 = vmul.f32 %v3487, %v3583
      %v3649 = vmul.f32 %v3489, %v3585
      %3682 = vrot.lane.b32.xlu0 %v3618, 64
      %v3683 = vpop.permute.xlu0 %3682
      %3684 = vrot.lane.b32.xlu0 %v3619, 64
      %v3685 = vpop.permute.xlu0 %3684
      %3686 = vrot.lane.b32.xlu0 %v3620, 64
      %v3687 = vpop.permute.xlu0 %3686
      %3688 = vrot.lane.b32.xlu0 %v3621, 64
      %v3689 = vpop.permute.xlu0 %3688
      %3690 = vrot.lane.b32.xlu0 %v3622, 64
      %v3691 = vpop.permute.xlu0 %3690
      %3692 = vrot.lane.b32.xlu0 %v3623, 64
      %v3693 = vpop.permute.xlu0 %3692
      %3694 = vrot.lane.b32.xlu0 %v3624, 64
      %v3695 = vpop.permute.xlu0 %3694
      %3696 = vrot.lane.b32.xlu0 %v3625, 64
      %v3697 = vpop.permute.xlu0 %3696
      %3698 = vrot.lane.b32.xlu0 %v3626, 64
      %v3699 = vpop.permute.xlu0 %3698
      %3700 = vrot.lane.b32.xlu0 %v3627, 64
      %v3701 = vpop.permute.xlu0 %3700
      %3702 = vrot.lane.b32.xlu0 %v3628, 64
      %v3703 = vpop.permute.xlu0 %3702
      %3704 = vrot.lane.b32.xlu0 %v3629, 64
      %v3705 = vpop.permute.xlu0 %3704
      %3706 = vrot.lane.b32.xlu0 %v3630, 64
      %v3707 = vpop.permute.xlu0 %3706
      %3708 = vrot.lane.b32.xlu0 %v3631, 64
      %v3709 = vpop.permute.xlu0 %3708
      %3710 = vrot.lane.b32.xlu0 %v3632, 64
      %v3711 = vpop.permute.xlu0 %3710
      %3712 = vrot.lane.b32.xlu0 %v3633, 64
      %v3713 = vpop.permute.xlu0 %3712
      %3714 = vrot.lane.b32.xlu0 %v3634, 64
      %v3715 = vpop.permute.xlu0 %3714
      %3716 = vrot.lane.b32.xlu0 %v3635, 64
      %v3717 = vpop.permute.xlu0 %3716
      %3718 = vrot.lane.b32.xlu0 %v3636, 64
      %v3719 = vpop.permute.xlu0 %3718
      %3720 = vrot.lane.b32.xlu0 %v3637, 64
      %v3721 = vpop.permute.xlu0 %3720
      %3722 = vrot.lane.b32.xlu0 %v3638, 64
      %v3723 = vpop.permute.xlu0 %3722
      %3724 = vrot.lane.b32.xlu0 %v3639, 64
      %v3725 = vpop.permute.xlu0 %3724
      %3726 = vrot.lane.b32.xlu0 %v3640, 64
      %v3727 = vpop.permute.xlu0 %3726
      %3728 = vrot.lane.b32.xlu0 %v3641, 64
      %v3729 = vpop.permute.xlu0 %3728
      %3730 = vrot.lane.b32.xlu0 %v3642, 64
      %v3731 = vpop.permute.xlu0 %3730
      %3732 = vrot.lane.b32.xlu0 %v3643, 64
      %v3733 = vpop.permute.xlu0 %3732
      %3734 = vrot.lane.b32.xlu0 %v3644, 64
      %v3735 = vpop.permute.xlu0 %3734
      %3736 = vrot.lane.b32.xlu0 %v3645, 64
      %v3737 = vpop.permute.xlu0 %3736
      %3738 = vrot.lane.b32.xlu0 %v3646, 64
      %v3739 = vpop.permute.xlu0 %3738
      %3740 = vrot.lane.b32.xlu0 %v3647, 64
      %v3741 = vpop.permute.xlu0 %3740
      %3742 = vrot.lane.b32.xlu0 %v3648, 64
      %v3743 = vpop.permute.xlu0 %3742
      %3744 = vrot.lane.b32.xlu0 %v3649, 64
      %v3745 = vpop.permute.xlu0 %3744
      %v3778 = vadd.f32 %v1000, %v3683
      %v3779 = vadd.f32 %v1073, %v3685
      %v3780 = vadd.f32 %v1146, %v3687
      %v3781 = vadd.f32 %v1219, %v3689
      %v3782 = vadd.f32 %v1292, %v3691
      %v3783 = vadd.f32 %v1365, %v3693
      %v3784 = vadd.f32 %v1438, %v3695
      %v3785 = vadd.f32 %v1511, %v3697
      %v3786 = vadd.f32 %v1584, %v3699
      %v3787 = vadd.f32 %v1657, %v3701
      %v3788 = vadd.f32 %v1730, %v3703
      %v3789 = vadd.f32 %v1803, %v3705
      %v3790 = vadd.f32 %v1876, %v3707
      %v3791 = vadd.f32 %v1949, %v3709
      %v3792 = vadd.f32 %v2022, %v3711
      %v3793 = vadd.f32 %v2095, %v3713
      %v3794 = vadd.f32 %v2168, %v3715
      %v3795 = vadd.f32 %v2241, %v3717
      %v3796 = vadd.f32 %v2314, %v3719
      %v3797 = vadd.f32 %v2387, %v3721
      %v3798 = vadd.f32 %v2460, %v3723
      %v3799 = vadd.f32 %v2533, %v3725
      %v3800 = vadd.f32 %v2606, %v3727
      %v3801 = vadd.f32 %v2679, %v3729
      %v3802 = vadd.f32 %v2752, %v3731
      %v3803 = vadd.f32 %v2825, %v3733
      %v3804 = vadd.f32 %v2898, %v3735
      %v3805 = vadd.f32 %v2971, %v3737
      %v3806 = vadd.f32 %v3044, %v3739
      %v3807 = vadd.f32 %v3117, %v3741
      %v3808 = vadd.f32 %v3190, %v3743
      %v3809 = vadd.f32 %v3263, %v3745
      %v3810 = vtanh.pop %v3778
      %v3811 = vtanh.pop %v3779
      %v3812 = vtanh.pop %v3780
      %v3813 = vtanh.pop %v3781
      %v3814 = vtanh.pop %v3782
      %v3815 = vtanh.pop %v3783
      %v3816 = vtanh.pop %v3784
      %v3817 = vtanh.pop %v3785
      %v3818 = vtanh.pop %v3786
      %v3819 = vtanh.pop %v3787
      %v3820 = vtanh.pop %v3788
      %v3821 = vtanh.pop %v3789
      %v3822 = vtanh.pop %v3790
      %v3823 = vtanh.pop %v3791
      %v3824 = vtanh.pop %v3792
      %v3825 = vtanh.pop %v3793
      %v3826 = vtanh.pop %v3794
      %v3827 = vtanh.pop %v3795
      %v3828 = vtanh.pop %v3796
      %v3829 = vtanh.pop %v3797
      %v3830 = vtanh.pop %v3798
      %v3831 = vtanh.pop %v3799
      %v3832 = vtanh.pop %v3800
      %v3833 = vtanh.pop %v3801
      %v3834 = vtanh.pop %v3802
      %v3835 = vtanh.pop %v3803
      %v3836 = vtanh.pop %v3804
      %v3837 = vtanh.pop %v3805
      %v3838 = vtanh.pop %v3806
      %v3839 = vtanh.pop %v3807
      %v3840 = vtanh.pop %v3808
      %v3841 = vtanh.pop %v3809
      %3842 = vrot.lane.b32.xlu0 %v296, 64
      %v3843 = vpop.permute.xlu0 %3842
      %3844 = vrot.lane.b32.xlu0 %v297, 64
      %v3845 = vpop.permute.xlu0 %3844
      %3846 = vrot.lane.b32.xlu0 %v298, 64
      %v3847 = vpop.permute.xlu0 %3846
      %3848 = vrot.lane.b32.xlu0 %v299, 64
      %v3849 = vpop.permute.xlu0 %3848
      %3850 = vrot.lane.b32.xlu0 %v300, 64
      %v3851 = vpop.permute.xlu0 %3850
      %3852 = vrot.lane.b32.xlu0 %v301, 64
      %v3853 = vpop.permute.xlu0 %3852
      %3854 = vrot.lane.b32.xlu0 %v302, 64
      %v3855 = vpop.permute.xlu0 %3854
      %3856 = vrot.lane.b32.xlu0 %v303, 64
      %v3857 = vpop.permute.xlu0 %3856
      %3858 = vrot.lane.b32.xlu0 %v304, 64
      %v3859 = vpop.permute.xlu0 %3858
      %3860 = vrot.lane.b32.xlu0 %v305, 64
      %v3861 = vpop.permute.xlu0 %3860
      %3862 = vrot.lane.b32.xlu0 %v306, 64
      %v3863 = vpop.permute.xlu0 %3862
      %3864 = vrot.lane.b32.xlu0 %v307, 64
      %v3865 = vpop.permute.xlu0 %3864
      %3866 = vrot.lane.b32.xlu0 %v308, 64
      %v3867 = vpop.permute.xlu0 %3866
      %3868 = vrot.lane.b32.xlu0 %v309, 64
      %v3869 = vpop.permute.xlu0 %3868
      %3870 = vrot.lane.b32.xlu0 %v310, 64
      %v3871 = vpop.permute.xlu0 %3870
      %3872 = vrot.lane.b32.xlu0 %v311, 64
      %v3873 = vpop.permute.xlu0 %3872
      %3874 = vrot.lane.b32.xlu0 %v312, 64
      %v3875 = vpop.permute.xlu0 %3874
      %3876 = vrot.lane.b32.xlu0 %v313, 64
      %v3877 = vpop.permute.xlu0 %3876
      %3878 = vrot.lane.b32.xlu0 %v314, 64
      %v3879 = vpop.permute.xlu0 %3878
      %3880 = vrot.lane.b32.xlu0 %v315, 64
      %v3881 = vpop.permute.xlu0 %3880
      %3882 = vrot.lane.b32.xlu0 %v316, 64
      %v3883 = vpop.permute.xlu0 %3882
      %3884 = vrot.lane.b32.xlu0 %v317, 64
      %v3885 = vpop.permute.xlu0 %3884
      %3886 = vrot.lane.b32.xlu0 %v318, 64
      %v3887 = vpop.permute.xlu0 %3886
      %3888 = vrot.lane.b32.xlu0 %v319, 64
      %v3889 = vpop.permute.xlu0 %3888
      %3890 = vrot.lane.b32.xlu0 %v320, 64
      %v3891 = vpop.permute.xlu0 %3890
      %3892 = vrot.lane.b32.xlu0 %v321, 64
      %v3893 = vpop.permute.xlu0 %3892
      %3894 = vrot.lane.b32.xlu0 %v322, 64
      %v3895 = vpop.permute.xlu0 %3894
      %3896 = vrot.lane.b32.xlu0 %v323, 64
      %v3897 = vpop.permute.xlu0 %3896
      %3898 = vrot.lane.b32.xlu0 %v324, 64
      %v3899 = vpop.permute.xlu0 %3898
      %3900 = vrot.lane.b32.xlu0 %v325, 64
      %v3901 = vpop.permute.xlu0 %3900
      %3902 = vrot.lane.b32.xlu0 %v326, 64
      %v3903 = vpop.permute.xlu0 %3902
      %3904 = vrot.lane.b32.xlu0 %v327, 64
      %v3905 = vpop.permute.xlu0 %3904
      %v3938 = vsub.f32 %v3810, %v3843
      %v3939 = vsub.f32 %v3811, %v3845
      %v3940 = vsub.f32 %v3812, %v3847
      %v3941 = vsub.f32 %v3813, %v3849
      %v3942 = vsub.f32 %v3814, %v3851
      %v3943 = vsub.f32 %v3815, %v3853
      %v3944 = vsub.f32 %v3816, %v3855
      %v3945 = vsub.f32 %v3817, %v3857
      %v3946 = vsub.f32 %v3818, %v3859
      %v3947 = vsub.f32 %v3819, %v3861
      %v3948 = vsub.f32 %v3820, %v3863
      %v3949 = vsub.f32 %v3821, %v3865
      %v3950 = vsub.f32 %v3822, %v3867
      %v3951 = vsub.f32 %v3823, %v3869
      %v3952 = vsub.f32 %v3824, %v3871
      %v3953 = vsub.f32 %v3825, %v3873
      %v3954 = vsub.f32 %v3826, %v3875
      %v3955 = vsub.f32 %v3827, %v3877
      %v3956 = vsub.f32 %v3828, %v3879
      %v3957 = vsub.f32 %v3829, %v3881
      %v3958 = vsub.f32 %v3830, %v3883
      %v3959 = vsub.f32 %v3831, %v3885
      %v3960 = vsub.f32 %v3832, %v3887
      %v3961 = vsub.f32 %v3833, %v3889
      %v3962 = vsub.f32 %v3834, %v3891
      %v3963 = vsub.f32 %v3835, %v3893
      %v3964 = vsub.f32 %v3836, %v3895
      %v3965 = vsub.f32 %v3837, %v3897
      %v3966 = vsub.f32 %v3838, %v3899
      %v3967 = vsub.f32 %v3839, %v3901
      %v3968 = vsub.f32 %v3840, %v3903
      %v3969 = vsub.f32 %v3841, %v3905
      %4002 = vrot.lane.b32.xlu0 %v3938, 96
      %v4003 = vpop.permute.xlu0 %4002
      %4004 = vrot.lane.b32.xlu0 %v3939, 96
      %v4005 = vpop.permute.xlu0 %4004
      %4006 = vrot.lane.b32.xlu0 %v3940, 96
      %v4007 = vpop.permute.xlu0 %4006
      %4008 = vrot.lane.b32.xlu0 %v3941, 96
      %v4009 = vpop.permute.xlu0 %4008
      %4010 = vrot.lane.b32.xlu0 %v3942, 96
      %v4011 = vpop.permute.xlu0 %4010
      %4012 = vrot.lane.b32.xlu0 %v3943, 96
      %v4013 = vpop.permute.xlu0 %4012
      %4014 = vrot.lane.b32.xlu0 %v3944, 96
      %v4015 = vpop.permute.xlu0 %4014
      %4016 = vrot.lane.b32.xlu0 %v3945, 96
      %v4017 = vpop.permute.xlu0 %4016
      %4018 = vrot.lane.b32.xlu0 %v3946, 96
      %v4019 = vpop.permute.xlu0 %4018
      %4020 = vrot.lane.b32.xlu0 %v3947, 96
      %v4021 = vpop.permute.xlu0 %4020
      %4022 = vrot.lane.b32.xlu0 %v3948, 96
      %v4023 = vpop.permute.xlu0 %4022
      %4024 = vrot.lane.b32.xlu0 %v3949, 96
      %v4025 = vpop.permute.xlu0 %4024
      %4026 = vrot.lane.b32.xlu0 %v3950, 96
      %v4027 = vpop.permute.xlu0 %4026
      %4028 = vrot.lane.b32.xlu0 %v3951, 96
      %v4029 = vpop.permute.xlu0 %4028
      %4030 = vrot.lane.b32.xlu0 %v3952, 96
      %v4031 = vpop.permute.xlu0 %4030
      %4032 = vrot.lane.b32.xlu0 %v3953, 96
      %v4033 = vpop.permute.xlu0 %4032
      %4034 = vrot.lane.b32.xlu0 %v3954, 96
      %v4035 = vpop.permute.xlu0 %4034
      %4036 = vrot.lane.b32.xlu0 %v3955, 96
      %v4037 = vpop.permute.xlu0 %4036
      %4038 = vrot.lane.b32.xlu0 %v3956, 96
      %v4039 = vpop.permute.xlu0 %4038
      %4040 = vrot.lane.b32.xlu0 %v3957, 96
      %v4041 = vpop.permute.xlu0 %4040
      %4042 = vrot.lane.b32.xlu0 %v3958, 96
      %v4043 = vpop.permute.xlu0 %4042
      %4044 = vrot.lane.b32.xlu0 %v3959, 96
      %v4045 = vpop.permute.xlu0 %4044
      %4046 = vrot.lane.b32.xlu0 %v3960, 96
      %v4047 = vpop.permute.xlu0 %4046
      %4048 = vrot.lane.b32.xlu0 %v3961, 96
      %v4049 = vpop.permute.xlu0 %4048
      %4050 = vrot.lane.b32.xlu0 %v3962, 96
      %v4051 = vpop.permute.xlu0 %4050
      %4052 = vrot.lane.b32.xlu0 %v3963, 96
      %v4053 = vpop.permute.xlu0 %4052
      %4054 = vrot.lane.b32.xlu0 %v3964, 96
      %v4055 = vpop.permute.xlu0 %4054
      %4056 = vrot.lane.b32.xlu0 %v3965, 96
      %v4057 = vpop.permute.xlu0 %4056
      %4058 = vrot.lane.b32.xlu0 %v3966, 96
      %v4059 = vpop.permute.xlu0 %4058
      %4060 = vrot.lane.b32.xlu0 %v3967, 96
      %v4061 = vpop.permute.xlu0 %4060
      %4062 = vrot.lane.b32.xlu0 %v3968, 96
      %v4063 = vpop.permute.xlu0 %4062
      %4064 = vrot.lane.b32.xlu0 %v3969, 96
      %v4065 = vpop.permute.xlu0 %4064
      %v4098 = vmul.f32 %v3427, %v4003
      %v4099 = vmul.f32 %v3429, %v4005
      %v4100 = vmul.f32 %v3431, %v4007
      %v4101 = vmul.f32 %v3433, %v4009
      %v4102 = vmul.f32 %v3435, %v4011
      %v4103 = vmul.f32 %v3437, %v4013
      %v4104 = vmul.f32 %v3439, %v4015
      %v4105 = vmul.f32 %v3441, %v4017
      %v4106 = vmul.f32 %v3443, %v4019
      %v4107 = vmul.f32 %v3445, %v4021
      %v4108 = vmul.f32 %v3447, %v4023
      %v4109 = vmul.f32 %v3449, %v4025
      %v4110 = vmul.f32 %v3451, %v4027
      %v4111 = vmul.f32 %v3453, %v4029
      %v4112 = vmul.f32 %v3455, %v4031
      %v4113 = vmul.f32 %v3457, %v4033
      %v4114 = vmul.f32 %v3459, %v4035
      %v4115 = vmul.f32 %v3461, %v4037
      %v4116 = vmul.f32 %v3463, %v4039
      %v4117 = vmul.f32 %v3465, %v4041
      %v4118 = vmul.f32 %v3467, %v4043
      %v4119 = vmul.f32 %v3469, %v4045
      %v4120 = vmul.f32 %v3471, %v4047
      %v4121 = vmul.f32 %v3473, %v4049
      %v4122 = vmul.f32 %v3475, %v4051
      %v4123 = vmul.f32 %v3477, %v4053
      %v4124 = vmul.f32 %v3479, %v4055
      %v4125 = vmul.f32 %v3481, %v4057
      %v4126 = vmul.f32 %v3483, %v4059
      %v4127 = vmul.f32 %v3485, %v4061
      %v4128 = vmul.f32 %v3487, %v4063
      %v4129 = vmul.f32 %v3489, %v4065
      %4162 = vrot.lane.b32.xlu0 %v4098, 96
      %v4163 = vpop.permute.xlu0 %4162
      %4164 = vrot.lane.b32.xlu0 %v4099, 96
      %v4165 = vpop.permute.xlu0 %4164
      %4166 = vrot.lane.b32.xlu0 %v4100, 96
      %v4167 = vpop.permute.xlu0 %4166
      %4168 = vrot.lane.b32.xlu0 %v4101, 96
      %v4169 = vpop.permute.xlu0 %4168
      %4170 = vrot.lane.b32.xlu0 %v4102, 96
      %v4171 = vpop.permute.xlu0 %4170
      %4172 = vrot.lane.b32.xlu0 %v4103, 96
      %v4173 = vpop.permute.xlu0 %4172
      %4174 = vrot.lane.b32.xlu0 %v4104, 96
      %v4175 = vpop.permute.xlu0 %4174
      %4176 = vrot.lane.b32.xlu0 %v4105, 96
      %v4177 = vpop.permute.xlu0 %4176
      %4178 = vrot.lane.b32.xlu0 %v4106, 96
      %v4179 = vpop.permute.xlu0 %4178
      %4180 = vrot.lane.b32.xlu0 %v4107, 96
      %v4181 = vpop.permute.xlu0 %4180
      %4182 = vrot.lane.b32.xlu0 %v4108, 96
      %v4183 = vpop.permute.xlu0 %4182
      %4184 = vrot.lane.b32.xlu0 %v4109, 96
      %v4185 = vpop.permute.xlu0 %4184
      %4186 = vrot.lane.b32.xlu0 %v4110, 96
      %v4187 = vpop.permute.xlu0 %4186
      %4188 = vrot.lane.b32.xlu0 %v4111, 96
      %v4189 = vpop.permute.xlu0 %4188
      %4190 = vrot.lane.b32.xlu0 %v4112, 96
      %v4191 = vpop.permute.xlu0 %4190
      %4192 = vrot.lane.b32.xlu0 %v4113, 96
      %v4193 = vpop.permute.xlu0 %4192
      %4194 = vrot.lane.b32.xlu0 %v4114, 96
      %v4195 = vpop.permute.xlu0 %4194
      %4196 = vrot.lane.b32.xlu0 %v4115, 96
      %v4197 = vpop.permute.xlu0 %4196
      %4198 = vrot.lane.b32.xlu0 %v4116, 96
      %v4199 = vpop.permute.xlu0 %4198
      %4200 = vrot.lane.b32.xlu0 %v4117, 96
      %v4201 = vpop.permute.xlu0 %4200
      %4202 = vrot.lane.b32.xlu0 %v4118, 96
      %v4203 = vpop.permute.xlu0 %4202
      %4204 = vrot.lane.b32.xlu0 %v4119, 96
      %v4205 = vpop.permute.xlu0 %4204
      %4206 = vrot.lane.b32.xlu0 %v4120, 96
      %v4207 = vpop.permute.xlu0 %4206
      %4208 = vrot.lane.b32.xlu0 %v4121, 96
      %v4209 = vpop.permute.xlu0 %4208
      %4210 = vrot.lane.b32.xlu0 %v4122, 96
      %v4211 = vpop.permute.xlu0 %4210
      %4212 = vrot.lane.b32.xlu0 %v4123, 96
      %v4213 = vpop.permute.xlu0 %4212
      %4214 = vrot.lane.b32.xlu0 %v4124, 96
      %v4215 = vpop.permute.xlu0 %4214
      %4216 = vrot.lane.b32.xlu0 %v4125, 96
      %v4217 = vpop.permute.xlu0 %4216
      %4218 = vrot.lane.b32.xlu0 %v4126, 96
      %v4219 = vpop.permute.xlu0 %4218
      %4220 = vrot.lane.b32.xlu0 %v4127, 96
      %v4221 = vpop.permute.xlu0 %4220
      %4222 = vrot.lane.b32.xlu0 %v4128, 96
      %v4223 = vpop.permute.xlu0 %4222
      %4224 = vrot.lane.b32.xlu0 %v4129, 96
      %v4225 = vpop.permute.xlu0 %4224
      %v4258 = vadd.f32 %v296, %v4163
      %v4259 = vadd.f32 %v297, %v4165
      %v4260 = vadd.f32 %v298, %v4167
      %v4261 = vadd.f32 %v299, %v4169
      %v4262 = vadd.f32 %v300, %v4171
      %v4263 = vadd.f32 %v301, %v4173
      %v4264 = vadd.f32 %v302, %v4175
      %v4265 = vadd.f32 %v303, %v4177
      %v4266 = vadd.f32 %v304, %v4179
      %v4267 = vadd.f32 %v305, %v4181
      %v4268 = vadd.f32 %v306, %v4183
      %v4269 = vadd.f32 %v307, %v4185
      %v4270 = vadd.f32 %v308, %v4187
      %v4271 = vadd.f32 %v309, %v4189
      %v4272 = vadd.f32 %v310, %v4191
      %v4273 = vadd.f32 %v311, %v4193
      %v4274 = vadd.f32 %v312, %v4195
      %v4275 = vadd.f32 %v313, %v4197
      %v4276 = vadd.f32 %v314, %v4199
      %v4277 = vadd.f32 %v315, %v4201
      %v4278 = vadd.f32 %v316, %v4203
      %v4279 = vadd.f32 %v317, %v4205
      %v4280 = vadd.f32 %v318, %v4207
      %v4281 = vadd.f32 %v319, %v4209
      %v4282 = vadd.f32 %v320, %v4211
      %v4283 = vadd.f32 %v321, %v4213
      %v4284 = vadd.f32 %v322, %v4215
      %v4285 = vadd.f32 %v323, %v4217
      %v4286 = vadd.f32 %v324, %v4219
      %v4287 = vadd.f32 %v325, %v4221
      %v4288 = vadd.f32 %v326, %v4223
      %v4289 = vadd.f32 %v327, %v4225
      %4290 = vst.msk [vmem:[%s248] sm:$0xff] %vm344, %v4258
      %4291 = vst.msk [vmem:[%s248 + $0x8] sm:$0xff] %vm344, %v4259
      %4292 = vst.msk [vmem:[%s248 + $0x10] sm:$0xff] %vm344, %v4260
      %4293 = vst.msk [vmem:[%s248 + $0x18] sm:$0xff] %vm344, %v4261
      %4294 = vst.msk [vmem:[%s248 + $0x20] sm:$0xff] %vm344, %v4262
      %4295 = vst.msk [vmem:[%s248 + $0x28] sm:$0xff] %vm344, %v4263
      %4296 = vst.msk [vmem:[%s248 + $0x30] sm:$0xff] %vm344, %v4264
      %4297 = vst.msk [vmem:[%s248 + $0x38] sm:$0xff] %vm344, %v4265
      %4298 = vst.msk [vmem:[%s248 + $0x40] sm:$0xff] %vm344, %v4266
      %4299 = vst.msk [vmem:[%s248 + $0x48] sm:$0xff] %vm344, %v4267
      %4300 = vst.msk [vmem:[%s248 + $0x50] sm:$0xff] %vm344, %v4268
      %4301 = vst.msk [vmem:[%s248 + $0x58] sm:$0xff] %vm344, %v4269
      %4302 = vst.msk [vmem:[%s248 + $0x60] sm:$0xff] %vm344, %v4270
      %4303 = vst.msk [vmem:[%s248 + $0x68] sm:$0xff] %vm344, %v4271
      %4304 = vst.msk [vmem:[%s248 + $0x70] sm:$0xff] %vm344, %v4272
      %4305 = vst.msk [vmem:[%s248 + $0x78] sm:$0xff] %vm344, %v4273
      %4306 = vst.msk [vmem:[%s248 + $0x80] sm:$0xff] %vm344, %v4274
      %4307 = vst.msk [vmem:[%s248 + $0x88] sm:$0xff] %vm344, %v4275
      %4308 = vst.msk [vmem:[%s248 + $0x90] sm:$0xff] %vm344, %v4276
      %4309 = vst.msk [vmem:[%s248 + $0x98] sm:$0xff] %vm344, %v4277
      %4310 = vst.msk [vmem:[%s248 + $0xa0] sm:$0xff] %vm344, %v4278
      %4311 = vst.msk [vmem:[%s248 + $0xa8] sm:$0xff] %vm344, %v4279
      %4312 = vst.msk [vmem:[%s248 + $0xb0] sm:$0xff] %vm344, %v4280
      %4313 = vst.msk [vmem:[%s248 + $0xb8] sm:$0xff] %vm344, %v4281
      %4314 = vst.msk [vmem:[%s248 + $0xc0] sm:$0xff] %vm344, %v4282
      %4315 = vst.msk [vmem:[%s248 + $0xc8] sm:$0xff] %vm344, %v4283
      %4316 = vst.msk [vmem:[%s248 + $0xd0] sm:$0xff] %vm344, %v4284
      %4317 = vst.msk [vmem:[%s248 + $0xd8] sm:$0xff] %vm344, %v4285
      %4318 = vst.msk [vmem:[%s248 + $0xe0] sm:$0xff] %vm344, %v4286
      %4319 = vst.msk [vmem:[%s248 + $0xe8] sm:$0xff] %vm344, %v4287
      %4320 = vst.msk [vmem:[%s248 + $0xf0] sm:$0xff] %vm344, %v4288
      %4321 = vst.msk [vmem:[%s248 + $0xf8] sm:$0xff] %vm344, %v4289
      %s4322 = smul.u32 32, %s16
      %p4323 = scmp.lt.s32.totalorder %s4322, 63
      %s4324 = scalar_select %p4323, %s4322, 63
      %s4325 = smul.addr %s4324, 8
      %s4326 = scalar_lea.vmem %s5, %s4325
      // Predicated region
      $region41: #{tpu_custom_call.1} parent=39 // pred_check
        %p4327 = pneg %p149
      $region42: #{tpu_custom_call.1} parent=39 // pred_check_branch
        %4329 = sbr.rel (%p4327) target = $region44
      $region43: #{tpu_custom_call.1} parent=39 // pred_region
        %s4330 = smul.u32 32, %s16
      $region44: #{tpu_custom_call.1} parent=39 // pred_fallthru
        _
    $region40: #{tpu_custom_call.1} parent=5 // pred_fallthru
      _
    %p4331 = scmp.le.s32.totalorder 2, %s11
    // Predicated region
    $region45: #{tpu_custom_call.1} parent=5 // pred_check
      %p4332 = pneg %p4331
    $region46: #{tpu_custom_call.1} parent=5 // pred_check_branch
      %4334 = sbr.rel (%p4332) target = $region48
    $region47: #{tpu_custom_call.1} parent=5 // pred_region
      %s4335 = ssub.s32 %s11, 2
      // Predicated region
      $region49: #{tpu_custom_call.1} parent=47 // pred_check
        %p4336 = pneg %p155
      $region50: #{tpu_custom_call.1} parent=47 // pred_check_branch
        %4338 = sbr.rel (%p4336) target = $region52
      $region51: #{tpu_custom_call.1} parent=47 // pred_region
        %s4339 = smul.u32 32, %s17
        %p4340 = scmp.lt.s32.totalorder %s4339, 63
        %s4341 = scalar_select %p4340, %s4339, 63
        %s4342 = smul.addr %s4341, 8
        %s4343 = scalar_lea.vmem %s5, %s4342
      $region52: #{tpu_custom_call.1} parent=47 // pred_fallthru
        _
    $region48: #{tpu_custom_call.1} parent=5 // pred_fallthru
      _
  $region6: #{tpu_custom_call.1} parent=0 // loop_footer
    %s15 = sadd.s32 1, %s11
  $region7: #{tpu_custom_call.1} parent=0 // loop_footer_branch
    %10 = sbr.rel target = $region3
  $region8: #{tpu_custom_call.1} parent=0 // loop_exit
    _

</llo_original>
